<compile_context>
chip_gen: v6e
topology: v6e:2x2x1
jax: 0.10.0
libtpu: 0.0.40
codegen_flags: <defaults>
</compile_context>

<pallas_src>
import math

import numpy as np

import jax
import jax.numpy as jnp
from jax.experimental import pallas as pl
from jax.experimental.pallas import tpu as pltpu

IS = 16        # input_size
H = 4          # number_of_heads
NBLOCKS = 3    # number_of_blocks
LN_EPS = 1e-5
LANES = 128    # slab lane width (f32 tile width)


def _align8(n):
    return (n + 7) & ~7


# ----------------------- math traced inside the Pallas kernel -----------------------

def _linear(x, w, b):
    return jnp.dot(x, w, preferred_element_type=jnp.float32) + b


def _linear_block(x, p):
    w1, b1, w2, b2 = p
    return _linear(jnp.maximum(_linear(x, w1, b1), 0.0), w2, b2)


def _layer_norm(x, g, b):
    # g, b are pre-broadcast to x.shape (hoisted once per block).
    mu = jnp.mean(x, axis=-1, keepdims=True)
    var = jnp.mean((x - mu) ** 2, axis=-1, keepdims=True)
    return (x - mu) * jax.lax.rsqrt(var + LN_EPS) * g + b


def _softmax_lastdim(s):
    s = s - jnp.max(s, axis=-1, keepdims=True)
    e = jnp.exp(s)
    return e * pl.reciprocal(jnp.sum(e, axis=-1, keepdims=True), approx=True)


def _forward_math(x_pb, x_cs, params):
    pb_lb, blocks, cs_lb, fin = params
    inv = 1.0 / math.sqrt(IS)

    x = _linear_block(x_pb, pb_lb)                            # (N, IS)
    n = x.shape[0]

    # Additive causal mask, computed once and reused by every head/block.
    row = jax.lax.broadcasted_iota(jnp.int32, (n, n), 0)
    col = jax.lax.broadcasted_iota(jnp.int32, (n, n), 1)
    mask_bias = jnp.where(col <= row, 0.0, -1e30).astype(jnp.float32)

    for blk in blocks:
        hw, hb, rw, rb, fw1, fb1, fw2, fb2, g, beta = blk
        # Hoist LayerNorm affine broadcasts out of the unrolled head loop.
        gb = jnp.broadcast_to(g, (n, IS))
        bb = jnp.broadcast_to(beta, (n, IS))

        # Fused 4-head projection: one (N,16)x(16,64) matmul.
        proj = jnp.dot(x, hw, preferred_element_type=jnp.float32) + hb   # (N, H*IS)

        recs = []
        for h in range(H):
            hs = proj[:, h * IS:(h + 1) * IS]                            # (N, IS)
            s = jax.lax.dot_general(hs, hs, (((1,), (1,)), ((), ())),
                                    preferred_element_type=jnp.float32) * inv
            p = _softmax_lastdim(s + mask_bias)                          # causal softmax
            rec = jnp.dot(p, hs, preferred_element_type=jnp.float32)
            recs.append(_layer_norm(rec + x, gb, bb))
        cat = jnp.concatenate(recs, axis=1)                              # (N, H*IS)

        # Fused reducer: one (N,64)x(64,16) matmul.
        attn = jnp.dot(cat, rw, preferred_element_type=jnp.float32) + rb
        ff = _linear_block(attn, (fw1, fb1, fw2, fb2))
        x = _layer_norm(ff + attn, gb, bb)

    pcs = _linear_block(x_cs, cs_lb)                          # (1, IS)

    # Event scores as an MXU matmul (contract the lane dim), not an XLU reduce.
    sv = jax.lax.dot_general(x, pcs, (((1,), (1,)), ((), ())),
                             preferred_element_type=jnp.float32) * inv   # (N, 1)
    sv = sv - jnp.max(sv, axis=0, keepdims=True)
    e = jnp.exp(sv)
    w = e * pl.reciprocal(jnp.sum(e, axis=0, keepdims=True), approx=True)  # (N, 1)

    # Weighted sum over events as a matmul: (1,N)x(N,IS) via contracting dim 0.
    fpbr = jax.lax.dot_general(w, x, (((0,), (0,)), ((), ())),
                               preferred_element_type=jnp.float32)       # (1, IS)

    fw1a, fw1b, fb1, fw2, fb2 = fin                           # final_lb with split W1
    h1 = jnp.maximum(jnp.dot(fpbr, fw1a, preferred_element_type=jnp.float32)
                     + jnp.dot(pcs, fw1b, preferred_element_type=jnp.float32)
                     + fb1, 0.0)
    return jnp.dot(h1, fw2, preferred_element_type=jnp.float32) + fb2    # (1, IS)


def _make_kernel(layout):
    """layout: tuple of (row_offset, nrows, ncols) per parameter, in order."""

    def kernel(pb_ref, cs_ref, slab_ref, out_ref):
        it = iter(layout)

        def take():
            o, r, c = next(it)
            return slab_ref[pl.ds(o, r), pl.ds(0, c)]    # static slice of the slab

        pb_lb = tuple(take() for _ in range(4))
        blocks = tuple(tuple(take() for _ in range(10)) for _ in range(NBLOCKS))
        cs_lb = tuple(take() for _ in range(4))
        fin = tuple(take() for _ in range(5))

        out = _forward_math(pb_ref[...], cs_ref[...], (pb_lb, blocks, cs_lb, fin))
        out_ref[...] = out.astype(out_ref.dtype)

    return kernel


def make_forward(layout, slab_rows, n_events, pbv, csv):
    kernel = _make_kernel(layout)

    # Rough advisory cost (network is ~0.2 MFLOP / ~0.35 MB).
    cost = pl.CostEstimate(
        flops=200_000,
        transcendentals=1_000,
        bytes_accessed=slab_rows * LANES * 4 + n_events * pbv * 4 + csv * 4 + IS * 4,
    )

    @jax.jit
    def forward(previous_bets, current_state, slab):
        cs2 = current_state.reshape(1, -1)
        out = pl.pallas_call(
            kernel,
            out_shape=jax.ShapeDtypeStruct((1, IS), jnp.float32),
            in_specs=[pl.BlockSpec(memory_space=pltpu.MemorySpace.VMEM)] * 3,
            out_specs=pl.BlockSpec(memory_space=pltpu.MemorySpace.VMEM),
            cost_estimate=cost,
        )(previous_bets, cs2, slab)
        return out[0]

    return forward


# ----------------------- deterministic parameter construction -----------------------

def _init_linear(key, fan_in, fan_out):
    kw, kb = jax.random.split(key)
    bound = 1.0 / math.sqrt(fan_in)
    w = jax.random.uniform(kw, (fan_in, fan_out), jnp.float32, -bound, bound)
    b = jax.random.uniform(kb, (1, fan_out), jnp.float32, -bound, bound)
    return w, b


def init_params(key, pbv, csv):
    keys = jax.random.split(key, 32)
    ki = iter(keys)
    P = {}
    P["pb_lb"] = _init_linear(next(ki), pbv, 2 * IS) + _init_linear(next(ki), 2 * IS, IS)
    blocks = []
    for _ in range(NBLOCKS):
        hw, hb = _init_linear(next(ki), IS * H, IS * H)     # heads
        rw, rb = _init_linear(next(ki), IS * H, IS)         # linear_reducer
        fw1, fb1 = _init_linear(next(ki), IS, IS)           # ff_block
        fw2, fb2 = _init_linear(next(ki), IS, IS)
        g = jnp.ones((1, IS), jnp.float32)                  # LayerNorm affine
        beta = jnp.zeros((1, IS), jnp.float32)
        blocks.append((hw, hb, rw, rb, fw1, fb1, fw2, fb2, g, beta))
    P["blocks"] = blocks
    P["cs_lb"] = _init_linear(next(ki), csv, 2 * IS) + _init_linear(next(ki), 2 * IS, IS)
    P["final_lb"] = _init_linear(next(ki), 2 * IS, IS) + _init_linear(next(ki), IS, IS)
    # TODO(synk): current_state_lb_two and the scorer LinearBlock exist in __init__
    # but are unused by forward(); they are intentionally not instantiated here.
    return P


def pack_params_for_kernel(P):
    """Re-express + pack all parameters into one (rows, 128) f32 VMEM slab.

    x.repeat(1,H) @ heads_W  ==  x @ (sum over the H input row-blocks of heads_W),
    so the heads weight is collapsed to an effective (IS, H*IS) matrix host-side.
    The final LinearBlock's first weight (2*IS, IS) is split into its fpbr / pcs
    halves so the kernel never concatenates along the lane dim.
    Each parameter is placed at an 8-row-aligned offset, columns start at 0.
    """
    arrs = []
    arrs += list(P["pb_lb"])                                            # 4
    for (hw, hb, rw, rb, fw1, fb1, fw2, fb2, g, beta) in P["blocks"]:
        hw_full = sum(hw[j * IS:(j + 1) * IS, :] for j in range(H))     # (IS, H*IS)
        arrs += [hw_full, hb, rw, rb, fw1, fb1, fw2, fb2, g, beta]      # 10 per block
    arrs += list(P["cs_lb"])                                            # 4
    fw1, fb1, fw2, fb2 = P["final_lb"]
    arrs += [fw1[:IS, :], fw1[IS:, :], fb1, fw2, fb2]                   # 5

    layout = []
    off = 0
    for a in arrs:
        r, c = a.shape
        layout.append((int(off), int(r), int(c)))
        off += _align8(r)
    total_rows = _align8(off)

    slab = np.zeros((total_rows, LANES), np.float32)
    for (o, r, c), a in zip(layout, arrs):
        slab[o:o + r, :c] = np.asarray(a, np.float32)
    return jnp.asarray(slab), tuple(layout), total_rows


# ----------------------- pure-JAX reference (mirrors PyTorch code literally) --------

def reference_forward(previous_bets, current_state, P):
    def lb(x, p):
        w1, b1, w2, b2 = p
        return jnp.maximum(x @ w1 + b1, 0.0) @ w2 + b2

    def ln(x, g, b):
        mu = x.mean(-1, keepdims=True)
        var = ((x - mu) ** 2).mean(-1, keepdims=True)
        return (x - mu) / jnp.sqrt(var + LN_EPS) * g + b

    x = lb(previous_bets, P["pb_lb"])
    n = x.shape[0]
    for (hw, hb, rw, rb, fw1, fb1, fw2, fb2, g, beta) in P["blocks"]:
        rep = jnp.tile(x, (1, H))
        proj = rep @ hw + hb
        recons = []
        for h in range(H):
            hs = proj[:, h * IS:(h + 1) * IS]
            s = hs @ hs.T / math.sqrt(IS)
            mask = jnp.tril(jnp.ones((n, n), bool))
            s = jnp.where(mask, s, -jnp.inf)
            p = jax.nn.softmax(s, axis=-1)
            recons.append(ln(p @ hs + x, g, beta))
        attn = jnp.concatenate(recons, axis=1) @ rw + rb
        ff = lb(attn, (fw1, fb1, fw2, fb2))
        x = ln(ff + attn, g, beta)
    pcs = lb(current_state.reshape(1, -1), P["cs_lb"])
    sv = (x @ pcs.T) / math.sqrt(IS)
    w = jax.nn.softmax(sv, axis=0)
    fpbr = jnp.sum(w * x, axis=0, keepdims=True)
    fin = jnp.concatenate([fpbr, pcs], axis=1)
    return lb(fin, P["final_lb"])[0]


# ----------------------- main --------------------------------------------------------

if __name__ == "__main__":
    key = jax.random.PRNGKey(0)
    k_pb, k_cs, k_params = jax.random.split(key, 3)

    N_EVENTS = 8   # number of previous bet events (sequence length)
    PBV = 8        # previous_bet_vector_size
    CSV = 12       # current_state_vector_size

    previous_bets = jax.random.normal(k_pb, (N_EVENTS, PBV), jnp.float32)
    current_state = jax.random.normal(k_cs, (CSV,), jnp.float32)

    P = init_params(k_params, PBV, CSV)
    slab, layout, slab_rows = pack_params_for_kernel(P)

    forward = make_forward(layout, slab_rows, N_EVENTS, PBV, CSV)
    out = forward(previous_bets, current_state, slab)
    out = jax.block_until_ready(out)

    ref = reference_forward(previous_bets, current_state, P)
    # Tightened vs. the previous 2e-2; the EUP approximate reciprocal used for the
    # softmax denominators caps the achievable agreement below exact-f32 level.
    if not jnp.allclose(out, ref, rtol=5e-3, atol=5e-3):
        raise AssertionError(f"kernel/reference mismatch:\nkernel={out}\nref={ref}")

    print("KERNEL_OK")
</pallas_src>

<mosaic_0001>
module attributes {stable_mosaic.version = 11 : i64} {
  func.func @kernel(%arg0: memref<8x8xf32, #tpu.memory_space<vmem>>, %arg1: memref<1x12xf32, #tpu.memory_space<vmem>>, %arg2: memref<664x128xf32, #tpu.memory_space<vmem>>, %arg3: memref<1x16xf32, #tpu.memory_space<vmem>>) attributes {dimension_semantics = [], scalar_prefetch = 0 : i64, scratch_operands = 0 : i64, tpu.core_type = #tpu.core_type<tc>} {
    %c0 = arith.constant 0 : index
    %c0_0 = arith.constant 0 : index
    %0 = vector.load %arg2[%c0, %c0_0] : memref<664x128xf32, #tpu.memory_space<vmem>>, vector<8x32xf32>
    %c8 = arith.constant 8 : index
    %c0_1 = arith.constant 0 : index
    %1 = vector.load %arg2[%c8, %c0_1] : memref<664x128xf32, #tpu.memory_space<vmem>>, vector<1x32xf32>
    %c16 = arith.constant 16 : index
    %c0_2 = arith.constant 0 : index
    %2 = vector.load %arg2[%c16, %c0_2] : memref<664x128xf32, #tpu.memory_space<vmem>>, vector<32x16xf32>
    %c48 = arith.constant 48 : index
    %c0_3 = arith.constant 0 : index
    %3 = vector.load %arg2[%c48, %c0_3] : memref<664x128xf32, #tpu.memory_space<vmem>>, vector<1x16xf32>
    %c56 = arith.constant 56 : index
    %c0_4 = arith.constant 0 : index
    %4 = vector.load %arg2[%c56, %c0_4] : memref<664x128xf32, #tpu.memory_space<vmem>>, vector<16x64xf32>
    %c72 = arith.constant 72 : index
    %c0_5 = arith.constant 0 : index
    %5 = vector.load %arg2[%c72, %c0_5] : memref<664x128xf32, #tpu.memory_space<vmem>>, vector<1x64xf32>
    %c80 = arith.constant 80 : index
    %c0_6 = arith.constant 0 : index
    %6 = vector.load %arg2[%c80, %c0_6] : memref<664x128xf32, #tpu.memory_space<vmem>>, vector<64x16xf32>
    %c144 = arith.constant 144 : index
    %c0_7 = arith.constant 0 : index
    %7 = vector.load %arg2[%c144, %c0_7] : memref<664x128xf32, #tpu.memory_space<vmem>>, vector<1x16xf32>
    %c152 = arith.constant 152 : index
    %c0_8 = arith.constant 0 : index
    %8 = vector.load %arg2[%c152, %c0_8] : memref<664x128xf32, #tpu.memory_space<vmem>>, vector<16x16xf32>
    %c168 = arith.constant 168 : index
    %c0_9 = arith.constant 0 : index
    %9 = vector.load %arg2[%c168, %c0_9] : memref<664x128xf32, #tpu.memory_space<vmem>>, vector<1x16xf32>
    %c176 = arith.constant 176 : index
    %c0_10 = arith.constant 0 : index
    %10 = vector.load %arg2[%c176, %c0_10] : memref<664x128xf32, #tpu.memory_space<vmem>>, vector<16x16xf32>
    %c192 = arith.constant 192 : index
    %c0_11 = arith.constant 0 : index
    %11 = vector.load %arg2[%c192, %c0_11] : memref<664x128xf32, #tpu.memory_space<vmem>>, vector<1x16xf32>
    %c200 = arith.constant 200 : index
    %c0_12 = arith.constant 0 : index
    %12 = vector.load %arg2[%c200, %c0_12] : memref<664x128xf32, #tpu.memory_space<vmem>>, vector<1x16xf32>
    %c208 = arith.constant 208 : index
    %c0_13 = arith.constant 0 : index
    %13 = vector.load %arg2[%c208, %c0_13] : memref<664x128xf32, #tpu.memory_space<vmem>>, vector<1x16xf32>
    %c216 = arith.constant 216 : index
    %c0_14 = arith.constant 0 : index
    %14 = vector.load %arg2[%c216, %c0_14] : memref<664x128xf32, #tpu.memory_space<vmem>>, vector<16x64xf32>
    %c232 = arith.constant 232 : index
    %c0_15 = arith.constant 0 : index
    %15 = vector.load %arg2[%c232, %c0_15] : memref<664x128xf32, #tpu.memory_space<vmem>>, vector<1x64xf32>
    %c240 = arith.constant 240 : index
    %c0_16 = arith.constant 0 : index
    %16 = vector.load %arg2[%c240, %c0_16] : memref<664x128xf32, #tpu.memory_space<vmem>>, vector<64x16xf32>
    %c304 = arith.constant 304 : index
    %c0_17 = arith.constant 0 : index
    %17 = vector.load %arg2[%c304, %c0_17] : memref<664x128xf32, #tpu.memory_space<vmem>>, vector<1x16xf32>
    %c312 = arith.constant 312 : index
    %c0_18 = arith.constant 0 : index
    %18 = vector.load %arg2[%c312, %c0_18] : memref<664x128xf32, #tpu.memory_space<vmem>>, vector<16x16xf32>
    %c328 = arith.constant 328 : index
    %c0_19 = arith.constant 0 : index
    %19 = vector.load %arg2[%c328, %c0_19] : memref<664x128xf32, #tpu.memory_space<vmem>>, vector<1x16xf32>
    %c336 = arith.constant 336 : index
    %c0_20 = arith.constant 0 : index
    %20 = vector.load %arg2[%c336, %c0_20] : memref<664x128xf32, #tpu.memory_space<vmem>>, vector<16x16xf32>
    %c352 = arith.constant 352 : index
    %c0_21 = arith.constant 0 : index
    %21 = vector.load %arg2[%c352, %c0_21] : memref<664x128xf32, #tpu.memory_space<vmem>>, vector<1x16xf32>
    %c360 = arith.constant 360 : index
    %c0_22 = arith.constant 0 : index
    %22 = vector.load %arg2[%c360, %c0_22] : memref<664x128xf32, #tpu.memory_space<vmem>>, vector<1x16xf32>
    %c368 = arith.constant 368 : index
    %c0_23 = arith.constant 0 : index
    %23 = vector.load %arg2[%c368, %c0_23] : memref<664x128xf32, #tpu.memory_space<vmem>>, vector<1x16xf32>
    %c376 = arith.constant 376 : index
    %c0_24 = arith.constant 0 : index
    %24 = vector.load %arg2[%c376, %c0_24] : memref<664x128xf32, #tpu.memory_space<vmem>>, vector<16x64xf32>
    %c392 = arith.constant 392 : index
    %c0_25 = arith.constant 0 : index
    %25 = vector.load %arg2[%c392, %c0_25] : memref<664x128xf32, #tpu.memory_space<vmem>>, vector<1x64xf32>
    %c400 = arith.constant 400 : index
    %c0_26 = arith.constant 0 : index
    %26 = vector.load %arg2[%c400, %c0_26] : memref<664x128xf32, #tpu.memory_space<vmem>>, vector<64x16xf32>
    %c464 = arith.constant 464 : index
    %c0_27 = arith.constant 0 : index
    %27 = vector.load %arg2[%c464, %c0_27] : memref<664x128xf32, #tpu.memory_space<vmem>>, vector<1x16xf32>
    %c472 = arith.constant 472 : index
    %c0_28 = arith.constant 0 : index
    %28 = vector.load %arg2[%c472, %c0_28] : memref<664x128xf32, #tpu.memory_space<vmem>>, vector<16x16xf32>
    %c488 = arith.constant 488 : index
    %c0_29 = arith.constant 0 : index
    %29 = vector.load %arg2[%c488, %c0_29] : memref<664x128xf32, #tpu.memory_space<vmem>>, vector<1x16xf32>
    %c496 = arith.constant 496 : index
    %c0_30 = arith.constant 0 : index
    %30 = vector.load %arg2[%c496, %c0_30] : memref<664x128xf32, #tpu.memory_space<vmem>>, vector<16x16xf32>
    %c512 = arith.constant 512 : index
    %c0_31 = arith.constant 0 : index
    %31 = vector.load %arg2[%c512, %c0_31] : memref<664x128xf32, #tpu.memory_space<vmem>>, vector<1x16xf32>
    %c520 = arith.constant 520 : index
    %c0_32 = arith.constant 0 : index
    %32 = vector.load %arg2[%c520, %c0_32] : memref<664x128xf32, #tpu.memory_space<vmem>>, vector<1x16xf32>
    %c528 = arith.constant 528 : index
    %c0_33 = arith.constant 0 : index
    %33 = vector.load %arg2[%c528, %c0_33] : memref<664x128xf32, #tpu.memory_space<vmem>>, vector<1x16xf32>
    %c536 = arith.constant 536 : index
    %c0_34 = arith.constant 0 : index
    %34 = vector.load %arg2[%c536, %c0_34] : memref<664x128xf32, #tpu.memory_space<vmem>>, vector<12x32xf32>
    %c552 = arith.constant 552 : index
    %c0_35 = arith.constant 0 : index
    %35 = vector.load %arg2[%c552, %c0_35] : memref<664x128xf32, #tpu.memory_space<vmem>>, vector<1x32xf32>
    %c560 = arith.constant 560 : index
    %c0_36 = arith.constant 0 : index
    %36 = vector.load %arg2[%c560, %c0_36] : memref<664x128xf32, #tpu.memory_space<vmem>>, vector<32x16xf32>
    %c592 = arith.constant 592 : index
    %c0_37 = arith.constant 0 : index
    %37 = vector.load %arg2[%c592, %c0_37] : memref<664x128xf32, #tpu.memory_space<vmem>>, vector<1x16xf32>
    %c600 = arith.constant 600 : index
    %c0_38 = arith.constant 0 : index
    %38 = vector.load %arg2[%c600, %c0_38] : memref<664x128xf32, #tpu.memory_space<vmem>>, vector<16x16xf32>
    %c616 = arith.constant 616 : index
    %c0_39 = arith.constant 0 : index
    %39 = vector.load %arg2[%c616, %c0_39] : memref<664x128xf32, #tpu.memory_space<vmem>>, vector<16x16xf32>
    %c632 = arith.constant 632 : index
    %c0_40 = arith.constant 0 : index
    %40 = vector.load %arg2[%c632, %c0_40] : memref<664x128xf32, #tpu.memory_space<vmem>>, vector<1x16xf32>
    %c640 = arith.constant 640 : index
    %c0_41 = arith.constant 0 : index
    %41 = vector.load %arg2[%c640, %c0_41] : memref<664x128xf32, #tpu.memory_space<vmem>>, vector<16x16xf32>
    %c656 = arith.constant 656 : index
    %c0_42 = arith.constant 0 : index
    %42 = vector.load %arg2[%c656, %c0_42] : memref<664x128xf32, #tpu.memory_space<vmem>>, vector<1x16xf32>
    %c0_43 = arith.constant 0 : index
    %c0_44 = arith.constant 0 : index
    %43 = vector.load %arg0[%c0_43, %c0_44] : memref<8x8xf32, #tpu.memory_space<vmem>>, vector<8x8xf32>
    %c0_45 = arith.constant 0 : index
    %c0_46 = arith.constant 0 : index
    %44 = vector.load %arg1[%c0_45, %c0_46] : memref<1x12xf32, #tpu.memory_space<vmem>>, vector<1x12xf32>
    %cst = arith.constant dense<0.000000e+00> : vector<8x32xf32>
    %45 = tpu.matmul %43, %0, %cst {dimension_numbers = #tpu.dot_dimension_numbers<[1], [0], [0], [1], [0, 0, 1, 1], [], []>} : vector<8x8xf32>, vector<8x32xf32>, vector<8x32xf32> -> vector<8x32xf32>
    %46 = vector.broadcast %1 : vector<1x32xf32> to vector<8x32xf32>
    %47 = arith.addf %45, %46 : vector<8x32xf32>
    %cst_47 = arith.constant 0.000000e+00 : f32
    %48 = vector.broadcast %cst_47 : f32 to vector<8x32xf32>
    %49 = arith.maximumf %47, %48 : vector<8x32xf32>
    %cst_48 = arith.constant dense<0.000000e+00> : vector<8x16xf32>
    %50 = tpu.matmul %49, %2, %cst_48 {dimension_numbers = #tpu.dot_dimension_numbers<[1], [0], [0], [1], [0, 0, 1, 1], [], []>} : vector<8x32xf32>, vector<32x16xf32>, vector<8x16xf32> -> vector<8x16xf32>
    %51 = vector.broadcast %3 : vector<1x16xf32> to vector<8x16xf32>
    %52 = arith.addf %50, %51 : vector<8x16xf32>
    %53 = tpu.iota {dimensions = array<i32: 0>} : vector<8x8xi32>
    %54 = tpu.iota {dimensions = array<i32: 1>} : vector<8x8xi32>
    %55 = arith.cmpi sle, %54, %53 : vector<8x8xi32>
    %cst_49 = arith.constant 0.000000e+00 : f32
    %cst_50 = arith.constant -1.000000e+30 : f32
    %56 = vector.broadcast %cst_49 : f32 to vector<8x8xf32>
    %57 = vector.broadcast %cst_50 : f32 to vector<8x8xf32>
    %58 = arith.select %55, %56, %57 : vector<8x8xi1>, vector<8x8xf32>
    %59 = vector.shape_cast %12 : vector<1x16xf32> to vector<1x16xf32>
    %60 = vector.broadcast %59 : vector<1x16xf32> to vector<8x16xf32>
    %61 = vector.shape_cast %13 : vector<1x16xf32> to vector<1x16xf32>
    %62 = vector.broadcast %61 : vector<1x16xf32> to vector<8x16xf32>
    %cst_51 = arith.constant dense<0.000000e+00> : vector<8x64xf32>
    %63 = tpu.matmul %52, %4, %cst_51 {dimension_numbers = #tpu.dot_dimension_numbers<[1], [0], [0], [1], [0, 0, 1, 1], [], []>} : vector<8x16xf32>, vector<16x64xf32>, vector<8x64xf32> -> vector<8x64xf32>
    %64 = vector.broadcast %5 : vector<1x64xf32> to vector<8x64xf32>
    %65 = arith.addf %63, %64 : vector<8x64xf32>
    %66 = vector.extract_strided_slice %65 {offsets = [0, 0], sizes = [8, 16], strides = [1, 1]} : vector<8x64xf32> to vector<8x16xf32>
    %cst_52 = arith.constant dense<0.000000e+00> : vector<8x8xf32>
    %67 = tpu.matmul %66, %66, %cst_52 {dimension_numbers = #tpu.dot_dimension_numbers<[1], [1], [0], [0], [0, 0, 1, 0], [], []>} : vector<8x16xf32>, vector<8x16xf32>, vector<8x8xf32> -> vector<8x8xf32>
    %cst_53 = arith.constant 2.500000e-01 : f32
    %68 = vector.broadcast %cst_53 : f32 to vector<8x8xf32>
    %69 = arith.mulf %67, %68 : vector<8x8xf32>
    %70 = arith.addf %69, %58 : vector<8x8xf32>
    %cst_54 = arith.constant dense<0xFF800000> : vector<8xf32>
    %71 = vector.multi_reduction <maximumf>, %70, %cst_54 [1] : vector<8x8xf32> to vector<8xf32>
    %72 = vector.shape_cast %71 : vector<8xf32> to vector<8x1xf32>
    %73 = vector.broadcast %72 : vector<8x1xf32> to vector<8x8xf32>
    %74 = arith.subf %70, %73 : vector<8x8xf32>
    %75 = math.exp %74 : vector<8x8xf32>
    %cst_55 = arith.constant dense<0.000000e+00> : vector<8xf32>
    %76 = vector.multi_reduction <add>, %75, %cst_55 [1] : vector<8x8xf32> to vector<8xf32>
    %77 = vector.shape_cast %76 : vector<8xf32> to vector<8x1xf32>
    %78 = tpu.reciprocal %77 {approx = true} : vector<8x1xf32> -> vector<8x1xf32>
    %79 = vector.broadcast %78 : vector<8x1xf32> to vector<8x8xf32>
    %80 = arith.mulf %75, %79 : vector<8x8xf32>
    %cst_56 = arith.constant dense<0.000000e+00> : vector<8x16xf32>
    %81 = tpu.matmul %80, %66, %cst_56 {dimension_numbers = #tpu.dot_dimension_numbers<[1], [0], [0], [1], [0, 0, 1, 1], [], []>} : vector<8x8xf32>, vector<8x16xf32>, vector<8x16xf32> -> vector<8x16xf32>
    %82 = arith.addf %81, %52 : vector<8x16xf32>
    %cst_57 = arith.constant dense<0.000000e+00> : vector<8xf32>
    %83 = vector.multi_reduction <add>, %82, %cst_57 [1] : vector<8x16xf32> to vector<8xf32>
    %84 = vector.shape_cast %83 : vector<8xf32> to vector<8x1xf32>
    %cst_58 = arith.constant 1.600000e+01 : f32
    %85 = vector.broadcast %cst_58 : f32 to vector<8x1xf32>
    %86 = arith.divf %84, %85 : vector<8x1xf32>
    %87 = vector.broadcast %86 : vector<8x1xf32> to vector<8x16xf32>
    %88 = arith.subf %82, %87 : vector<8x16xf32>
    %89 = arith.mulf %88, %88 : vector<8x16xf32>
    %cst_59 = arith.constant dense<0.000000e+00> : vector<8xf32>
    %90 = vector.multi_reduction <add>, %89, %cst_59 [1] : vector<8x16xf32> to vector<8xf32>
    %91 = vector.shape_cast %90 : vector<8xf32> to vector<8x1xf32>
    %cst_60 = arith.constant 1.600000e+01 : f32
    %92 = vector.broadcast %cst_60 : f32 to vector<8x1xf32>
    %93 = arith.divf %91, %92 : vector<8x1xf32>
    %94 = vector.broadcast %86 : vector<8x1xf32> to vector<8x16xf32>
    %95 = arith.subf %82, %94 : vector<8x16xf32>
    %cst_61 = arith.constant 9.99999974E-6 : f32
    %96 = vector.broadcast %cst_61 : f32 to vector<8x1xf32>
    %97 = arith.addf %93, %96 : vector<8x1xf32>
    %98 = math.rsqrt %97 : vector<8x1xf32>
    %99 = vector.broadcast %98 : vector<8x1xf32> to vector<8x16xf32>
    %100 = arith.mulf %95, %99 : vector<8x16xf32>
    %101 = arith.mulf %100, %60 : vector<8x16xf32>
    %102 = arith.addf %101, %62 : vector<8x16xf32>
    %103 = vector.extract_strided_slice %65 {offsets = [0, 16], sizes = [8, 16], strides = [1, 1]} : vector<8x64xf32> to vector<8x16xf32>
    %cst_62 = arith.constant dense<0.000000e+00> : vector<8x8xf32>
    %104 = tpu.matmul %103, %103, %cst_62 {dimension_numbers = #tpu.dot_dimension_numbers<[1], [1], [0], [0], [0, 0, 1, 0], [], []>} : vector<8x16xf32>, vector<8x16xf32>, vector<8x8xf32> -> vector<8x8xf32>
    %cst_63 = arith.constant 2.500000e-01 : f32
    %105 = vector.broadcast %cst_63 : f32 to vector<8x8xf32>
    %106 = arith.mulf %104, %105 : vector<8x8xf32>
    %107 = arith.addf %106, %58 : vector<8x8xf32>
    %cst_64 = arith.constant dense<0xFF800000> : vector<8xf32>
    %108 = vector.multi_reduction <maximumf>, %107, %cst_64 [1] : vector<8x8xf32> to vector<8xf32>
    %109 = vector.shape_cast %108 : vector<8xf32> to vector<8x1xf32>
    %110 = vector.broadcast %109 : vector<8x1xf32> to vector<8x8xf32>
    %111 = arith.subf %107, %110 : vector<8x8xf32>
    %112 = math.exp %111 : vector<8x8xf32>
    %cst_65 = arith.constant dense<0.000000e+00> : vector<8xf32>
    %113 = vector.multi_reduction <add>, %112, %cst_65 [1] : vector<8x8xf32> to vector<8xf32>
    %114 = vector.shape_cast %113 : vector<8xf32> to vector<8x1xf32>
    %115 = tpu.reciprocal %114 {approx = true} : vector<8x1xf32> -> vector<8x1xf32>
    %116 = vector.broadcast %115 : vector<8x1xf32> to vector<8x8xf32>
    %117 = arith.mulf %112, %116 : vector<8x8xf32>
    %cst_66 = arith.constant dense<0.000000e+00> : vector<8x16xf32>
    %118 = tpu.matmul %117, %103, %cst_66 {dimension_numbers = #tpu.dot_dimension_numbers<[1], [0], [0], [1], [0, 0, 1, 1], [], []>} : vector<8x8xf32>, vector<8x16xf32>, vector<8x16xf32> -> vector<8x16xf32>
    %119 = arith.addf %118, %52 : vector<8x16xf32>
    %cst_67 = arith.constant dense<0.000000e+00> : vector<8xf32>
    %120 = vector.multi_reduction <add>, %119, %cst_67 [1] : vector<8x16xf32> to vector<8xf32>
    %121 = vector.shape_cast %120 : vector<8xf32> to vector<8x1xf32>
    %cst_68 = arith.constant 1.600000e+01 : f32
    %122 = vector.broadcast %cst_68 : f32 to vector<8x1xf32>
    %123 = arith.divf %121, %122 : vector<8x1xf32>
    %124 = vector.broadcast %123 : vector<8x1xf32> to vector<8x16xf32>
    %125 = arith.subf %119, %124 : vector<8x16xf32>
    %126 = arith.mulf %125, %125 : vector<8x16xf32>
    %cst_69 = arith.constant dense<0.000000e+00> : vector<8xf32>
    %127 = vector.multi_reduction <add>, %126, %cst_69 [1] : vector<8x16xf32> to vector<8xf32>
    %128 = vector.shape_cast %127 : vector<8xf32> to vector<8x1xf32>
    %cst_70 = arith.constant 1.600000e+01 : f32
    %129 = vector.broadcast %cst_70 : f32 to vector<8x1xf32>
    %130 = arith.divf %128, %129 : vector<8x1xf32>
    %131 = vector.broadcast %123 : vector<8x1xf32> to vector<8x16xf32>
    %132 = arith.subf %119, %131 : vector<8x16xf32>
    %cst_71 = arith.constant 9.99999974E-6 : f32
    %133 = vector.broadcast %cst_71 : f32 to vector<8x1xf32>
    %134 = arith.addf %130, %133 : vector<8x1xf32>
    %135 = math.rsqrt %134 : vector<8x1xf32>
    %136 = vector.broadcast %135 : vector<8x1xf32> to vector<8x16xf32>
    %137 = arith.mulf %132, %136 : vector<8x16xf32>
    %138 = arith.mulf %137, %60 : vector<8x16xf32>
    %139 = arith.addf %138, %62 : vector<8x16xf32>
    %140 = vector.extract_strided_slice %65 {offsets = [0, 32], sizes = [8, 16], strides = [1, 1]} : vector<8x64xf32> to vector<8x16xf32>
    %cst_72 = arith.constant dense<0.000000e+00> : vector<8x8xf32>
    %141 = tpu.matmul %140, %140, %cst_72 {dimension_numbers = #tpu.dot_dimension_numbers<[1], [1], [0], [0], [0, 0, 1, 0], [], []>} : vector<8x16xf32>, vector<8x16xf32>, vector<8x8xf32> -> vector<8x8xf32>
    %cst_73 = arith.constant 2.500000e-01 : f32
    %142 = vector.broadcast %cst_73 : f32 to vector<8x8xf32>
    %143 = arith.mulf %141, %142 : vector<8x8xf32>
    %144 = arith.addf %143, %58 : vector<8x8xf32>
    %cst_74 = arith.constant dense<0xFF800000> : vector<8xf32>
    %145 = vector.multi_reduction <maximumf>, %144, %cst_74 [1] : vector<8x8xf32> to vector<8xf32>
    %146 = vector.shape_cast %145 : vector<8xf32> to vector<8x1xf32>
    %147 = vector.broadcast %146 : vector<8x1xf32> to vector<8x8xf32>
    %148 = arith.subf %144, %147 : vector<8x8xf32>
    %149 = math.exp %148 : vector<8x8xf32>
    %cst_75 = arith.constant dense<0.000000e+00> : vector<8xf32>
    %150 = vector.multi_reduction <add>, %149, %cst_75 [1] : vector<8x8xf32> to vector<8xf32>
    %151 = vector.shape_cast %150 : vector<8xf32> to vector<8x1xf32>
    %152 = tpu.reciprocal %151 {approx = true} : vector<8x1xf32> -> vector<8x1xf32>
    %153 = vector.broadcast %152 : vector<8x1xf32> to vector<8x8xf32>
    %154 = arith.mulf %149, %153 : vector<8x8xf32>
    %cst_76 = arith.constant dense<0.000000e+00> : vector<8x16xf32>
    %155 = tpu.matmul %154, %140, %cst_76 {dimension_numbers = #tpu.dot_dimension_numbers<[1], [0], [0], [1], [0, 0, 1, 1], [], []>} : vector<8x8xf32>, vector<8x16xf32>, vector<8x16xf32> -> vector<8x16xf32>
    %156 = arith.addf %155, %52 : vector<8x16xf32>
    %cst_77 = arith.constant dense<0.000000e+00> : vector<8xf32>
    %157 = vector.multi_reduction <add>, %156, %cst_77 [1] : vector<8x16xf32> to vector<8xf32>
    %158 = vector.shape_cast %157 : vector<8xf32> to vector<8x1xf32>
    %cst_78 = arith.constant 1.600000e+01 : f32
    %159 = vector.broadcast %cst_78 : f32 to vector<8x1xf32>
    %160 = arith.divf %158, %159 : vector<8x1xf32>
    %161 = vector.broadcast %160 : vector<8x1xf32> to vector<8x16xf32>
    %162 = arith.subf %156, %161 : vector<8x16xf32>
    %163 = arith.mulf %162, %162 : vector<8x16xf32>
    %cst_79 = arith.constant dense<0.000000e+00> : vector<8xf32>
    %164 = vector.multi_reduction <add>, %163, %cst_79 [1] : vector<8x16xf32> to vector<8xf32>
    %165 = vector.shape_cast %164 : vector<8xf32> to vector<8x1xf32>
    %cst_80 = arith.constant 1.600000e+01 : f32
    %166 = vector.broadcast %cst_80 : f32 to vector<8x1xf32>
    %167 = arith.divf %165, %166 : vector<8x1xf32>
    %168 = vector.broadcast %160 : vector<8x1xf32> to vector<8x16xf32>
    %169 = arith.subf %156, %168 : vector<8x16xf32>
    %cst_81 = arith.constant 9.99999974E-6 : f32
    %170 = vector.broadcast %cst_81 : f32 to vector<8x1xf32>
    %171 = arith.addf %167, %170 : vector<8x1xf32>
    %172 = math.rsqrt %171 : vector<8x1xf32>
    %173 = vector.broadcast %172 : vector<8x1xf32> to vector<8x16xf32>
    %174 = arith.mulf %169, %173 : vector<8x16xf32>
    %175 = arith.mulf %174, %60 : vector<8x16xf32>
    %176 = arith.addf %175, %62 : vector<8x16xf32>
    %177 = vector.extract_strided_slice %65 {offsets = [0, 48], sizes = [8, 16], strides = [1, 1]} : vector<8x64xf32> to vector<8x16xf32>
    %cst_82 = arith.constant dense<0.000000e+00> : vector<8x8xf32>
    %178 = tpu.matmul %177, %177, %cst_82 {dimension_numbers = #tpu.dot_dimension_numbers<[1], [1], [0], [0], [0, 0, 1, 0], [], []>} : vector<8x16xf32>, vector<8x16xf32>, vector<8x8xf32> -> vector<8x8xf32>
    %cst_83 = arith.constant 2.500000e-01 : f32
    %179 = vector.broadcast %cst_83 : f32 to vector<8x8xf32>
    %180 = arith.mulf %178, %179 : vector<8x8xf32>
    %181 = arith.addf %180, %58 : vector<8x8xf32>
    %cst_84 = arith.constant dense<0xFF800000> : vector<8xf32>
    %182 = vector.multi_reduction <maximumf>, %181, %cst_84 [1] : vector<8x8xf32> to vector<8xf32>
    %183 = vector.shape_cast %182 : vector<8xf32> to vector<8x1xf32>
    %184 = vector.broadcast %183 : vector<8x1xf32> to vector<8x8xf32>
    %185 = arith.subf %181, %184 : vector<8x8xf32>
    %186 = math.exp %185 : vector<8x8xf32>
    %cst_85 = arith.constant dense<0.000000e+00> : vector<8xf32>
    %187 = vector.multi_reduction <add>, %186, %cst_85 [1] : vector<8x8xf32> to vector<8xf32>
    %188 = vector.shape_cast %187 : vector<8xf32> to vector<8x1xf32>
    %189 = tpu.reciprocal %188 {approx = true} : vector<8x1xf32> -> vector<8x1xf32>
    %190 = vector.broadcast %189 : vector<8x1xf32> to vector<8x8xf32>
    %191 = arith.mulf %186, %190 : vector<8x8xf32>
    %cst_86 = arith.constant dense<0.000000e+00> : vector<8x16xf32>
    %192 = tpu.matmul %191, %177, %cst_86 {dimension_numbers = #tpu.dot_dimension_numbers<[1], [0], [0], [1], [0, 0, 1, 1], [], []>} : vector<8x8xf32>, vector<8x16xf32>, vector<8x16xf32> -> vector<8x16xf32>
    %193 = arith.addf %192, %52 : vector<8x16xf32>
    %cst_87 = arith.constant dense<0.000000e+00> : vector<8xf32>
    %194 = vector.multi_reduction <add>, %193, %cst_87 [1] : vector<8x16xf32> to vector<8xf32>
    %195 = vector.shape_cast %194 : vector<8xf32> to vector<8x1xf32>
    %cst_88 = arith.constant 1.600000e+01 : f32
    %196 = vector.broadcast %cst_88 : f32 to vector<8x1xf32>
    %197 = arith.divf %195, %196 : vector<8x1xf32>
    %198 = vector.broadcast %197 : vector<8x1xf32> to vector<8x16xf32>
    %199 = arith.subf %193, %198 : vector<8x16xf32>
    %200 = arith.mulf %199, %199 : vector<8x16xf32>
    %cst_89 = arith.constant dense<0.000000e+00> : vector<8xf32>
    %201 = vector.multi_reduction <add>, %200, %cst_89 [1] : vector<8x16xf32> to vector<8xf32>
    %202 = vector.shape_cast %201 : vector<8xf32> to vector<8x1xf32>
    %cst_90 = arith.constant 1.600000e+01 : f32
    %203 = vector.broadcast %cst_90 : f32 to vector<8x1xf32>
    %204 = arith.divf %202, %203 : vector<8x1xf32>
    %205 = vector.broadcast %197 : vector<8x1xf32> to vector<8x16xf32>
    %206 = arith.subf %193, %205 : vector<8x16xf32>
    %cst_91 = arith.constant 9.99999974E-6 : f32
    %207 = vector.broadcast %cst_91 : f32 to vector<8x1xf32>
    %208 = arith.addf %204, %207 : vector<8x1xf32>
    %209 = math.rsqrt %208 : vector<8x1xf32>
    %210 = vector.broadcast %209 : vector<8x1xf32> to vector<8x16xf32>
    %211 = arith.mulf %206, %210 : vector<8x16xf32>
    %212 = arith.mulf %211, %60 : vector<8x16xf32>
    %213 = arith.addf %212, %62 : vector<8x16xf32>
    %214 = tpu.concatenate %102, %139, %176, %213 in 1 : vector<8x16xf32>, vector<8x16xf32>, vector<8x16xf32>, vector<8x16xf32> -> vector<8x64xf32>
    %cst_92 = arith.constant dense<0.000000e+00> : vector<8x16xf32>
    %215 = tpu.matmul %214, %6, %cst_92 {dimension_numbers = #tpu.dot_dimension_numbers<[1], [0], [0], [1], [0, 0, 1, 1], [], []>} : vector<8x64xf32>, vector<64x16xf32>, vector<8x16xf32> -> vector<8x16xf32>
    %216 = vector.broadcast %7 : vector<1x16xf32> to vector<8x16xf32>
    %217 = arith.addf %215, %216 : vector<8x16xf32>
    %cst_93 = arith.constant dense<0.000000e+00> : vector<8x16xf32>
    %218 = tpu.matmul %217, %8, %cst_93 {dimension_numbers = #tpu.dot_dimension_numbers<[1], [0], [0], [1], [0, 0, 1, 1], [], []>} : vector<8x16xf32>, vector<16x16xf32>, vector<8x16xf32> -> vector<8x16xf32>
    %219 = vector.broadcast %9 : vector<1x16xf32> to vector<8x16xf32>
    %220 = arith.addf %218, %219 : vector<8x16xf32>
    %cst_94 = arith.constant 0.000000e+00 : f32
    %221 = vector.broadcast %cst_94 : f32 to vector<8x16xf32>
    %222 = arith.maximumf %220, %221 : vector<8x16xf32>
    %cst_95 = arith.constant dense<0.000000e+00> : vector<8x16xf32>
    %223 = tpu.matmul %222, %10, %cst_95 {dimension_numbers = #tpu.dot_dimension_numbers<[1], [0], [0], [1], [0, 0, 1, 1], [], []>} : vector<8x16xf32>, vector<16x16xf32>, vector<8x16xf32> -> vector<8x16xf32>
    %224 = vector.broadcast %11 : vector<1x16xf32> to vector<8x16xf32>
    %225 = arith.addf %223, %224 : vector<8x16xf32>
    %226 = arith.addf %225, %217 : vector<8x16xf32>
    %cst_96 = arith.constant dense<0.000000e+00> : vector<8xf32>
    %227 = vector.multi_reduction <add>, %226, %cst_96 [1] : vector<8x16xf32> to vector<8xf32>
    %228 = vector.shape_cast %227 : vector<8xf32> to vector<8x1xf32>
    %cst_97 = arith.constant 1.600000e+01 : f32
    %229 = vector.broadcast %cst_97 : f32 to vector<8x1xf32>
    %230 = arith.divf %228, %229 : vector<8x1xf32>
    %231 = vector.broadcast %230 : vector<8x1xf32> to vector<8x16xf32>
    %232 = arith.subf %226, %231 : vector<8x16xf32>
    %233 = arith.mulf %232, %232 : vector<8x16xf32>
    %cst_98 = arith.constant dense<0.000000e+00> : vector<8xf32>
    %234 = vector.multi_reduction <add>, %233, %cst_98 [1] : vector<8x16xf32> to vector<8xf32>
    %235 = vector.shape_cast %234 : vector<8xf32> to vector<8x1xf32>
    %cst_99 = arith.constant 1.600000e+01 : f32
    %236 = vector.broadcast %cst_99 : f32 to vector<8x1xf32>
    %237 = arith.divf %235, %236 : vector<8x1xf32>
    %238 = vector.broadcast %230 : vector<8x1xf32> to vector<8x16xf32>
    %239 = arith.subf %226, %238 : vector<8x16xf32>
    %cst_100 = arith.constant 9.99999974E-6 : f32
    %240 = vector.broadcast %cst_100 : f32 to vector<8x1xf32>
    %241 = arith.addf %237, %240 : vector<8x1xf32>
    %242 = math.rsqrt %241 : vector<8x1xf32>
    %243 = vector.broadcast %242 : vector<8x1xf32> to vector<8x16xf32>
    %244 = arith.mulf %239, %243 : vector<8x16xf32>
    %245 = arith.mulf %244, %60 : vector<8x16xf32>
    %246 = arith.addf %245, %62 : vector<8x16xf32>
    %247 = vector.shape_cast %22 : vector<1x16xf32> to vector<1x16xf32>
    %248 = vector.broadcast %247 : vector<1x16xf32> to vector<8x16xf32>
    %249 = vector.shape_cast %23 : vector<1x16xf32> to vector<1x16xf32>
    %250 = vector.broadcast %249 : vector<1x16xf32> to vector<8x16xf32>
    %cst_101 = arith.constant dense<0.000000e+00> : vector<8x64xf32>
    %251 = tpu.matmul %246, %14, %cst_101 {dimension_numbers = #tpu.dot_dimension_numbers<[1], [0], [0], [1], [0, 0, 1, 1], [], []>} : vector<8x16xf32>, vector<16x64xf32>, vector<8x64xf32> -> vector<8x64xf32>
    %252 = vector.broadcast %15 : vector<1x64xf32> to vector<8x64xf32>
    %253 = arith.addf %251, %252 : vector<8x64xf32>
    %254 = vector.extract_strided_slice %253 {offsets = [0, 0], sizes = [8, 16], strides = [1, 1]} : vector<8x64xf32> to vector<8x16xf32>
    %cst_102 = arith.constant dense<0.000000e+00> : vector<8x8xf32>
    %255 = tpu.matmul %254, %254, %cst_102 {dimension_numbers = #tpu.dot_dimension_numbers<[1], [1], [0], [0], [0, 0, 1, 0], [], []>} : vector<8x16xf32>, vector<8x16xf32>, vector<8x8xf32> -> vector<8x8xf32>
    %cst_103 = arith.constant 2.500000e-01 : f32
    %256 = vector.broadcast %cst_103 : f32 to vector<8x8xf32>
    %257 = arith.mulf %255, %256 : vector<8x8xf32>
    %258 = arith.addf %257, %58 : vector<8x8xf32>
    %cst_104 = arith.constant dense<0xFF800000> : vector<8xf32>
    %259 = vector.multi_reduction <maximumf>, %258, %cst_104 [1] : vector<8x8xf32> to vector<8xf32>
    %260 = vector.shape_cast %259 : vector<8xf32> to vector<8x1xf32>
    %261 = vector.broadcast %260 : vector<8x1xf32> to vector<8x8xf32>
    %262 = arith.subf %258, %261 : vector<8x8xf32>
    %263 = math.exp %262 : vector<8x8xf32>
    %cst_105 = arith.constant dense<0.000000e+00> : vector<8xf32>
    %264 = vector.multi_reduction <add>, %263, %cst_105 [1] : vector<8x8xf32> to vector<8xf32>
    %265 = vector.shape_cast %264 : vector<8xf32> to vector<8x1xf32>
    %266 = tpu.reciprocal %265 {approx = true} : vector<8x1xf32> -> vector<8x1xf32>
    %267 = vector.broadcast %266 : vector<8x1xf32> to vector<8x8xf32>
    %268 = arith.mulf %263, %267 : vector<8x8xf32>
    %cst_106 = arith.constant dense<0.000000e+00> : vector<8x16xf32>
    %269 = tpu.matmul %268, %254, %cst_106 {dimension_numbers = #tpu.dot_dimension_numbers<[1], [0], [0], [1], [0, 0, 1, 1], [], []>} : vector<8x8xf32>, vector<8x16xf32>, vector<8x16xf32> -> vector<8x16xf32>
    %270 = arith.addf %269, %246 : vector<8x16xf32>
    %cst_107 = arith.constant dense<0.000000e+00> : vector<8xf32>
    %271 = vector.multi_reduction <add>, %270, %cst_107 [1] : vector<8x16xf32> to vector<8xf32>
    %272 = vector.shape_cast %271 : vector<8xf32> to vector<8x1xf32>
    %cst_108 = arith.constant 1.600000e+01 : f32
    %273 = vector.broadcast %cst_108 : f32 to vector<8x1xf32>
    %274 = arith.divf %272, %273 : vector<8x1xf32>
    %275 = vector.broadcast %274 : vector<8x1xf32> to vector<8x16xf32>
    %276 = arith.subf %270, %275 : vector<8x16xf32>
    %277 = arith.mulf %276, %276 : vector<8x16xf32>
    %cst_109 = arith.constant dense<0.000000e+00> : vector<8xf32>
    %278 = vector.multi_reduction <add>, %277, %cst_109 [1] : vector<8x16xf32> to vector<8xf32>
    %279 = vector.shape_cast %278 : vector<8xf32> to vector<8x1xf32>
    %cst_110 = arith.constant 1.600000e+01 : f32
    %280 = vector.broadcast %cst_110 : f32 to vector<8x1xf32>
    %281 = arith.divf %279, %280 : vector<8x1xf32>
    %282 = vector.broadcast %274 : vector<8x1xf32> to vector<8x16xf32>
    %283 = arith.subf %270, %282 : vector<8x16xf32>
    %cst_111 = arith.constant 9.99999974E-6 : f32
    %284 = vector.broadcast %cst_111 : f32 to vector<8x1xf32>
    %285 = arith.addf %281, %284 : vector<8x1xf32>
    %286 = math.rsqrt %285 : vector<8x1xf32>
    %287 = vector.broadcast %286 : vector<8x1xf32> to vector<8x16xf32>
    %288 = arith.mulf %283, %287 : vector<8x16xf32>
    %289 = arith.mulf %288, %248 : vector<8x16xf32>
    %290 = arith.addf %289, %250 : vector<8x16xf32>
    %291 = vector.extract_strided_slice %253 {offsets = [0, 16], sizes = [8, 16], strides = [1, 1]} : vector<8x64xf32> to vector<8x16xf32>
    %cst_112 = arith.constant dense<0.000000e+00> : vector<8x8xf32>
    %292 = tpu.matmul %291, %291, %cst_112 {dimension_numbers = #tpu.dot_dimension_numbers<[1], [1], [0], [0], [0, 0, 1, 0], [], []>} : vector<8x16xf32>, vector<8x16xf32>, vector<8x8xf32> -> vector<8x8xf32>
    %cst_113 = arith.constant 2.500000e-01 : f32
    %293 = vector.broadcast %cst_113 : f32 to vector<8x8xf32>
    %294 = arith.mulf %292, %293 : vector<8x8xf32>
    %295 = arith.addf %294, %58 : vector<8x8xf32>
    %cst_114 = arith.constant dense<0xFF800000> : vector<8xf32>
    %296 = vector.multi_reduction <maximumf>, %295, %cst_114 [1] : vector<8x8xf32> to vector<8xf32>
    %297 = vector.shape_cast %296 : vector<8xf32> to vector<8x1xf32>
    %298 = vector.broadcast %297 : vector<8x1xf32> to vector<8x8xf32>
    %299 = arith.subf %295, %298 : vector<8x8xf32>
    %300 = math.exp %299 : vector<8x8xf32>
    %cst_115 = arith.constant dense<0.000000e+00> : vector<8xf32>
    %301 = vector.multi_reduction <add>, %300, %cst_115 [1] : vector<8x8xf32> to vector<8xf32>
    %302 = vector.shape_cast %301 : vector<8xf32> to vector<8x1xf32>
    %303 = tpu.reciprocal %302 {approx = true} : vector<8x1xf32> -> vector<8x1xf32>
    %304 = vector.broadcast %303 : vector<8x1xf32> to vector<8x8xf32>
    %305 = arith.mulf %300, %304 : vector<8x8xf32>
    %cst_116 = arith.constant dense<0.000000e+00> : vector<8x16xf32>
    %306 = tpu.matmul %305, %291, %cst_116 {dimension_numbers = #tpu.dot_dimension_numbers<[1], [0], [0], [1], [0, 0, 1, 1], [], []>} : vector<8x8xf32>, vector<8x16xf32>, vector<8x16xf32> -> vector<8x16xf32>
    %307 = arith.addf %306, %246 : vector<8x16xf32>
    %cst_117 = arith.constant dense<0.000000e+00> : vector<8xf32>
    %308 = vector.multi_reduction <add>, %307, %cst_117 [1] : vector<8x16xf32> to vector<8xf32>
    %309 = vector.shape_cast %308 : vector<8xf32> to vector<8x1xf32>
    %cst_118 = arith.constant 1.600000e+01 : f32
    %310 = vector.broadcast %cst_118 : f32 to vector<8x1xf32>
    %311 = arith.divf %309, %310 : vector<8x1xf32>
    %312 = vector.broadcast %311 : vector<8x1xf32> to vector<8x16xf32>
    %313 = arith.subf %307, %312 : vector<8x16xf32>
    %314 = arith.mulf %313, %313 : vector<8x16xf32>
    %cst_119 = arith.constant dense<0.000000e+00> : vector<8xf32>
    %315 = vector.multi_reduction <add>, %314, %cst_119 [1] : vector<8x16xf32> to vector<8xf32>
    %316 = vector.shape_cast %315 : vector<8xf32> to vector<8x1xf32>
    %cst_120 = arith.constant 1.600000e+01 : f32
    %317 = vector.broadcast %cst_120 : f32 to vector<8x1xf32>
    %318 = arith.divf %316, %317 : vector<8x1xf32>
    %319 = vector.broadcast %311 : vector<8x1xf32> to vector<8x16xf32>
    %320 = arith.subf %307, %319 : vector<8x16xf32>
    %cst_121 = arith.constant 9.99999974E-6 : f32
    %321 = vector.broadcast %cst_121 : f32 to vector<8x1xf32>
    %322 = arith.addf %318, %321 : vector<8x1xf32>
    %323 = math.rsqrt %322 : vector<8x1xf32>
    %324 = vector.broadcast %323 : vector<8x1xf32> to vector<8x16xf32>
    %325 = arith.mulf %320, %324 : vector<8x16xf32>
    %326 = arith.mulf %325, %248 : vector<8x16xf32>
    %327 = arith.addf %326, %250 : vector<8x16xf32>
    %328 = vector.extract_strided_slice %253 {offsets = [0, 32], sizes = [8, 16], strides = [1, 1]} : vector<8x64xf32> to vector<8x16xf32>
    %cst_122 = arith.constant dense<0.000000e+00> : vector<8x8xf32>
    %329 = tpu.matmul %328, %328, %cst_122 {dimension_numbers = #tpu.dot_dimension_numbers<[1], [1], [0], [0], [0, 0, 1, 0], [], []>} : vector<8x16xf32>, vector<8x16xf32>, vector<8x8xf32> -> vector<8x8xf32>
    %cst_123 = arith.constant 2.500000e-01 : f32
    %330 = vector.broadcast %cst_123 : f32 to vector<8x8xf32>
    %331 = arith.mulf %329, %330 : vector<8x8xf32>
    %332 = arith.addf %331, %58 : vector<8x8xf32>
    %cst_124 = arith.constant dense<0xFF800000> : vector<8xf32>
    %333 = vector.multi_reduction <maximumf>, %332, %cst_124 [1] : vector<8x8xf32> to vector<8xf32>
    %334 = vector.shape_cast %333 : vector<8xf32> to vector<8x1xf32>
    %335 = vector.broadcast %334 : vector<8x1xf32> to vector<8x8xf32>
    %336 = arith.subf %332, %335 : vector<8x8xf32>
    %337 = math.exp %336 : vector<8x8xf32>
    %cst_125 = arith.constant dense<0.000000e+00> : vector<8xf32>
    %338 = vector.multi_reduction <add>, %337, %cst_125 [1] : vector<8x8xf32> to vector<8xf32>
    %339 = vector.shape_cast %338 : vector<8xf32> to vector<8x1xf32>
    %340 = tpu.reciprocal %339 {approx = true} : vector<8x1xf32> -> vector<8x1xf32>
    %341 = vector.broadcast %340 : vector<8x1xf32> to vector<8x8xf32>
    %342 = arith.mulf %337, %341 : vector<8x8xf32>
    %cst_126 = arith.constant dense<0.000000e+00> : vector<8x16xf32>
    %343 = tpu.matmul %342, %328, %cst_126 {dimension_numbers = #tpu.dot_dimension_numbers<[1], [0], [0], [1], [0, 0, 1, 1], [], []>} : vector<8x8xf32>, vector<8x16xf32>, vector<8x16xf32> -> vector<8x16xf32>
    %344 = arith.addf %343, %246 : vector<8x16xf32>
    %cst_127 = arith.constant dense<0.000000e+00> : vector<8xf32>
    %345 = vector.multi_reduction <add>, %344, %cst_127 [1] : vector<8x16xf32> to vector<8xf32>
    %346 = vector.shape_cast %345 : vector<8xf32> to vector<8x1xf32>
    %cst_128 = arith.constant 1.600000e+01 : f32
    %347 = vector.broadcast %cst_128 : f32 to vector<8x1xf32>
    %348 = arith.divf %346, %347 : vector<8x1xf32>
    %349 = vector.broadcast %348 : vector<8x1xf32> to vector<8x16xf32>
    %350 = arith.subf %344, %349 : vector<8x16xf32>
    %351 = arith.mulf %350, %350 : vector<8x16xf32>
    %cst_129 = arith.constant dense<0.000000e+00> : vector<8xf32>
    %352 = vector.multi_reduction <add>, %351, %cst_129 [1] : vector<8x16xf32> to vector<8xf32>
    %353 = vector.shape_cast %352 : vector<8xf32> to vector<8x1xf32>
    %cst_130 = arith.constant 1.600000e+01 : f32
    %354 = vector.broadcast %cst_130 : f32 to vector<8x1xf32>
    %355 = arith.divf %353, %354 : vector<8x1xf32>
    %356 = vector.broadcast %348 : vector<8x1xf32> to vector<8x16xf32>
    %357 = arith.subf %344, %356 : vector<8x16xf32>
    %cst_131 = arith.constant 9.99999974E-6 : f32
    %358 = vector.broadcast %cst_131 : f32 to vector<8x1xf32>
    %359 = arith.addf %355, %358 : vector<8x1xf32>
    %360 = math.rsqrt %359 : vector<8x1xf32>
    %361 = vector.broadcast %360 : vector<8x1xf32> to vector<8x16xf32>
    %362 = arith.mulf %357, %361 : vector<8x16xf32>
    %363 = arith.mulf %362, %248 : vector<8x16xf32>
    %364 = arith.addf %363, %250 : vector<8x16xf32>
    %365 = vector.extract_strided_slice %253 {offsets = [0, 48], sizes = [8, 16], strides = [1, 1]} : vector<8x64xf32> to vector<8x16xf32>
    %cst_132 = arith.constant dense<0.000000e+00> : vector<8x8xf32>
    %366 = tpu.matmul %365, %365, %cst_132 {dimension_numbers = #tpu.dot_dimension_numbers<[1], [1], [0], [0], [0, 0, 1, 0], [], []>} : vector<8x16xf32>, vector<8x16xf32>, vector<8x8xf32> -> vector<8x8xf32>
    %cst_133 = arith.constant 2.500000e-01 : f32
    %367 = vector.broadcast %cst_133 : f32 to vector<8x8xf32>
    %368 = arith.mulf %366, %367 : vector<8x8xf32>
    %369 = arith.addf %368, %58 : vector<8x8xf32>
    %cst_134 = arith.constant dense<0xFF800000> : vector<8xf32>
    %370 = vector.multi_reduction <maximumf>, %369, %cst_134 [1] : vector<8x8xf32> to vector<8xf32>
    %371 = vector.shape_cast %370 : vector<8xf32> to vector<8x1xf32>
    %372 = vector.broadcast %371 : vector<8x1xf32> to vector<8x8xf32>
    %373 = arith.subf %369, %372 : vector<8x8xf32>
    %374 = math.exp %373 : vector<8x8xf32>
    %cst_135 = arith.constant dense<0.000000e+00> : vector<8xf32>
    %375 = vector.multi_reduction <add>, %374, %cst_135 [1] : vector<8x8xf32> to vector<8xf32>
    %376 = vector.shape_cast %375 : vector<8xf32> to vector<8x1xf32>
    %377 = tpu.reciprocal %376 {approx = true} : vector<8x1xf32> -> vector<8x1xf32>
    %378 = vector.broadcast %377 : vector<8x1xf32> to vector<8x8xf32>
    %379 = arith.mulf %374, %378 : vector<8x8xf32>
    %cst_136 = arith.constant dense<0.000000e+00> : vector<8x16xf32>
    %380 = tpu.matmul %379, %365, %cst_136 {dimension_numbers = #tpu.dot_dimension_numbers<[1], [0], [0], [1], [0, 0, 1, 1], [], []>} : vector<8x8xf32>, vector<8x16xf32>, vector<8x16xf32> -> vector<8x16xf32>
    %381 = arith.addf %380, %246 : vector<8x16xf32>
    %cst_137 = arith.constant dense<0.000000e+00> : vector<8xf32>
    %382 = vector.multi_reduction <add>, %381, %cst_137 [1] : vector<8x16xf32> to vector<8xf32>
    %383 = vector.shape_cast %382 : vector<8xf32> to vector<8x1xf32>
    %cst_138 = arith.constant 1.600000e+01 : f32
    %384 = vector.broadcast %cst_138 : f32 to vector<8x1xf32>
    %385 = arith.divf %383, %384 : vector<8x1xf32>
    %386 = vector.broadcast %385 : vector<8x1xf32> to vector<8x16xf32>
    %387 = arith.subf %381, %386 : vector<8x16xf32>
    %388 = arith.mulf %387, %387 : vector<8x16xf32>
    %cst_139 = arith.constant dense<0.000000e+00> : vector<8xf32>
    %389 = vector.multi_reduction <add>, %388, %cst_139 [1] : vector<8x16xf32> to vector<8xf32>
    %390 = vector.shape_cast %389 : vector<8xf32> to vector<8x1xf32>
    %cst_140 = arith.constant 1.600000e+01 : f32
    %391 = vector.broadcast %cst_140 : f32 to vector<8x1xf32>
    %392 = arith.divf %390, %391 : vector<8x1xf32>
    %393 = vector.broadcast %385 : vector<8x1xf32> to vector<8x16xf32>
    %394 = arith.subf %381, %393 : vector<8x16xf32>
    %cst_141 = arith.constant 9.99999974E-6 : f32
    %395 = vector.broadcast %cst_141 : f32 to vector<8x1xf32>
    %396 = arith.addf %392, %395 : vector<8x1xf32>
    %397 = math.rsqrt %396 : vector<8x1xf32>
    %398 = vector.broadcast %397 : vector<8x1xf32> to vector<8x16xf32>
    %399 = arith.mulf %394, %398 : vector<8x16xf32>
    %400 = arith.mulf %399, %248 : vector<8x16xf32>
    %401 = arith.addf %400, %250 : vector<8x16xf32>
    %402 = tpu.concatenate %290, %327, %364, %401 in 1 : vector<8x16xf32>, vector<8x16xf32>, vector<8x16xf32>, vector<8x16xf32> -> vector<8x64xf32>
    %cst_142 = arith.constant dense<0.000000e+00> : vector<8x16xf32>
    %403 = tpu.matmul %402, %16, %cst_142 {dimension_numbers = #tpu.dot_dimension_numbers<[1], [0], [0], [1], [0, 0, 1, 1], [], []>} : vector<8x64xf32>, vector<64x16xf32>, vector<8x16xf32> -> vector<8x16xf32>
    %404 = vector.broadcast %17 : vector<1x16xf32> to vector<8x16xf32>
    %405 = arith.addf %403, %404 : vector<8x16xf32>
    %cst_143 = arith.constant dense<0.000000e+00> : vector<8x16xf32>
    %406 = tpu.matmul %405, %18, %cst_143 {dimension_numbers = #tpu.dot_dimension_numbers<[1], [0], [0], [1], [0, 0, 1, 1], [], []>} : vector<8x16xf32>, vector<16x16xf32>, vector<8x16xf32> -> vector<8x16xf32>
    %407 = vector.broadcast %19 : vector<1x16xf32> to vector<8x16xf32>
    %408 = arith.addf %406, %407 : vector<8x16xf32>
    %cst_144 = arith.constant 0.000000e+00 : f32
    %409 = vector.broadcast %cst_144 : f32 to vector<8x16xf32>
    %410 = arith.maximumf %408, %409 : vector<8x16xf32>
    %cst_145 = arith.constant dense<0.000000e+00> : vector<8x16xf32>
    %411 = tpu.matmul %410, %20, %cst_145 {dimension_numbers = #tpu.dot_dimension_numbers<[1], [0], [0], [1], [0, 0, 1, 1], [], []>} : vector<8x16xf32>, vector<16x16xf32>, vector<8x16xf32> -> vector<8x16xf32>
    %412 = vector.broadcast %21 : vector<1x16xf32> to vector<8x16xf32>
    %413 = arith.addf %411, %412 : vector<8x16xf32>
    %414 = arith.addf %413, %405 : vector<8x16xf32>
    %cst_146 = arith.constant dense<0.000000e+00> : vector<8xf32>
    %415 = vector.multi_reduction <add>, %414, %cst_146 [1] : vector<8x16xf32> to vector<8xf32>
    %416 = vector.shape_cast %415 : vector<8xf32> to vector<8x1xf32>
    %cst_147 = arith.constant 1.600000e+01 : f32
    %417 = vector.broadcast %cst_147 : f32 to vector<8x1xf32>
    %418 = arith.divf %416, %417 : vector<8x1xf32>
    %419 = vector.broadcast %418 : vector<8x1xf32> to vector<8x16xf32>
    %420 = arith.subf %414, %419 : vector<8x16xf32>
    %421 = arith.mulf %420, %420 : vector<8x16xf32>
    %cst_148 = arith.constant dense<0.000000e+00> : vector<8xf32>
    %422 = vector.multi_reduction <add>, %421, %cst_148 [1] : vector<8x16xf32> to vector<8xf32>
    %423 = vector.shape_cast %422 : vector<8xf32> to vector<8x1xf32>
    %cst_149 = arith.constant 1.600000e+01 : f32
    %424 = vector.broadcast %cst_149 : f32 to vector<8x1xf32>
    %425 = arith.divf %423, %424 : vector<8x1xf32>
    %426 = vector.broadcast %418 : vector<8x1xf32> to vector<8x16xf32>
    %427 = arith.subf %414, %426 : vector<8x16xf32>
    %cst_150 = arith.constant 9.99999974E-6 : f32
    %428 = vector.broadcast %cst_150 : f32 to vector<8x1xf32>
    %429 = arith.addf %425, %428 : vector<8x1xf32>
    %430 = math.rsqrt %429 : vector<8x1xf32>
    %431 = vector.broadcast %430 : vector<8x1xf32> to vector<8x16xf32>
    %432 = arith.mulf %427, %431 : vector<8x16xf32>
    %433 = arith.mulf %432, %248 : vector<8x16xf32>
    %434 = arith.addf %433, %250 : vector<8x16xf32>
    %435 = vector.shape_cast %32 : vector<1x16xf32> to vector<1x16xf32>
    %436 = vector.broadcast %435 : vector<1x16xf32> to vector<8x16xf32>
    %437 = vector.shape_cast %33 : vector<1x16xf32> to vector<1x16xf32>
    %438 = vector.broadcast %437 : vector<1x16xf32> to vector<8x16xf32>
    %cst_151 = arith.constant dense<0.000000e+00> : vector<8x64xf32>
    %439 = tpu.matmul %434, %24, %cst_151 {dimension_numbers = #tpu.dot_dimension_numbers<[1], [0], [0], [1], [0, 0, 1, 1], [], []>} : vector<8x16xf32>, vector<16x64xf32>, vector<8x64xf32> -> vector<8x64xf32>
    %440 = vector.broadcast %25 : vector<1x64xf32> to vector<8x64xf32>
    %441 = arith.addf %439, %440 : vector<8x64xf32>
    %442 = vector.extract_strided_slice %441 {offsets = [0, 0], sizes = [8, 16], strides = [1, 1]} : vector<8x64xf32> to vector<8x16xf32>
    %cst_152 = arith.constant dense<0.000000e+00> : vector<8x8xf32>
    %443 = tpu.matmul %442, %442, %cst_152 {dimension_numbers = #tpu.dot_dimension_numbers<[1], [1], [0], [0], [0, 0, 1, 0], [], []>} : vector<8x16xf32>, vector<8x16xf32>, vector<8x8xf32> -> vector<8x8xf32>
    %cst_153 = arith.constant 2.500000e-01 : f32
    %444 = vector.broadcast %cst_153 : f32 to vector<8x8xf32>
    %445 = arith.mulf %443, %444 : vector<8x8xf32>
    %446 = arith.addf %445, %58 : vector<8x8xf32>
    %cst_154 = arith.constant dense<0xFF800000> : vector<8xf32>
    %447 = vector.multi_reduction <maximumf>, %446, %cst_154 [1] : vector<8x8xf32> to vector<8xf32>
    %448 = vector.shape_cast %447 : vector<8xf32> to vector<8x1xf32>
    %449 = vector.broadcast %448 : vector<8x1xf32> to vector<8x8xf32>
    %450 = arith.subf %446, %449 : vector<8x8xf32>
    %451 = math.exp %450 : vector<8x8xf32>
    %cst_155 = arith.constant dense<0.000000e+00> : vector<8xf32>
    %452 = vector.multi_reduction <add>, %451, %cst_155 [1] : vector<8x8xf32> to vector<8xf32>
    %453 = vector.shape_cast %452 : vector<8xf32> to vector<8x1xf32>
    %454 = tpu.reciprocal %453 {approx = true} : vector<8x1xf32> -> vector<8x1xf32>
    %455 = vector.broadcast %454 : vector<8x1xf32> to vector<8x8xf32>
    %456 = arith.mulf %451, %455 : vector<8x8xf32>
    %cst_156 = arith.constant dense<0.000000e+00> : vector<8x16xf32>
    %457 = tpu.matmul %456, %442, %cst_156 {dimension_numbers = #tpu.dot_dimension_numbers<[1], [0], [0], [1], [0, 0, 1, 1], [], []>} : vector<8x8xf32>, vector<8x16xf32>, vector<8x16xf32> -> vector<8x16xf32>
    %458 = arith.addf %457, %434 : vector<8x16xf32>
    %cst_157 = arith.constant dense<0.000000e+00> : vector<8xf32>
    %459 = vector.multi_reduction <add>, %458, %cst_157 [1] : vector<8x16xf32> to vector<8xf32>
    %460 = vector.shape_cast %459 : vector<8xf32> to vector<8x1xf32>
    %cst_158 = arith.constant 1.600000e+01 : f32
    %461 = vector.broadcast %cst_158 : f32 to vector<8x1xf32>
    %462 = arith.divf %460, %461 : vector<8x1xf32>
    %463 = vector.broadcast %462 : vector<8x1xf32> to vector<8x16xf32>
    %464 = arith.subf %458, %463 : vector<8x16xf32>
    %465 = arith.mulf %464, %464 : vector<8x16xf32>
    %cst_159 = arith.constant dense<0.000000e+00> : vector<8xf32>
    %466 = vector.multi_reduction <add>, %465, %cst_159 [1] : vector<8x16xf32> to vector<8xf32>
    %467 = vector.shape_cast %466 : vector<8xf32> to vector<8x1xf32>
    %cst_160 = arith.constant 1.600000e+01 : f32
    %468 = vector.broadcast %cst_160 : f32 to vector<8x1xf32>
    %469 = arith.divf %467, %468 : vector<8x1xf32>
    %470 = vector.broadcast %462 : vector<8x1xf32> to vector<8x16xf32>
    %471 = arith.subf %458, %470 : vector<8x16xf32>
    %cst_161 = arith.constant 9.99999974E-6 : f32
    %472 = vector.broadcast %cst_161 : f32 to vector<8x1xf32>
    %473 = arith.addf %469, %472 : vector<8x1xf32>
    %474 = math.rsqrt %473 : vector<8x1xf32>
    %475 = vector.broadcast %474 : vector<8x1xf32> to vector<8x16xf32>
    %476 = arith.mulf %471, %475 : vector<8x16xf32>
    %477 = arith.mulf %476, %436 : vector<8x16xf32>
    %478 = arith.addf %477, %438 : vector<8x16xf32>
    %479 = vector.extract_strided_slice %441 {offsets = [0, 16], sizes = [8, 16], strides = [1, 1]} : vector<8x64xf32> to vector<8x16xf32>
    %cst_162 = arith.constant dense<0.000000e+00> : vector<8x8xf32>
    %480 = tpu.matmul %479, %479, %cst_162 {dimension_numbers = #tpu.dot_dimension_numbers<[1], [1], [0], [0], [0, 0, 1, 0], [], []>} : vector<8x16xf32>, vector<8x16xf32>, vector<8x8xf32> -> vector<8x8xf32>
    %cst_163 = arith.constant 2.500000e-01 : f32
    %481 = vector.broadcast %cst_163 : f32 to vector<8x8xf32>
    %482 = arith.mulf %480, %481 : vector<8x8xf32>
    %483 = arith.addf %482, %58 : vector<8x8xf32>
    %cst_164 = arith.constant dense<0xFF800000> : vector<8xf32>
    %484 = vector.multi_reduction <maximumf>, %483, %cst_164 [1] : vector<8x8xf32> to vector<8xf32>
    %485 = vector.shape_cast %484 : vector<8xf32> to vector<8x1xf32>
    %486 = vector.broadcast %485 : vector<8x1xf32> to vector<8x8xf32>
    %487 = arith.subf %483, %486 : vector<8x8xf32>
    %488 = math.exp %487 : vector<8x8xf32>
    %cst_165 = arith.constant dense<0.000000e+00> : vector<8xf32>
    %489 = vector.multi_reduction <add>, %488, %cst_165 [1] : vector<8x8xf32> to vector<8xf32>
    %490 = vector.shape_cast %489 : vector<8xf32> to vector<8x1xf32>
    %491 = tpu.reciprocal %490 {approx = true} : vector<8x1xf32> -> vector<8x1xf32>
    %492 = vector.broadcast %491 : vector<8x1xf32> to vector<8x8xf32>
    %493 = arith.mulf %488, %492 : vector<8x8xf32>
    %cst_166 = arith.constant dense<0.000000e+00> : vector<8x16xf32>
    %494 = tpu.matmul %493, %479, %cst_166 {dimension_numbers = #tpu.dot_dimension_numbers<[1], [0], [0], [1], [0, 0, 1, 1], [], []>} : vector<8x8xf32>, vector<8x16xf32>, vector<8x16xf32> -> vector<8x16xf32>
    %495 = arith.addf %494, %434 : vector<8x16xf32>
    %cst_167 = arith.constant dense<0.000000e+00> : vector<8xf32>
    %496 = vector.multi_reduction <add>, %495, %cst_167 [1] : vector<8x16xf32> to vector<8xf32>
    %497 = vector.shape_cast %496 : vector<8xf32> to vector<8x1xf32>
    %cst_168 = arith.constant 1.600000e+01 : f32
    %498 = vector.broadcast %cst_168 : f32 to vector<8x1xf32>
    %499 = arith.divf %497, %498 : vector<8x1xf32>
    %500 = vector.broadcast %499 : vector<8x1xf32> to vector<8x16xf32>
    %501 = arith.subf %495, %500 : vector<8x16xf32>
    %502 = arith.mulf %501, %501 : vector<8x16xf32>
    %cst_169 = arith.constant dense<0.000000e+00> : vector<8xf32>
    %503 = vector.multi_reduction <add>, %502, %cst_169 [1] : vector<8x16xf32> to vector<8xf32>
    %504 = vector.shape_cast %503 : vector<8xf32> to vector<8x1xf32>
    %cst_170 = arith.constant 1.600000e+01 : f32
    %505 = vector.broadcast %cst_170 : f32 to vector<8x1xf32>
    %506 = arith.divf %504, %505 : vector<8x1xf32>
    %507 = vector.broadcast %499 : vector<8x1xf32> to vector<8x16xf32>
    %508 = arith.subf %495, %507 : vector<8x16xf32>
    %cst_171 = arith.constant 9.99999974E-6 : f32
    %509 = vector.broadcast %cst_171 : f32 to vector<8x1xf32>
    %510 = arith.addf %506, %509 : vector<8x1xf32>
    %511 = math.rsqrt %510 : vector<8x1xf32>
    %512 = vector.broadcast %511 : vector<8x1xf32> to vector<8x16xf32>
    %513 = arith.mulf %508, %512 : vector<8x16xf32>
    %514 = arith.mulf %513, %436 : vector<8x16xf32>
    %515 = arith.addf %514, %438 : vector<8x16xf32>
    %516 = vector.extract_strided_slice %441 {offsets = [0, 32], sizes = [8, 16], strides = [1, 1]} : vector<8x64xf32> to vector<8x16xf32>
    %cst_172 = arith.constant dense<0.000000e+00> : vector<8x8xf32>
    %517 = tpu.matmul %516, %516, %cst_172 {dimension_numbers = #tpu.dot_dimension_numbers<[1], [1], [0], [0], [0, 0, 1, 0], [], []>} : vector<8x16xf32>, vector<8x16xf32>, vector<8x8xf32> -> vector<8x8xf32>
    %cst_173 = arith.constant 2.500000e-01 : f32
    %518 = vector.broadcast %cst_173 : f32 to vector<8x8xf32>
    %519 = arith.mulf %517, %518 : vector<8x8xf32>
    %520 = arith.addf %519, %58 : vector<8x8xf32>
    %cst_174 = arith.constant dense<0xFF800000> : vector<8xf32>
    %521 = vector.multi_reduction <maximumf>, %520, %cst_174 [1] : vector<8x8xf32> to vector<8xf32>
    %522 = vector.shape_cast %521 : vector<8xf32> to vector<8x1xf32>
    %523 = vector.broadcast %522 : vector<8x1xf32> to vector<8x8xf32>
    %524 = arith.subf %520, %523 : vector<8x8xf32>
    %525 = math.exp %524 : vector<8x8xf32>
    %cst_175 = arith.constant dense<0.000000e+00> : vector<8xf32>
    %526 = vector.multi_reduction <add>, %525, %cst_175 [1] : vector<8x8xf32> to vector<8xf32>
    %527 = vector.shape_cast %526 : vector<8xf32> to vector<8x1xf32>
    %528 = tpu.reciprocal %527 {approx = true} : vector<8x1xf32> -> vector<8x1xf32>
    %529 = vector.broadcast %528 : vector<8x1xf32> to vector<8x8xf32>
    %530 = arith.mulf %525, %529 : vector<8x8xf32>
    %cst_176 = arith.constant dense<0.000000e+00> : vector<8x16xf32>
    %531 = tpu.matmul %530, %516, %cst_176 {dimension_numbers = #tpu.dot_dimension_numbers<[1], [0], [0], [1], [0, 0, 1, 1], [], []>} : vector<8x8xf32>, vector<8x16xf32>, vector<8x16xf32> -> vector<8x16xf32>
    %532 = arith.addf %531, %434 : vector<8x16xf32>
    %cst_177 = arith.constant dense<0.000000e+00> : vector<8xf32>
    %533 = vector.multi_reduction <add>, %532, %cst_177 [1] : vector<8x16xf32> to vector<8xf32>
    %534 = vector.shape_cast %533 : vector<8xf32> to vector<8x1xf32>
    %cst_178 = arith.constant 1.600000e+01 : f32
    %535 = vector.broadcast %cst_178 : f32 to vector<8x1xf32>
    %536 = arith.divf %534, %535 : vector<8x1xf32>
    %537 = vector.broadcast %536 : vector<8x1xf32> to vector<8x16xf32>
    %538 = arith.subf %532, %537 : vector<8x16xf32>
    %539 = arith.mulf %538, %538 : vector<8x16xf32>
    %cst_179 = arith.constant dense<0.000000e+00> : vector<8xf32>
    %540 = vector.multi_reduction <add>, %539, %cst_179 [1] : vector<8x16xf32> to vector<8xf32>
    %541 = vector.shape_cast %540 : vector<8xf32> to vector<8x1xf32>
    %cst_180 = arith.constant 1.600000e+01 : f32
    %542 = vector.broadcast %cst_180 : f32 to vector<8x1xf32>
    %543 = arith.divf %541, %542 : vector<8x1xf32>
    %544 = vector.broadcast %536 : vector<8x1xf32> to vector<8x16xf32>
    %545 = arith.subf %532, %544 : vector<8x16xf32>
    %cst_181 = arith.constant 9.99999974E-6 : f32
    %546 = vector.broadcast %cst_181 : f32 to vector<8x1xf32>
    %547 = arith.addf %543, %546 : vector<8x1xf32>
    %548 = math.rsqrt %547 : vector<8x1xf32>
    %549 = vector.broadcast %548 : vector<8x1xf32> to vector<8x16xf32>
    %550 = arith.mulf %545, %549 : vector<8x16xf32>
    %551 = arith.mulf %550, %436 : vector<8x16xf32>
    %552 = arith.addf %551, %438 : vector<8x16xf32>
    %553 = vector.extract_strided_slice %441 {offsets = [0, 48], sizes = [8, 16], strides = [1, 1]} : vector<8x64xf32> to vector<8x16xf32>
    %cst_182 = arith.constant dense<0.000000e+00> : vector<8x8xf32>
    %554 = tpu.matmul %553, %553, %cst_182 {dimension_numbers = #tpu.dot_dimension_numbers<[1], [1], [0], [0], [0, 0, 1, 0], [], []>} : vector<8x16xf32>, vector<8x16xf32>, vector<8x8xf32> -> vector<8x8xf32>
    %cst_183 = arith.constant 2.500000e-01 : f32
    %555 = vector.broadcast %cst_183 : f32 to vector<8x8xf32>
    %556 = arith.mulf %554, %555 : vector<8x8xf32>
    %557 = arith.addf %556, %58 : vector<8x8xf32>
    %cst_184 = arith.constant dense<0xFF800000> : vector<8xf32>
    %558 = vector.multi_reduction <maximumf>, %557, %cst_184 [1] : vector<8x8xf32> to vector<8xf32>
    %559 = vector.shape_cast %558 : vector<8xf32> to vector<8x1xf32>
    %560 = vector.broadcast %559 : vector<8x1xf32> to vector<8x8xf32>
    %561 = arith.subf %557, %560 : vector<8x8xf32>
    %562 = math.exp %561 : vector<8x8xf32>
    %cst_185 = arith.constant dense<0.000000e+00> : vector<8xf32>
    %563 = vector.multi_reduction <add>, %562, %cst_185 [1] : vector<8x8xf32> to vector<8xf32>
    %564 = vector.shape_cast %563 : vector<8xf32> to vector<8x1xf32>
    %565 = tpu.reciprocal %564 {approx = true} : vector<8x1xf32> -> vector<8x1xf32>
    %566 = vector.broadcast %565 : vector<8x1xf32> to vector<8x8xf32>
    %567 = arith.mulf %562, %566 : vector<8x8xf32>
    %cst_186 = arith.constant dense<0.000000e+00> : vector<8x16xf32>
    %568 = tpu.matmul %567, %553, %cst_186 {dimension_numbers = #tpu.dot_dimension_numbers<[1], [0], [0], [1], [0, 0, 1, 1], [], []>} : vector<8x8xf32>, vector<8x16xf32>, vector<8x16xf32> -> vector<8x16xf32>
    %569 = arith.addf %568, %434 : vector<8x16xf32>
    %cst_187 = arith.constant dense<0.000000e+00> : vector<8xf32>
    %570 = vector.multi_reduction <add>, %569, %cst_187 [1] : vector<8x16xf32> to vector<8xf32>
    %571 = vector.shape_cast %570 : vector<8xf32> to vector<8x1xf32>
    %cst_188 = arith.constant 1.600000e+01 : f32
    %572 = vector.broadcast %cst_188 : f32 to vector<8x1xf32>
    %573 = arith.divf %571, %572 : vector<8x1xf32>
    %574 = vector.broadcast %573 : vector<8x1xf32> to vector<8x16xf32>
    %575 = arith.subf %569, %574 : vector<8x16xf32>
    %576 = arith.mulf %575, %575 : vector<8x16xf32>
    %cst_189 = arith.constant dense<0.000000e+00> : vector<8xf32>
    %577 = vector.multi_reduction <add>, %576, %cst_189 [1] : vector<8x16xf32> to vector<8xf32>
    %578 = vector.shape_cast %577 : vector<8xf32> to vector<8x1xf32>
    %cst_190 = arith.constant 1.600000e+01 : f32
    %579 = vector.broadcast %cst_190 : f32 to vector<8x1xf32>
    %580 = arith.divf %578, %579 : vector<8x1xf32>
    %581 = vector.broadcast %573 : vector<8x1xf32> to vector<8x16xf32>
    %582 = arith.subf %569, %581 : vector<8x16xf32>
    %cst_191 = arith.constant 9.99999974E-6 : f32
    %583 = vector.broadcast %cst_191 : f32 to vector<8x1xf32>
    %584 = arith.addf %580, %583 : vector<8x1xf32>
    %585 = math.rsqrt %584 : vector<8x1xf32>
    %586 = vector.broadcast %585 : vector<8x1xf32> to vector<8x16xf32>
    %587 = arith.mulf %582, %586 : vector<8x16xf32>
    %588 = arith.mulf %587, %436 : vector<8x16xf32>
    %589 = arith.addf %588, %438 : vector<8x16xf32>
    %590 = tpu.concatenate %478, %515, %552, %589 in 1 : vector<8x16xf32>, vector<8x16xf32>, vector<8x16xf32>, vector<8x16xf32> -> vector<8x64xf32>
    %cst_192 = arith.constant dense<0.000000e+00> : vector<8x16xf32>
    %591 = tpu.matmul %590, %26, %cst_192 {dimension_numbers = #tpu.dot_dimension_numbers<[1], [0], [0], [1], [0, 0, 1, 1], [], []>} : vector<8x64xf32>, vector<64x16xf32>, vector<8x16xf32> -> vector<8x16xf32>
    %592 = vector.broadcast %27 : vector<1x16xf32> to vector<8x16xf32>
    %593 = arith.addf %591, %592 : vector<8x16xf32>
    %cst_193 = arith.constant dense<0.000000e+00> : vector<8x16xf32>
    %594 = tpu.matmul %593, %28, %cst_193 {dimension_numbers = #tpu.dot_dimension_numbers<[1], [0], [0], [1], [0, 0, 1, 1], [], []>} : vector<8x16xf32>, vector<16x16xf32>, vector<8x16xf32> -> vector<8x16xf32>
    %595 = vector.broadcast %29 : vector<1x16xf32> to vector<8x16xf32>
    %596 = arith.addf %594, %595 : vector<8x16xf32>
    %cst_194 = arith.constant 0.000000e+00 : f32
    %597 = vector.broadcast %cst_194 : f32 to vector<8x16xf32>
    %598 = arith.maximumf %596, %597 : vector<8x16xf32>
    %cst_195 = arith.constant dense<0.000000e+00> : vector<8x16xf32>
    %599 = tpu.matmul %598, %30, %cst_195 {dimension_numbers = #tpu.dot_dimension_numbers<[1], [0], [0], [1], [0, 0, 1, 1], [], []>} : vector<8x16xf32>, vector<16x16xf32>, vector<8x16xf32> -> vector<8x16xf32>
    %600 = vector.broadcast %31 : vector<1x16xf32> to vector<8x16xf32>
    %601 = arith.addf %599, %600 : vector<8x16xf32>
    %602 = arith.addf %601, %593 : vector<8x16xf32>
    %cst_196 = arith.constant dense<0.000000e+00> : vector<8xf32>
    %603 = vector.multi_reduction <add>, %602, %cst_196 [1] : vector<8x16xf32> to vector<8xf32>
    %604 = vector.shape_cast %603 : vector<8xf32> to vector<8x1xf32>
    %cst_197 = arith.constant 1.600000e+01 : f32
    %605 = vector.broadcast %cst_197 : f32 to vector<8x1xf32>
    %606 = arith.divf %604, %605 : vector<8x1xf32>
    %607 = vector.broadcast %606 : vector<8x1xf32> to vector<8x16xf32>
    %608 = arith.subf %602, %607 : vector<8x16xf32>
    %609 = arith.mulf %608, %608 : vector<8x16xf32>
    %cst_198 = arith.constant dense<0.000000e+00> : vector<8xf32>
    %610 = vector.multi_reduction <add>, %609, %cst_198 [1] : vector<8x16xf32> to vector<8xf32>
    %611 = vector.shape_cast %610 : vector<8xf32> to vector<8x1xf32>
    %cst_199 = arith.constant 1.600000e+01 : f32
    %612 = vector.broadcast %cst_199 : f32 to vector<8x1xf32>
    %613 = arith.divf %611, %612 : vector<8x1xf32>
    %614 = vector.broadcast %606 : vector<8x1xf32> to vector<8x16xf32>
    %615 = arith.subf %602, %614 : vector<8x16xf32>
    %cst_200 = arith.constant 9.99999974E-6 : f32
    %616 = vector.broadcast %cst_200 : f32 to vector<8x1xf32>
    %617 = arith.addf %613, %616 : vector<8x1xf32>
    %618 = math.rsqrt %617 : vector<8x1xf32>
    %619 = vector.broadcast %618 : vector<8x1xf32> to vector<8x16xf32>
    %620 = arith.mulf %615, %619 : vector<8x16xf32>
    %621 = arith.mulf %620, %436 : vector<8x16xf32>
    %622 = arith.addf %621, %438 : vector<8x16xf32>
    %cst_201 = arith.constant dense<0.000000e+00> : vector<1x32xf32>
    %623 = tpu.matmul %44, %34, %cst_201 {dimension_numbers = #tpu.dot_dimension_numbers<[1], [0], [0], [1], [0, 0, 1, 1], [], []>} : vector<1x12xf32>, vector<12x32xf32>, vector<1x32xf32> -> vector<1x32xf32>
    %624 = arith.addf %623, %35 : vector<1x32xf32>
    %cst_202 = arith.constant 0.000000e+00 : f32
    %625 = vector.broadcast %cst_202 : f32 to vector<1x32xf32>
    %626 = arith.maximumf %624, %625 : vector<1x32xf32>
    %cst_203 = arith.constant dense<0.000000e+00> : vector<1x16xf32>
    %627 = tpu.matmul %626, %36, %cst_203 {dimension_numbers = #tpu.dot_dimension_numbers<[1], [0], [0], [1], [0, 0, 1, 1], [], []>} : vector<1x32xf32>, vector<32x16xf32>, vector<1x16xf32> -> vector<1x16xf32>
    %628 = arith.addf %627, %37 : vector<1x16xf32>
    %cst_204 = arith.constant dense<0.000000e+00> : vector<8x1xf32>
    %629 = tpu.matmul %622, %628, %cst_204 {dimension_numbers = #tpu.dot_dimension_numbers<[1], [1], [0], [0], [0, 0, 1, 0], [], []>} : vector<8x16xf32>, vector<1x16xf32>, vector<8x1xf32> -> vector<8x1xf32>
    %cst_205 = arith.constant 2.500000e-01 : f32
    %630 = vector.broadcast %cst_205 : f32 to vector<8x1xf32>
    %631 = arith.mulf %629, %630 : vector<8x1xf32>
    %cst_206 = arith.constant dense<0xFF800000> : vector<1xf32>
    %632 = vector.multi_reduction <maximumf>, %631, %cst_206 [0] : vector<8x1xf32> to vector<1xf32>
    %633 = vector.shape_cast %632 : vector<1xf32> to vector<1x1xf32>
    %634 = vector.broadcast %633 : vector<1x1xf32> to vector<8x1xf32>
    %635 = arith.subf %631, %634 : vector<8x1xf32>
    %636 = math.exp %635 : vector<8x1xf32>
    %cst_207 = arith.constant dense<0.000000e+00> : vector<1xf32>
    %637 = vector.multi_reduction <add>, %636, %cst_207 [0] : vector<8x1xf32> to vector<1xf32>
    %638 = vector.shape_cast %637 : vector<1xf32> to vector<1x1xf32>
    %639 = tpu.reciprocal %638 {approx = true} : vector<1x1xf32> -> vector<1x1xf32>
    %640 = vector.broadcast %639 : vector<1x1xf32> to vector<8x1xf32>
    %641 = arith.mulf %636, %640 : vector<8x1xf32>
    %cst_208 = arith.constant dense<0.000000e+00> : vector<1x16xf32>
    %642 = tpu.matmul %641, %622, %cst_208 {dimension_numbers = #tpu.dot_dimension_numbers<[0], [0], [1], [1], [0, 1, 1, 1], [], []>} : vector<8x1xf32>, vector<8x16xf32>, vector<1x16xf32> -> vector<1x16xf32>
    %cst_209 = arith.constant dense<0.000000e+00> : vector<1x16xf32>
    %643 = tpu.matmul %642, %38, %cst_209 {dimension_numbers = #tpu.dot_dimension_numbers<[1], [0], [0], [1], [0, 0, 1, 1], [], []>} : vector<1x16xf32>, vector<16x16xf32>, vector<1x16xf32> -> vector<1x16xf32>
    %cst_210 = arith.constant dense<0.000000e+00> : vector<1x16xf32>
    %644 = tpu.matmul %628, %39, %cst_210 {dimension_numbers = #tpu.dot_dimension_numbers<[1], [0], [0], [1], [0, 0, 1, 1], [], []>} : vector<1x16xf32>, vector<16x16xf32>, vector<1x16xf32> -> vector<1x16xf32>
    %645 = arith.addf %643, %644 : vector<1x16xf32>
    %646 = arith.addf %645, %40 : vector<1x16xf32>
    %cst_211 = arith.constant 0.000000e+00 : f32
    %647 = vector.broadcast %cst_211 : f32 to vector<1x16xf32>
    %648 = arith.maximumf %646, %647 : vector<1x16xf32>
    %cst_212 = arith.constant dense<0.000000e+00> : vector<1x16xf32>
    %649 = tpu.matmul %648, %41, %cst_212 {dimension_numbers = #tpu.dot_dimension_numbers<[1], [0], [0], [1], [0, 0, 1, 1], [], []>} : vector<1x16xf32>, vector<16x16xf32>, vector<1x16xf32> -> vector<1x16xf32>
    %650 = arith.addf %649, %42 : vector<1x16xf32>
    %c0_213 = arith.constant 0 : index
    %c0_214 = arith.constant 0 : index
    %651 = vector.load %arg3[%c0_213, %c0_214] : memref<1x16xf32, #tpu.memory_space<vmem>>, vector<1x16xf32>
    tpu.vector_store %arg3[%c0_213, %c0_214], %650 {strides = array<i32>} : memref<1x16xf32, #tpu.memory_space<vmem>>, vector<1x16xf32>,
    return
  }
}

</mosaic_0001>

<llo_original>
// kernel: forward.1
$region0: #{forward.1}
  #allocation0 [shape = 'u32[]', space=smem, size = 0x4, offset = 0x4, fixed_abs, tag = 'smem constant byte address 0x4 - core index']
  #allocation1 [shape = 'u32[144,128]{1,0:T(1,128)}', space=vmem, size = 0x12000, scoped, tag = 'internal scratch']
  %s0 = inlined_call_operand.hbm [shape: f32[8,8], index: 0, kind: input, shape index: {}]
  %s1 = inlined_call_operand.vmem [shape: f32[1,12], index: 1, kind: input, shape index: {}]
  %s2 = inlined_call_operand.hbm [shape: f32[664,128], index: 2, kind: input, shape index: {}]
  %s3 = inlined_call_operand.hbm [shape: f32[1,16], index: 3, kind: output, shape index: {}]
  %s4 = sld [smem:[#allocation0]]
  $region30: #{forward.1} parent=0
    _
  %s6 = ssub.s32 1, %s4
  %s7 = scalar_select 0, %s6, %s4
  $region1: #{forward.1} parent=0
    #allocation2 [shape = 'u8[4096]{0}', space=vmem, size = 0x1000, scoped, tag = 'input window, operand 0, single buffered']
    #allocation3 [shape = 's32[1]{0}', space=sflag, size = 0x4, scoped, tag = 'scoped memory for forward.1']
    #allocation4 [shape = 's32[1]{0}', space=sflag, size = 0x4, scoped, tag = 'scoped memory for forward.1']
    #allocation5 [shape = 'u8[339968]{0}', space=vmem, size = 0x53000, scoped, tag = 'input window, operand 2, single buffered']
    #allocation6 [shape = 's32[1]{0}', space=sflag, size = 0x4, scoped, tag = 'scoped memory for forward.1']
    #allocation7 [shape = 'u8[512]{0}', space=vmem, size = 0x400, scoped, tag = 'output window, operand 0, single buffered']
    %8 = vsyncpa [#allocation3], 0
    %9 = vsyncpa [#allocation6], 0
    %10 = vsyncpa [#allocation4], 0
    // Predicated region
    $region2: #{forward.1} parent=1 // pred_check
      _
    $region3: #{forward.1} parent=1 // pred_check_branch
      %12 = sbr.rel (0) target = $region5
    $region4: #{forward.1} parent=1 // pred_region
      %s14 = ssub.s32 128, 128
      %15 = vsyncadd [#allocation3], %s14
      %s17 = sshll.u32 [#allocation2], 4
      %s18 = int_to_ptr.vmem [resolvable:$true] %s17
      %20 = dma.hbm_to_vmem [thread:$0]  %s0, 128, %s18, [#allocation3]
    $region5: #{forward.1} parent=1 // pred_fallthru
      _
    // Predicated region
    $region6: #{forward.1} parent=1 // pred_check
      _
    $region7: #{forward.1} parent=1 // pred_check_branch
      %22 = sbr.rel (0) target = $region9
    $region8: #{forward.1} parent=1 // pred_region
      _
    $region9: #{forward.1} parent=1 // pred_fallthru
      _
    // Predicated region
    $region10: #{forward.1} parent=1 // pred_check
      _
    $region11: #{forward.1} parent=1 // pred_check_branch
      %24 = sbr.rel (0) target = $region13
    $region12: #{forward.1} parent=1 // pred_region
      %s26 = ssub.s32 10624, 10624
      %27 = vsyncadd [#allocation6], %s26
      %s28 = sshll.u32 [#allocation5], 4
      %s29 = int_to_ptr.vmem [resolvable:$true] %s28
      %34 = dma.hbm_to_vmem [thread:$0]  %s2, 10624, %s29, [#allocation6], 128, 128, 8
    $region13: #{forward.1} parent=1 // pred_fallthru
      _
    // Predicated region
    $region14: #{forward.1} parent=1 // pred_check
      _
    $region15: #{forward.1} parent=1 // pred_check_branch
      %36 = sbr.rel (0) target = $region17
    $region16: #{forward.1} parent=1 // pred_region
      %37 = dma.done [#allocation3], 128
    $region17: #{forward.1} parent=1 // pred_fallthru
      _
    // Predicated region
    $region18: #{forward.1} parent=1 // pred_check
      _
    $region19: #{forward.1} parent=1 // pred_check_branch
      %39 = sbr.rel (0) target = $region21
    $region20: #{forward.1} parent=1 // pred_region
      %40 = dma.done [#allocation6], 10624
    $region21: #{forward.1} parent=1 // pred_fallthru
      _
    %v41 = vld [vmem:[#allocation5] sm:$0xff]
    %v42 = vld [vmem:[#allocation5 + $0x8] sm:$0x1]
    %v43 = vld [vmem:[#allocation5 + $0x10] sm:$0xff]
    %v44 = vld [vmem:[#allocation5 + $0x18] sm:$0xff]
    %v45 = vld [vmem:[#allocation5 + $0x20] sm:$0xff]
    %v46 = vld [vmem:[#allocation5 + $0x28] sm:$0xff]
    %v47 = vld [vmem:[#allocation5 + $0x30] sm:$0x1]
    %v48 = vld [vmem:[#allocation5 + $0x38] sm:$0xff]
    %v49 = vld [vmem:[#allocation5 + $0x40] sm:$0xff]
    %v50 = vld [vmem:[#allocation5 + $0x48] sm:$0x1]
    %v51 = vld [vmem:[#allocation5 + $0x50] sm:$0xff]
    %v52 = vld [vmem:[#allocation5 + $0x58] sm:$0xff]
    %v53 = vld [vmem:[#allocation5 + $0x60] sm:$0xff]
    %v54 = vld [vmem:[#allocation5 + $0x68] sm:$0xff]
    %v55 = vld [vmem:[#allocation5 + $0x70] sm:$0xff]
    %v56 = vld [vmem:[#allocation5 + $0x78] sm:$0xff]
    %v57 = vld [vmem:[#allocation5 + $0x80] sm:$0xff]
    %v58 = vld [vmem:[#allocation5 + $0x88] sm:$0xff]
    %v59 = vld [vmem:[#allocation5 + $0x90] sm:$0x1]
    %v60 = vld [vmem:[#allocation5 + $0x98] sm:$0xff]
    %v61 = vld [vmem:[#allocation5 + $0xa0] sm:$0xff]
    %v62 = vld [vmem:[#allocation5 + $0xa8] sm:$0x1]
    %v63 = vld [vmem:[#allocation5 + $0xb0] sm:$0xff]
    %v64 = vld [vmem:[#allocation5 + $0xb8] sm:$0xff]
    %v65 = vld [vmem:[#allocation5 + $0xc0] sm:$0x1]
    %v66 = vld [vmem:[#allocation5 + $0xc8] sm:$0x1]
    %v67 = vld [vmem:[#allocation5 + $0xd0] sm:$0x1]
    %v68 = vld [vmem:[#allocation5 + $0xd8] sm:$0xff]
    %v69 = vld [vmem:[#allocation5 + $0xe0] sm:$0xff]
    %v70 = vld [vmem:[#allocation5 + $0xe8] sm:$0x1]
    %v71 = vld [vmem:[#allocation5 + $0xf0] sm:$0xff]
    %v72 = vld [vmem:[#allocation5 + $0xf8] sm:$0xff]
    %v73 = vld [vmem:[#allocation5 + $0x100] sm:$0xff]
    %v74 = vld [vmem:[#allocation5 + $0x108] sm:$0xff]
    %v75 = vld [vmem:[#allocation5 + $0x110] sm:$0xff]
    %v76 = vld [vmem:[#allocation5 + $0x118] sm:$0xff]
    %v77 = vld [vmem:[#allocation5 + $0x120] sm:$0xff]
    %v78 = vld [vmem:[#allocation5 + $0x128] sm:$0xff]
    %v79 = vld [vmem:[#allocation5 + $0x130] sm:$0x1]
    %v80 = vld [vmem:[#allocation5 + $0x138] sm:$0xff]
    %v81 = vld [vmem:[#allocation5 + $0x140] sm:$0xff]
    %v82 = vld [vmem:[#allocation5 + $0x148] sm:$0x1]
    %v83 = vld [vmem:[#allocation5 + $0x150] sm:$0xff]
    %v84 = vld [vmem:[#allocation5 + $0x158] sm:$0xff]
    %v85 = vld [vmem:[#allocation5 + $0x160] sm:$0x1]
    %v86 = vld [vmem:[#allocation5 + $0x168] sm:$0x1]
    %v87 = vld [vmem:[#allocation5 + $0x170] sm:$0x1]
    %v88 = vld [vmem:[#allocation5 + $0x178] sm:$0xff]
    %v89 = vld [vmem:[#allocation5 + $0x180] sm:$0xff]
    %v90 = vld [vmem:[#allocation5 + $0x188] sm:$0x1]
    %v91 = vld [vmem:[#allocation5 + $0x190] sm:$0xff]
    %v92 = vld [vmem:[#allocation5 + $0x198] sm:$0xff]
    %v93 = vld [vmem:[#allocation5 + $0x1a0] sm:$0xff]
    %v94 = vld [vmem:[#allocation5 + $0x1a8] sm:$0xff]
    %v95 = vld [vmem:[#allocation5 + $0x1b0] sm:$0xff]
    %v96 = vld [vmem:[#allocation5 + $0x1b8] sm:$0xff]
    %v97 = vld [vmem:[#allocation5 + $0x1c0] sm:$0xff]
    %v98 = vld [vmem:[#allocation5 + $0x1c8] sm:$0xff]
    %v99 = vld [vmem:[#allocation5 + $0x1d0] sm:$0x1]
    %v100 = vld [vmem:[#allocation5 + $0x1d8] sm:$0xff]
    %v101 = vld [vmem:[#allocation5 + $0x1e0] sm:$0xff]
    %v102 = vld [vmem:[#allocation5 + $0x1e8] sm:$0x1]
    %v103 = vld [vmem:[#allocation5 + $0x1f0] sm:$0xff]
    %v104 = vld [vmem:[#allocation5 + $0x1f8] sm:$0xff]
    %v105 = vld [vmem:[#allocation5 + $0x200] sm:$0x1]
    %v106 = vld [vmem:[#allocation5 + $0x208] sm:$0x1]
    %v107 = vld [vmem:[#allocation5 + $0x210] sm:$0x1]
    %v108 = vld [vmem:[#allocation5 + $0x218] sm:$0xff]
    %v109 = vld [vmem:[#allocation5 + $0x220] sm:$0xf]
    %v110 = vld [vmem:[#allocation5 + $0x228] sm:$0x1]
    %v111 = vld [vmem:[#allocation5 + $0x230] sm:$0xff]
    %v112 = vld [vmem:[#allocation5 + $0x238] sm:$0xff]
    %v113 = vld [vmem:[#allocation5 + $0x240] sm:$0xff]
    %v114 = vld [vmem:[#allocation5 + $0x248] sm:$0xff]
    %v115 = vld [vmem:[#allocation5 + $0x250] sm:$0x1]
    %v116 = vld [vmem:[#allocation5 + $0x258] sm:$0xff]
    %v117 = vld [vmem:[#allocation5 + $0x260] sm:$0xff]
    %v118 = vld [vmem:[#allocation5 + $0x268] sm:$0xff]
    %v119 = vld [vmem:[#allocation5 + $0x270] sm:$0xff]
    %v120 = vld [vmem:[#allocation5 + $0x278] sm:$0x1]
    %v121 = vld [vmem:[#allocation5 + $0x280] sm:$0xff]
    %v122 = vld [vmem:[#allocation5 + $0x288] sm:$0xff]
    %v123 = vld [vmem:[#allocation5 + $0x290] sm:$0x1]
    %v124 = vld [vmem:[#allocation2] sm:$0xff]
    %v125 = vld [vmem:[%s1] sm:$0x1]
    %v126 = vlaneseq
    %v127 = vshrl.u32 %v126, 7
    %v128 = vsub.s32 0, %v127
    %v129 = vrot.slane %v42, %v128
    %vm130 = vcmask 64512
    %v132 = vsel %vm130, %v124, 0
    %134 = vmatprep.subr.mxu0 0.0
    %135 = vmatpush1.msra.mxu0 0.0
    %136 = vmatprep.subr.mxu0 0.0
    %137 = vmatpush1.msra.mxu0 0.0
    %138 = vmatprep.subr.mxu0 0.0
    %139 = vmatpush1.msra.mxu0 0.0
    %140 = vmatprep.subr.mxu0 0.0
    %141 = vmatpush1.msra.mxu0 0.0
    %142 = vmatprep.subr.mxu0 0.0
    %143 = vmatpush1.msra.mxu0 0.0
    %144 = vmatprep.subr.mxu0 0.0
    %145 = vmatpush1.msra.mxu0 0.0
    %146 = vmatprep.subr.mxu0 0.0
    %147 = vmatpush1.msra.mxu0 0.0
    %148 = vmatprep.subr.mxu0 0.0
    %149 = vmatpush1.msra.mxu0 0.0
    %150 = vmatprep.subr.mxu0 0.0
    %151 = vmatpush1.msra.mxu0 0.0
    %152 = vmatprep.subr.mxu0 0.0
    %153 = vmatpush1.msra.mxu0 0.0
    %154 = vmatprep.subr.mxu0 0.0
    %155 = vmatpush1.msra.mxu0 0.0
    %156 = vmatprep.subr.mxu0 0.0
    %157 = vmatpush1.msra.mxu0 0.0
    %158 = vmatprep.subr.mxu0 0.0
    %159 = vmatpush1.msra.mxu0 0.0
    %160 = vmatprep.subr.mxu0 0.0
    %161 = vmatpush1.msra.mxu0 0.0
    %162 = vmatprep.subr.mxu0 0.0
    %163 = vmatpush1.msra.mxu0 0.0
    %164 = vmatprep.subr.mxu0 0.0
    %165 = vmatpush1.msra.mxu0 %v41
    %166 = vmatprep.subr.mxu0 0.0
    %167 = vmatpush2.msra.mxu0 0.0
    %168 = vmatprep.subr.mxu0 0.0
    %169 = vmatpush2.msra.mxu0 0.0
    %170 = vmatprep.subr.mxu0 0.0
    %171 = vmatpush2.msra.mxu0 0.0
    %172 = vmatprep.subr.mxu0 0.0
    %173 = vmatpush2.msra.mxu0 0.0
    %174 = vmatprep.subr.mxu0 0.0
    %175 = vmatpush2.msra.mxu0 0.0
    %176 = vmatprep.subr.mxu0 0.0
    %177 = vmatpush2.msra.mxu0 0.0
    %178 = vmatprep.subr.mxu0 0.0
    %179 = vmatpush2.msra.mxu0 0.0
    %180 = vmatprep.subr.mxu0 0.0
    %181 = vmatpush2.msra.mxu0 0.0
    %182 = vmatprep.subr.mxu0 0.0
    %183 = vmatpush2.msra.mxu0 0.0
    %184 = vmatprep.subr.mxu0 0.0
    %185 = vmatpush2.msra.mxu0 0.0
    %186 = vmatprep.subr.mxu0 0.0
    %187 = vmatpush2.msra.mxu0 0.0
    %188 = vmatprep.subr.mxu0 0.0
    %189 = vmatpush2.msra.mxu0 0.0
    %190 = vmatprep.subr.mxu0 0.0
    %191 = vmatpush2.msra.mxu0 0.0
    %192 = vmatprep.subr.mxu0 0.0
    %193 = vmatpush2.msra.mxu0 0.0
    %194 = vmatprep.subr.mxu0 0.0
    %195 = vmatpush2.msra.mxu0 0.0
    %196 = vmatprep.subr.mxu0 0.0
    %197 = vmatpush2.msra.mxu0 0.0
    %198 = vmatprep.mubr.f32.mxu0 0.0
    %199 = vmatmul.mubr.f32.gmra.mxu0 %v132
    %v200 = vpop.f32.mrf.mxu0
    %v201 = vadd.f32 %v129, %v200
    %v202 = vpop.f32.mrf.mxu0
    %203 = vdwg.mxu0
    %v204 = vmax.f32 %v201, 0.0
    %v205 = vlaneseq
    %v206 = vshrl.u32 %v205, 7
    %v207 = vsub.s32 0, %v206
    %v208 = vrot.slane %v47, %v207
    %vm209 = vcmask 261120
    %v211 = vsel %vm209, %v204, 0
    %213 = vmatprep.subr.mxu0 0.0
    %214 = vmatpush1.msra.mxu0 0.0
    %215 = vmatprep.subr.mxu0 0.0
    %216 = vmatpush1.msra.mxu0 0.0
    %217 = vmatprep.subr.mxu0 0.0
    %218 = vmatpush1.msra.mxu0 0.0
    %219 = vmatprep.subr.mxu0 0.0
    %220 = vmatpush1.msra.mxu0 0.0
    %221 = vmatprep.subr.mxu0 0.0
    %222 = vmatpush1.msra.mxu0 0.0
    %223 = vmatprep.subr.mxu0 0.0
    %224 = vmatpush1.msra.mxu0 0.0
    %225 = vmatprep.subr.mxu0 0.0
    %226 = vmatpush1.msra.mxu0 0.0
    %227 = vmatprep.subr.mxu0 0.0
    %228 = vmatpush1.msra.mxu0 0.0
    %229 = vmatprep.subr.mxu0 0.0
    %230 = vmatpush1.msra.mxu0 0.0
    %231 = vmatprep.subr.mxu0 0.0
    %232 = vmatpush1.msra.mxu0 0.0
    %233 = vmatprep.subr.mxu0 0.0
    %234 = vmatpush1.msra.mxu0 0.0
    %235 = vmatprep.subr.mxu0 0.0
    %236 = vmatpush1.msra.mxu0 0.0
    %237 = vmatprep.subr.mxu0 0.0
    %238 = vmatpush1.msra.mxu0 %v46
    %239 = vmatprep.subr.mxu0 0.0
    %240 = vmatpush1.msra.mxu0 %v45
    %241 = vmatprep.subr.mxu0 0.0
    %242 = vmatpush1.msra.mxu0 %v44
    %243 = vmatprep.subr.mxu0 0.0
    %244 = vmatpush1.msra.mxu0 %v43
    %245 = vmatprep.subr.mxu0 0.0
    %246 = vmatpush2.msra.mxu0 0.0
    %247 = vmatprep.subr.mxu0 0.0
    %248 = vmatpush2.msra.mxu0 0.0
    %249 = vmatprep.subr.mxu0 0.0
    %250 = vmatpush2.msra.mxu0 0.0
    %251 = vmatprep.subr.mxu0 0.0
    %252 = vmatpush2.msra.mxu0 0.0
    %253 = vmatprep.subr.mxu0 0.0
    %254 = vmatpush2.msra.mxu0 0.0
    %255 = vmatprep.subr.mxu0 0.0
    %256 = vmatpush2.msra.mxu0 0.0
    %257 = vmatprep.subr.mxu0 0.0
    %258 = vmatpush2.msra.mxu0 0.0
    %259 = vmatprep.subr.mxu0 0.0
    %260 = vmatpush2.msra.mxu0 0.0
    %261 = vmatprep.subr.mxu0 0.0
    %262 = vmatpush2.msra.mxu0 0.0
    %263 = vmatprep.subr.mxu0 0.0
    %264 = vmatpush2.msra.mxu0 0.0
    %265 = vmatprep.subr.mxu0 0.0
    %266 = vmatpush2.msra.mxu0 0.0
    %267 = vmatprep.subr.mxu0 0.0
    %268 = vmatpush2.msra.mxu0 0.0
    %269 = vmatprep.subr.mxu0 0.0
    %270 = vmatpush2.msra.mxu0 0.0
    %271 = vmatprep.subr.mxu0 0.0
    %272 = vmatpush2.msra.mxu0 0.0
    %273 = vmatprep.subr.mxu0 0.0
    %274 = vmatpush2.msra.mxu0 0.0
    %275 = vmatprep.subr.mxu0 0.0
    %276 = vmatpush2.msra.mxu0 0.0
    %277 = vmatprep.mubr.f32.mxu0 0.0
    %278 = vmatmul.mubr.f32.gmra.mxu0 %v211
    %v279 = vpop.f32.mrf.mxu0
    %v280 = vadd.f32 %v208, %v279
    %v281 = vpop.f32.mrf.mxu0
    %282 = vdwg.mxu0
    %v283 = vlaneseq
    %v284 = vshrl.u32 %v283, 7
    %v285 = vlaneseq
    %v286 = vand.u32 %v285, 127
    %vm287 = vcmp.le.s32.totalorder %v286, %v284
    %v288 = vsel %vm287, 0.0, -1e+30
    %v289 = vlaneseq
    %v290 = vshrl.u32 %v289, 7
    %v291 = vsub.s32 0, %v290
    %v292 = vrot.slane %v66, %v291
    %v293 = vlaneseq
    %v294 = vshrl.u32 %v293, 7
    %v295 = vsub.s32 0, %v294
    %v296 = vrot.slane %v67, %v295
    %v297 = vlaneseq
    %v298 = vshrl.u32 %v297, 7
    %v299 = vsub.s32 0, %v298
    %v300 = vrot.slane %v50, %v299
    %vm301 = vcmask 130048
    %v303 = vsel %vm301, %v280, 0
    %305 = vmatprep.subr.mxu0 0.0
    %306 = vmatpush1.msra.mxu0 0.0
    %307 = vmatprep.subr.mxu0 0.0
    %308 = vmatpush1.msra.mxu0 0.0
    %309 = vmatprep.subr.mxu0 0.0
    %310 = vmatpush1.msra.mxu0 0.0
    %311 = vmatprep.subr.mxu0 0.0
    %312 = vmatpush1.msra.mxu0 0.0
    %313 = vmatprep.subr.mxu0 0.0
    %314 = vmatpush1.msra.mxu0 0.0
    %315 = vmatprep.subr.mxu0 0.0
    %316 = vmatpush1.msra.mxu0 0.0
    %317 = vmatprep.subr.mxu0 0.0
    %318 = vmatpush1.msra.mxu0 0.0
    %319 = vmatprep.subr.mxu0 0.0
    %320 = vmatpush1.msra.mxu0 0.0
    %321 = vmatprep.subr.mxu0 0.0
    %322 = vmatpush1.msra.mxu0 0.0
    %323 = vmatprep.subr.mxu0 0.0
    %324 = vmatpush1.msra.mxu0 0.0
    %325 = vmatprep.subr.mxu0 0.0
    %326 = vmatpush1.msra.mxu0 0.0
    %327 = vmatprep.subr.mxu0 0.0
    %328 = vmatpush1.msra.mxu0 0.0
    %329 = vmatprep.subr.mxu0 0.0
    %330 = vmatpush1.msra.mxu0 0.0
    %331 = vmatprep.subr.mxu0 0.0
    %332 = vmatpush1.msra.mxu0 0.0
    %333 = vmatprep.subr.mxu0 0.0
    %334 = vmatpush1.msra.mxu0 %v49
    %335 = vmatprep.subr.mxu0 0.0
    %336 = vmatpush1.msra.mxu0 %v48
    %337 = vmatprep.subr.mxu0 0.0
    %338 = vmatpush2.msra.mxu0 0.0
    %339 = vmatprep.subr.mxu0 0.0
    %340 = vmatpush2.msra.mxu0 0.0
    %341 = vmatprep.subr.mxu0 0.0
    %342 = vmatpush2.msra.mxu0 0.0
    %343 = vmatprep.subr.mxu0 0.0
    %344 = vmatpush2.msra.mxu0 0.0
    %345 = vmatprep.subr.mxu0 0.0
    %346 = vmatpush2.msra.mxu0 0.0
    %347 = vmatprep.subr.mxu0 0.0
    %348 = vmatpush2.msra.mxu0 0.0
    %349 = vmatprep.subr.mxu0 0.0
    %350 = vmatpush2.msra.mxu0 0.0
    %351 = vmatprep.subr.mxu0 0.0
    %352 = vmatpush2.msra.mxu0 0.0
    %353 = vmatprep.subr.mxu0 0.0
    %354 = vmatpush2.msra.mxu0 0.0
    %355 = vmatprep.subr.mxu0 0.0
    %356 = vmatpush2.msra.mxu0 0.0
    %357 = vmatprep.subr.mxu0 0.0
    %358 = vmatpush2.msra.mxu0 0.0
    %359 = vmatprep.subr.mxu0 0.0
    %360 = vmatpush2.msra.mxu0 0.0
    %361 = vmatprep.subr.mxu0 0.0
    %362 = vmatpush2.msra.mxu0 0.0
    %363 = vmatprep.subr.mxu0 0.0
    %364 = vmatpush2.msra.mxu0 0.0
    %365 = vmatprep.subr.mxu0 0.0
    %366 = vmatpush2.msra.mxu0 0.0
    %367 = vmatprep.subr.mxu0 0.0
    %368 = vmatpush2.msra.mxu0 0.0
    %369 = vmatprep.mubr.f32.mxu0 0.0
    %370 = vmatmul.mubr.f32.gmra.mxu0 %v303
    %v371 = vpop.f32.mrf.mxu0
    %v372 = vadd.f32 %v300, %v371
    %v373 = vpop.f32.mrf.mxu0
    %374 = vdwg.mxu0
    %v376 = vsel %vm301, %v372, 0
    %378 = vmatprep.subr.mxu0 0.0
    %379 = vmatpush1.xpose.msra.mxu0 0.0
    %380 = vmatprep.subr.mxu0 0.0
    %381 = vmatpush1.xpose.msra.mxu0 0.0
    %382 = vmatprep.subr.mxu0 0.0
    %383 = vmatpush1.xpose.msra.mxu0 0.0
    %384 = vmatprep.subr.mxu0 0.0
    %385 = vmatpush1.xpose.msra.mxu0 0.0
    %386 = vmatprep.subr.mxu0 0.0
    %387 = vmatpush1.xpose.msra.mxu0 0.0
    %388 = vmatprep.subr.mxu0 0.0
    %389 = vmatpush1.xpose.msra.mxu0 0.0
    %390 = vmatprep.subr.mxu0 0.0
    %391 = vmatpush1.xpose.msra.mxu0 0.0
    %392 = vmatprep.subr.mxu0 0.0
    %393 = vmatpush1.xpose.msra.mxu0 0.0
    %394 = vmatprep.subr.mxu0 0.0
    %395 = vmatpush1.xpose.msra.mxu0 0.0
    %396 = vmatprep.subr.mxu0 0.0
    %397 = vmatpush1.xpose.msra.mxu0 0.0
    %398 = vmatprep.subr.mxu0 0.0
    %399 = vmatpush1.xpose.msra.mxu0 0.0
    %400 = vmatprep.subr.mxu0 0.0
    %401 = vmatpush1.xpose.msra.mxu0 0.0
    %402 = vmatprep.subr.mxu0 0.0
    %403 = vmatpush1.xpose.msra.mxu0 0.0
    %404 = vmatprep.subr.mxu0 0.0
    %405 = vmatpush1.xpose.msra.mxu0 0.0
    %406 = vmatprep.subr.mxu0 0.0
    %407 = vmatpush1.xpose.msra.mxu0 0.0
    %408 = vmatprep.subr.mxu0 0.0
    %409 = vmatpush1.xpose.msra.mxu0 %v376
    %410 = vmatprep.subr.mxu0 0.0
    %411 = vmatpush2.xpose.msra.mxu0 0.0
    %412 = vmatprep.subr.mxu0 0.0
    %413 = vmatpush2.xpose.msra.mxu0 0.0
    %414 = vmatprep.subr.mxu0 0.0
    %415 = vmatpush2.xpose.msra.mxu0 0.0
    %416 = vmatprep.subr.mxu0 0.0
    %417 = vmatpush2.xpose.msra.mxu0 0.0
    %418 = vmatprep.subr.mxu0 0.0
    %419 = vmatpush2.xpose.msra.mxu0 0.0
    %420 = vmatprep.subr.mxu0 0.0
    %421 = vmatpush2.xpose.msra.mxu0 0.0
    %422 = vmatprep.subr.mxu0 0.0
    %423 = vmatpush2.xpose.msra.mxu0 0.0
    %424 = vmatprep.subr.mxu0 0.0
    %425 = vmatpush2.xpose.msra.mxu0 0.0
    %426 = vmatprep.subr.mxu0 0.0
    %427 = vmatpush2.xpose.msra.mxu0 0.0
    %428 = vmatprep.subr.mxu0 0.0
    %429 = vmatpush2.xpose.msra.mxu0 0.0
    %430 = vmatprep.subr.mxu0 0.0
    %431 = vmatpush2.xpose.msra.mxu0 0.0
    %432 = vmatprep.subr.mxu0 0.0
    %433 = vmatpush2.xpose.msra.mxu0 0.0
    %434 = vmatprep.subr.mxu0 0.0
    %435 = vmatpush2.xpose.msra.mxu0 0.0
    %436 = vmatprep.subr.mxu0 0.0
    %437 = vmatpush2.xpose.msra.mxu0 0.0
    %438 = vmatprep.subr.mxu0 0.0
    %439 = vmatpush2.xpose.msra.mxu0 0.0
    %440 = vmatprep.subr.mxu0 0.0
    %441 = vmatpush2.xpose.msra.mxu0 0.0
    %442 = vmatprep.mubr.f32.mxu0 0.0
    %443 = vmatmul.mubr.f32.gmra.mxu0 %v376
    %v444 = vpop.f32.mrf.mxu0
    %v445 = vadd.f32 0.0, %v444
    %v446 = vpop.f32.mrf.mxu0
    %447 = vdwg.mxu0
    %v448 = vmul.f32 %v445, 0.25
    %v449 = vadd.f32 %v448, %v288
    %v450 = vsel %vm130, %v449, -inf
    %451 = vmax.xlane.f32.xlu0 %v450
    %v452 = vpop.xlane.xlu0 %451
    %v453 = vsub.f32 %v449, %v452
    %v454 = vmul.f32 %v453, 1.442695
    %v455 = vpow.pop %v454
    %v456 = vsel %vm130, %v455, 0.0
    %457 = vadd.xlane.f32.xlu0 %v456
    %v458 = vpop.xlane.xlu0 %457
    %v459 = vrcp.pop %v458
    %v460 = vmul.f32 %v455, %v459
    %v462 = vsel %vm130, %v460, 0
    %464 = vmatprep.subr.mxu0 0.0
    %465 = vmatpush1.msra.mxu0 0.0
    %466 = vmatprep.subr.mxu0 0.0
    %467 = vmatpush1.msra.mxu0 0.0
    %468 = vmatprep.subr.mxu0 0.0
    %469 = vmatpush1.msra.mxu0 0.0
    %470 = vmatprep.subr.mxu0 0.0
    %471 = vmatpush1.msra.mxu0 0.0
    %472 = vmatprep.subr.mxu0 0.0
    %473 = vmatpush1.msra.mxu0 0.0
    %474 = vmatprep.subr.mxu0 0.0
    %475 = vmatpush1.msra.mxu0 0.0
    %476 = vmatprep.subr.mxu0 0.0
    %477 = vmatpush1.msra.mxu0 0.0
    %478 = vmatprep.subr.mxu0 0.0
    %479 = vmatpush1.msra.mxu0 0.0
    %480 = vmatprep.subr.mxu0 0.0
    %481 = vmatpush1.msra.mxu0 0.0
    %482 = vmatprep.subr.mxu0 0.0
    %483 = vmatpush1.msra.mxu0 0.0
    %484 = vmatprep.subr.mxu0 0.0
    %485 = vmatpush1.msra.mxu0 0.0
    %486 = vmatprep.subr.mxu0 0.0
    %487 = vmatpush1.msra.mxu0 0.0
    %488 = vmatprep.subr.mxu0 0.0
    %489 = vmatpush1.msra.mxu0 0.0
    %490 = vmatprep.subr.mxu0 0.0
    %491 = vmatpush1.msra.mxu0 0.0
    %492 = vmatprep.subr.mxu0 0.0
    %493 = vmatpush1.msra.mxu0 0.0
    %494 = vmatprep.subr.mxu0 0.0
    %495 = vmatpush1.msra.mxu0 %v372
    %496 = vmatprep.subr.mxu0 0.0
    %497 = vmatpush2.msra.mxu0 0.0
    %498 = vmatprep.subr.mxu0 0.0
    %499 = vmatpush2.msra.mxu0 0.0
    %500 = vmatprep.subr.mxu0 0.0
    %501 = vmatpush2.msra.mxu0 0.0
    %502 = vmatprep.subr.mxu0 0.0
    %503 = vmatpush2.msra.mxu0 0.0
    %504 = vmatprep.subr.mxu0 0.0
    %505 = vmatpush2.msra.mxu0 0.0
    %506 = vmatprep.subr.mxu0 0.0
    %507 = vmatpush2.msra.mxu0 0.0
    %508 = vmatprep.subr.mxu0 0.0
    %509 = vmatpush2.msra.mxu0 0.0
    %510 = vmatprep.subr.mxu0 0.0
    %511 = vmatpush2.msra.mxu0 0.0
    %512 = vmatprep.subr.mxu0 0.0
    %513 = vmatpush2.msra.mxu0 0.0
    %514 = vmatprep.subr.mxu0 0.0
    %515 = vmatpush2.msra.mxu0 0.0
    %516 = vmatprep.subr.mxu0 0.0
    %517 = vmatpush2.msra.mxu0 0.0
    %518 = vmatprep.subr.mxu0 0.0
    %519 = vmatpush2.msra.mxu0 0.0
    %520 = vmatprep.subr.mxu0 0.0
    %521 = vmatpush2.msra.mxu0 0.0
    %522 = vmatprep.subr.mxu0 0.0
    %523 = vmatpush2.msra.mxu0 0.0
    %524 = vmatprep.subr.mxu0 0.0
    %525 = vmatpush2.msra.mxu0 0.0
    %526 = vmatprep.subr.mxu0 0.0
    %527 = vmatpush2.msra.mxu0 0.0
    %528 = vmatprep.mubr.f32.mxu0 0.0
    %529 = vmatmul.mubr.f32.gmra.mxu0 %v462
    %v530 = vpop.f32.mrf.mxu0
    %v531 = vadd.f32 %v280, %v530
    %v532 = vpop.f32.mrf.mxu0
    %533 = vdwg.mxu0
    %v534 = vsel %vm301, %v531, 0.0
    %535 = vadd.xlane.f32.xlu0 %v534
    %v536 = vpop.xlane.xlu0 %535
    %v537 = vrcp.pop 16.0
    %v538 = vmul.f32 %v536, %v537
    %v539 = vsub.f32 %v531, %v538
    %v540 = vmul.f32 %v539, %v539
    %v541 = vsel %vm301, %v540, 0.0
    %542 = vadd.xlane.f32.xlu0 %v541
    %v543 = vpop.xlane.xlu0 %542
    %v544 = vmul.f32 %v543, %v537
    %v545 = vadd.f32 %v544, 1e-05
    %v546 = vrsqrt.pop %v545
    %v547 = vmul.f32 %v539, %v546
    %v548 = vmul.f32 %v547, %v292
    %v549 = vadd.f32 %v548, %v296
    %550 = vrot.lane.b32.xlu0 %v372, 112
    %v551 = vpop.permute.xlu0 %550
    %v552 = vsel %vm301, %v551, 0
    %554 = vmatprep.subr.mxu0 0.0
    %555 = vmatpush1.xpose.msra.mxu0 0.0
    %556 = vmatprep.subr.mxu0 0.0
    %557 = vmatpush1.xpose.msra.mxu0 0.0
    %558 = vmatprep.subr.mxu0 0.0
    %559 = vmatpush1.xpose.msra.mxu0 0.0
    %560 = vmatprep.subr.mxu0 0.0
    %561 = vmatpush1.xpose.msra.mxu0 0.0
    %562 = vmatprep.subr.mxu0 0.0
    %563 = vmatpush1.xpose.msra.mxu0 0.0
    %564 = vmatprep.subr.mxu0 0.0
    %565 = vmatpush1.xpose.msra.mxu0 0.0
    %566 = vmatprep.subr.mxu0 0.0
    %567 = vmatpush1.xpose.msra.mxu0 0.0
    %568 = vmatprep.subr.mxu0 0.0
    %569 = vmatpush1.xpose.msra.mxu0 0.0
    %570 = vmatprep.subr.mxu0 0.0
    %571 = vmatpush1.xpose.msra.mxu0 0.0
    %572 = vmatprep.subr.mxu0 0.0
    %573 = vmatpush1.xpose.msra.mxu0 0.0
    %574 = vmatprep.subr.mxu0 0.0
    %575 = vmatpush1.xpose.msra.mxu0 0.0
    %576 = vmatprep.subr.mxu0 0.0
    %577 = vmatpush1.xpose.msra.mxu0 0.0
    %578 = vmatprep.subr.mxu0 0.0
    %579 = vmatpush1.xpose.msra.mxu0 0.0
    %580 = vmatprep.subr.mxu0 0.0
    %581 = vmatpush1.xpose.msra.mxu0 0.0
    %582 = vmatprep.subr.mxu0 0.0
    %583 = vmatpush1.xpose.msra.mxu0 0.0
    %584 = vmatprep.subr.mxu0 0.0
    %585 = vmatpush1.xpose.msra.mxu0 %v552
    %586 = vmatprep.subr.mxu0 0.0
    %587 = vmatpush2.xpose.msra.mxu0 0.0
    %588 = vmatprep.subr.mxu0 0.0
    %589 = vmatpush2.xpose.msra.mxu0 0.0
    %590 = vmatprep.subr.mxu0 0.0
    %591 = vmatpush2.xpose.msra.mxu0 0.0
    %592 = vmatprep.subr.mxu0 0.0
    %593 = vmatpush2.xpose.msra.mxu0 0.0
    %594 = vmatprep.subr.mxu0 0.0
    %595 = vmatpush2.xpose.msra.mxu0 0.0
    %596 = vmatprep.subr.mxu0 0.0
    %597 = vmatpush2.xpose.msra.mxu0 0.0
    %598 = vmatprep.subr.mxu0 0.0
    %599 = vmatpush2.xpose.msra.mxu0 0.0
    %600 = vmatprep.subr.mxu0 0.0
    %601 = vmatpush2.xpose.msra.mxu0 0.0
    %602 = vmatprep.subr.mxu0 0.0
    %603 = vmatpush2.xpose.msra.mxu0 0.0
    %604 = vmatprep.subr.mxu0 0.0
    %605 = vmatpush2.xpose.msra.mxu0 0.0
    %606 = vmatprep.subr.mxu0 0.0
    %607 = vmatpush2.xpose.msra.mxu0 0.0
    %608 = vmatprep.subr.mxu0 0.0
    %609 = vmatpush2.xpose.msra.mxu0 0.0
    %610 = vmatprep.subr.mxu0 0.0
    %611 = vmatpush2.xpose.msra.mxu0 0.0
    %612 = vmatprep.subr.mxu0 0.0
    %613 = vmatpush2.xpose.msra.mxu0 0.0
    %614 = vmatprep.subr.mxu0 0.0
    %615 = vmatpush2.xpose.msra.mxu0 0.0
    %616 = vmatprep.subr.mxu0 0.0
    %617 = vmatpush2.xpose.msra.mxu0 0.0
    %618 = vmatprep.mubr.f32.mxu0 0.0
    %619 = vmatmul.mubr.f32.gmra.mxu0 %v552
    %v620 = vpop.f32.mrf.mxu0
    %v621 = vadd.f32 0.0, %v620
    %v622 = vpop.f32.mrf.mxu0
    %623 = vdwg.mxu0
    %v624 = vmul.f32 %v621, 0.25
    %v625 = vadd.f32 %v624, %v288
    %v626 = vsel %vm130, %v625, -inf
    %627 = vmax.xlane.f32.xlu0 %v626
    %v628 = vpop.xlane.xlu0 %627
    %v629 = vsub.f32 %v625, %v628
    %v630 = vmul.f32 %v629, 1.442695
    %v631 = vpow.pop %v630
    %v632 = vsel %vm130, %v631, 0.0
    %633 = vadd.xlane.f32.xlu0 %v632
    %v634 = vpop.xlane.xlu0 %633
    %v635 = vrcp.pop %v634
    %v636 = vmul.f32 %v631, %v635
    %v639 = vsel %vm130, %v636, 0
    %641 = vmatprep.subr.mxu0 0.0
    %642 = vmatpush1.msra.mxu0 0.0
    %643 = vmatprep.subr.mxu0 0.0
    %644 = vmatpush1.msra.mxu0 0.0
    %645 = vmatprep.subr.mxu0 0.0
    %646 = vmatpush1.msra.mxu0 0.0
    %647 = vmatprep.subr.mxu0 0.0
    %648 = vmatpush1.msra.mxu0 0.0
    %649 = vmatprep.subr.mxu0 0.0
    %650 = vmatpush1.msra.mxu0 0.0
    %651 = vmatprep.subr.mxu0 0.0
    %652 = vmatpush1.msra.mxu0 0.0
    %653 = vmatprep.subr.mxu0 0.0
    %654 = vmatpush1.msra.mxu0 0.0
    %655 = vmatprep.subr.mxu0 0.0
    %656 = vmatpush1.msra.mxu0 0.0
    %657 = vmatprep.subr.mxu0 0.0
    %658 = vmatpush1.msra.mxu0 0.0
    %659 = vmatprep.subr.mxu0 0.0
    %660 = vmatpush1.msra.mxu0 0.0
    %661 = vmatprep.subr.mxu0 0.0
    %662 = vmatpush1.msra.mxu0 0.0
    %663 = vmatprep.subr.mxu0 0.0
    %664 = vmatpush1.msra.mxu0 0.0
    %665 = vmatprep.subr.mxu0 0.0
    %666 = vmatpush1.msra.mxu0 0.0
    %667 = vmatprep.subr.mxu0 0.0
    %668 = vmatpush1.msra.mxu0 0.0
    %669 = vmatprep.subr.mxu0 0.0
    %670 = vmatpush1.msra.mxu0 0.0
    %671 = vmatprep.subr.mxu0 0.0
    %672 = vmatpush1.msra.mxu0 %v551
    %673 = vmatprep.subr.mxu0 0.0
    %674 = vmatpush2.msra.mxu0 0.0
    %675 = vmatprep.subr.mxu0 0.0
    %676 = vmatpush2.msra.mxu0 0.0
    %677 = vmatprep.subr.mxu0 0.0
    %678 = vmatpush2.msra.mxu0 0.0
    %679 = vmatprep.subr.mxu0 0.0
    %680 = vmatpush2.msra.mxu0 0.0
    %681 = vmatprep.subr.mxu0 0.0
    %682 = vmatpush2.msra.mxu0 0.0
    %683 = vmatprep.subr.mxu0 0.0
    %684 = vmatpush2.msra.mxu0 0.0
    %685 = vmatprep.subr.mxu0 0.0
    %686 = vmatpush2.msra.mxu0 0.0
    %687 = vmatprep.subr.mxu0 0.0
    %688 = vmatpush2.msra.mxu0 0.0
    %689 = vmatprep.subr.mxu0 0.0
    %690 = vmatpush2.msra.mxu0 0.0
    %691 = vmatprep.subr.mxu0 0.0
    %692 = vmatpush2.msra.mxu0 0.0
    %693 = vmatprep.subr.mxu0 0.0
    %694 = vmatpush2.msra.mxu0 0.0
    %695 = vmatprep.subr.mxu0 0.0
    %696 = vmatpush2.msra.mxu0 0.0
    %697 = vmatprep.subr.mxu0 0.0
    %698 = vmatpush2.msra.mxu0 0.0
    %699 = vmatprep.subr.mxu0 0.0
    %700 = vmatpush2.msra.mxu0 0.0
    %701 = vmatprep.subr.mxu0 0.0
    %702 = vmatpush2.msra.mxu0 0.0
    %703 = vmatprep.subr.mxu0 0.0
    %704 = vmatpush2.msra.mxu0 0.0
    %705 = vmatprep.mubr.f32.mxu0 0.0
    %706 = vmatmul.mubr.f32.gmra.mxu0 %v639
    %v707 = vpop.f32.mrf.mxu0
    %v708 = vadd.f32 %v280, %v707
    %v709 = vpop.f32.mrf.mxu0
    %710 = vdwg.mxu0
    %v711 = vsel %vm301, %v708, 0.0
    %712 = vadd.xlane.f32.xlu0 %v711
    %v713 = vpop.xlane.xlu0 %712
    %v714 = vmul.f32 %v713, %v537
    %v715 = vsub.f32 %v708, %v714
    %v716 = vmul.f32 %v715, %v715
    %v717 = vsel %vm301, %v716, 0.0
    %718 = vadd.xlane.f32.xlu0 %v717
    %v719 = vpop.xlane.xlu0 %718
    %v720 = vmul.f32 %v719, %v537
    %v721 = vadd.f32 %v720, 1e-05
    %v722 = vrsqrt.pop %v721
    %v723 = vmul.f32 %v715, %v722
    %v724 = vmul.f32 %v723, %v292
    %v725 = vadd.f32 %v724, %v296
    %726 = vrot.lane.b32.xlu0 %v372, 96
    %v727 = vpop.permute.xlu0 %726
    %v728 = vsel %vm301, %v727, 0
    %730 = vmatprep.subr.mxu0 0.0
    %731 = vmatpush1.xpose.msra.mxu0 0.0
    %732 = vmatprep.subr.mxu0 0.0
    %733 = vmatpush1.xpose.msra.mxu0 0.0
    %734 = vmatprep.subr.mxu0 0.0
    %735 = vmatpush1.xpose.msra.mxu0 0.0
    %736 = vmatprep.subr.mxu0 0.0
    %737 = vmatpush1.xpose.msra.mxu0 0.0
    %738 = vmatprep.subr.mxu0 0.0
    %739 = vmatpush1.xpose.msra.mxu0 0.0
    %740 = vmatprep.subr.mxu0 0.0
    %741 = vmatpush1.xpose.msra.mxu0 0.0
    %742 = vmatprep.subr.mxu0 0.0
    %743 = vmatpush1.xpose.msra.mxu0 0.0
    %744 = vmatprep.subr.mxu0 0.0
    %745 = vmatpush1.xpose.msra.mxu0 0.0
    %746 = vmatprep.subr.mxu0 0.0
    %747 = vmatpush1.xpose.msra.mxu0 0.0
    %748 = vmatprep.subr.mxu0 0.0
    %749 = vmatpush1.xpose.msra.mxu0 0.0
    %750 = vmatprep.subr.mxu0 0.0
    %751 = vmatpush1.xpose.msra.mxu0 0.0
    %752 = vmatprep.subr.mxu0 0.0
    %753 = vmatpush1.xpose.msra.mxu0 0.0
    %754 = vmatprep.subr.mxu0 0.0
    %755 = vmatpush1.xpose.msra.mxu0 0.0
    %756 = vmatprep.subr.mxu0 0.0
    %757 = vmatpush1.xpose.msra.mxu0 0.0
    %758 = vmatprep.subr.mxu0 0.0
    %759 = vmatpush1.xpose.msra.mxu0 0.0
    %760 = vmatprep.subr.mxu0 0.0
    %761 = vmatpush1.xpose.msra.mxu0 %v728
    %762 = vmatprep.subr.mxu0 0.0
    %763 = vmatpush2.xpose.msra.mxu0 0.0
    %764 = vmatprep.subr.mxu0 0.0
    %765 = vmatpush2.xpose.msra.mxu0 0.0
    %766 = vmatprep.subr.mxu0 0.0
    %767 = vmatpush2.xpose.msra.mxu0 0.0
    %768 = vmatprep.subr.mxu0 0.0
    %769 = vmatpush2.xpose.msra.mxu0 0.0
    %770 = vmatprep.subr.mxu0 0.0
    %771 = vmatpush2.xpose.msra.mxu0 0.0
    %772 = vmatprep.subr.mxu0 0.0
    %773 = vmatpush2.xpose.msra.mxu0 0.0
    %774 = vmatprep.subr.mxu0 0.0
    %775 = vmatpush2.xpose.msra.mxu0 0.0
    %776 = vmatprep.subr.mxu0 0.0
    %777 = vmatpush2.xpose.msra.mxu0 0.0
    %778 = vmatprep.subr.mxu0 0.0
    %779 = vmatpush2.xpose.msra.mxu0 0.0
    %780 = vmatprep.subr.mxu0 0.0
    %781 = vmatpush2.xpose.msra.mxu0 0.0
    %782 = vmatprep.subr.mxu0 0.0
    %783 = vmatpush2.xpose.msra.mxu0 0.0
    %784 = vmatprep.subr.mxu0 0.0
    %785 = vmatpush2.xpose.msra.mxu0 0.0
    %786 = vmatprep.subr.mxu0 0.0
    %787 = vmatpush2.xpose.msra.mxu0 0.0
    %788 = vmatprep.subr.mxu0 0.0
    %789 = vmatpush2.xpose.msra.mxu0 0.0
    %790 = vmatprep.subr.mxu0 0.0
    %791 = vmatpush2.xpose.msra.mxu0 0.0
    %792 = vmatprep.subr.mxu0 0.0
    %793 = vmatpush2.xpose.msra.mxu0 0.0
    %794 = vmatprep.mubr.f32.mxu0 0.0
    %795 = vmatmul.mubr.f32.gmra.mxu0 %v728
    %v796 = vpop.f32.mrf.mxu0
    %v797 = vadd.f32 0.0, %v796
    %v798 = vpop.f32.mrf.mxu0
    %799 = vdwg.mxu0
    %v800 = vmul.f32 %v797, 0.25
    %v801 = vadd.f32 %v800, %v288
    %v802 = vsel %vm130, %v801, -inf
    %803 = vmax.xlane.f32.xlu0 %v802
    %v804 = vpop.xlane.xlu0 %803
    %v805 = vsub.f32 %v801, %v804
    %v806 = vmul.f32 %v805, 1.442695
    %v807 = vpow.pop %v806
    %v808 = vsel %vm130, %v807, 0.0
    %809 = vadd.xlane.f32.xlu0 %v808
    %v810 = vpop.xlane.xlu0 %809
    %v811 = vrcp.pop %v810
    %v812 = vmul.f32 %v807, %v811
    %v815 = vsel %vm130, %v812, 0
    %817 = vmatprep.subr.mxu0 0.0
    %818 = vmatpush1.msra.mxu0 0.0
    %819 = vmatprep.subr.mxu0 0.0
    %820 = vmatpush1.msra.mxu0 0.0
    %821 = vmatprep.subr.mxu0 0.0
    %822 = vmatpush1.msra.mxu0 0.0
    %823 = vmatprep.subr.mxu0 0.0
    %824 = vmatpush1.msra.mxu0 0.0
    %825 = vmatprep.subr.mxu0 0.0
    %826 = vmatpush1.msra.mxu0 0.0
    %827 = vmatprep.subr.mxu0 0.0
    %828 = vmatpush1.msra.mxu0 0.0
    %829 = vmatprep.subr.mxu0 0.0
    %830 = vmatpush1.msra.mxu0 0.0
    %831 = vmatprep.subr.mxu0 0.0
    %832 = vmatpush1.msra.mxu0 0.0
    %833 = vmatprep.subr.mxu0 0.0
    %834 = vmatpush1.msra.mxu0 0.0
    %835 = vmatprep.subr.mxu0 0.0
    %836 = vmatpush1.msra.mxu0 0.0
    %837 = vmatprep.subr.mxu0 0.0
    %838 = vmatpush1.msra.mxu0 0.0
    %839 = vmatprep.subr.mxu0 0.0
    %840 = vmatpush1.msra.mxu0 0.0
    %841 = vmatprep.subr.mxu0 0.0
    %842 = vmatpush1.msra.mxu0 0.0
    %843 = vmatprep.subr.mxu0 0.0
    %844 = vmatpush1.msra.mxu0 0.0
    %845 = vmatprep.subr.mxu0 0.0
    %846 = vmatpush1.msra.mxu0 0.0
    %847 = vmatprep.subr.mxu0 0.0
    %848 = vmatpush1.msra.mxu0 %v727
    %849 = vmatprep.subr.mxu0 0.0
    %850 = vmatpush2.msra.mxu0 0.0
    %851 = vmatprep.subr.mxu0 0.0
    %852 = vmatpush2.msra.mxu0 0.0
    %853 = vmatprep.subr.mxu0 0.0
    %854 = vmatpush2.msra.mxu0 0.0
    %855 = vmatprep.subr.mxu0 0.0
    %856 = vmatpush2.msra.mxu0 0.0
    %857 = vmatprep.subr.mxu0 0.0
    %858 = vmatpush2.msra.mxu0 0.0
    %859 = vmatprep.subr.mxu0 0.0
    %860 = vmatpush2.msra.mxu0 0.0
    %861 = vmatprep.subr.mxu0 0.0
    %862 = vmatpush2.msra.mxu0 0.0
    %863 = vmatprep.subr.mxu0 0.0
    %864 = vmatpush2.msra.mxu0 0.0
    %865 = vmatprep.subr.mxu0 0.0
    %866 = vmatpush2.msra.mxu0 0.0
    %867 = vmatprep.subr.mxu0 0.0
    %868 = vmatpush2.msra.mxu0 0.0
    %869 = vmatprep.subr.mxu0 0.0
    %870 = vmatpush2.msra.mxu0 0.0
    %871 = vmatprep.subr.mxu0 0.0
    %872 = vmatpush2.msra.mxu0 0.0
    %873 = vmatprep.subr.mxu0 0.0
    %874 = vmatpush2.msra.mxu0 0.0
    %875 = vmatprep.subr.mxu0 0.0
    %876 = vmatpush2.msra.mxu0 0.0
    %877 = vmatprep.subr.mxu0 0.0
    %878 = vmatpush2.msra.mxu0 0.0
    %879 = vmatprep.subr.mxu0 0.0
    %880 = vmatpush2.msra.mxu0 0.0
    %881 = vmatprep.mubr.f32.mxu0 0.0
    %882 = vmatmul.mubr.f32.gmra.mxu0 %v815
    %v883 = vpop.f32.mrf.mxu0
    %v884 = vadd.f32 %v280, %v883
    %v885 = vpop.f32.mrf.mxu0
    %886 = vdwg.mxu0
    %v887 = vsel %vm301, %v884, 0.0
    %888 = vadd.xlane.f32.xlu0 %v887
    %v889 = vpop.xlane.xlu0 %888
    %v890 = vmul.f32 %v889, %v537
    %v891 = vsub.f32 %v884, %v890
    %v892 = vmul.f32 %v891, %v891
    %v893 = vsel %vm301, %v892, 0.0
    %894 = vadd.xlane.f32.xlu0 %v893
    %v895 = vpop.xlane.xlu0 %894
    %v896 = vmul.f32 %v895, %v537
    %v897 = vadd.f32 %v896, 1e-05
    %v898 = vrsqrt.pop %v897
    %v899 = vmul.f32 %v891, %v898
    %v900 = vmul.f32 %v899, %v292
    %v901 = vadd.f32 %v900, %v296
    %902 = vrot.lane.b32.xlu0 %v372, 80
    %v903 = vpop.permute.xlu0 %902
    %v904 = vsel %vm301, %v903, 0
    %906 = vmatprep.subr.mxu0 0.0
    %907 = vmatpush1.xpose.msra.mxu0 0.0
    %908 = vmatprep.subr.mxu0 0.0
    %909 = vmatpush1.xpose.msra.mxu0 0.0
    %910 = vmatprep.subr.mxu0 0.0
    %911 = vmatpush1.xpose.msra.mxu0 0.0
    %912 = vmatprep.subr.mxu0 0.0
    %913 = vmatpush1.xpose.msra.mxu0 0.0
    %914 = vmatprep.subr.mxu0 0.0
    %915 = vmatpush1.xpose.msra.mxu0 0.0
    %916 = vmatprep.subr.mxu0 0.0
    %917 = vmatpush1.xpose.msra.mxu0 0.0
    %918 = vmatprep.subr.mxu0 0.0
    %919 = vmatpush1.xpose.msra.mxu0 0.0
    %920 = vmatprep.subr.mxu0 0.0
    %921 = vmatpush1.xpose.msra.mxu0 0.0
    %922 = vmatprep.subr.mxu0 0.0
    %923 = vmatpush1.xpose.msra.mxu0 0.0
    %924 = vmatprep.subr.mxu0 0.0
    %925 = vmatpush1.xpose.msra.mxu0 0.0
    %926 = vmatprep.subr.mxu0 0.0
    %927 = vmatpush1.xpose.msra.mxu0 0.0
    %928 = vmatprep.subr.mxu0 0.0
    %929 = vmatpush1.xpose.msra.mxu0 0.0
    %930 = vmatprep.subr.mxu0 0.0
    %931 = vmatpush1.xpose.msra.mxu0 0.0
    %932 = vmatprep.subr.mxu0 0.0
    %933 = vmatpush1.xpose.msra.mxu0 0.0
    %934 = vmatprep.subr.mxu0 0.0
    %935 = vmatpush1.xpose.msra.mxu0 0.0
    %936 = vmatprep.subr.mxu0 0.0
    %937 = vmatpush1.xpose.msra.mxu0 %v904
    %938 = vmatprep.subr.mxu0 0.0
    %939 = vmatpush2.xpose.msra.mxu0 0.0
    %940 = vmatprep.subr.mxu0 0.0
    %941 = vmatpush2.xpose.msra.mxu0 0.0
    %942 = vmatprep.subr.mxu0 0.0
    %943 = vmatpush2.xpose.msra.mxu0 0.0
    %944 = vmatprep.subr.mxu0 0.0
    %945 = vmatpush2.xpose.msra.mxu0 0.0
    %946 = vmatprep.subr.mxu0 0.0
    %947 = vmatpush2.xpose.msra.mxu0 0.0
    %948 = vmatprep.subr.mxu0 0.0
    %949 = vmatpush2.xpose.msra.mxu0 0.0
    %950 = vmatprep.subr.mxu0 0.0
    %951 = vmatpush2.xpose.msra.mxu0 0.0
    %952 = vmatprep.subr.mxu0 0.0
    %953 = vmatpush2.xpose.msra.mxu0 0.0
    %954 = vmatprep.subr.mxu0 0.0
    %955 = vmatpush2.xpose.msra.mxu0 0.0
    %956 = vmatprep.subr.mxu0 0.0
    %957 = vmatpush2.xpose.msra.mxu0 0.0
    %958 = vmatprep.subr.mxu0 0.0
    %959 = vmatpush2.xpose.msra.mxu0 0.0
    %960 = vmatprep.subr.mxu0 0.0
    %961 = vmatpush2.xpose.msra.mxu0 0.0
    %962 = vmatprep.subr.mxu0 0.0
    %963 = vmatpush2.xpose.msra.mxu0 0.0
    %964 = vmatprep.subr.mxu0 0.0
    %965 = vmatpush2.xpose.msra.mxu0 0.0
    %966 = vmatprep.subr.mxu0 0.0
    %967 = vmatpush2.xpose.msra.mxu0 0.0
    %968 = vmatprep.subr.mxu0 0.0
    %969 = vmatpush2.xpose.msra.mxu0 0.0
    %970 = vmatprep.mubr.f32.mxu0 0.0
    %971 = vmatmul.mubr.f32.gmra.mxu0 %v904
    %v972 = vpop.f32.mrf.mxu0
    %v973 = vadd.f32 0.0, %v972
    %v974 = vpop.f32.mrf.mxu0
    %975 = vdwg.mxu0
    %v976 = vmul.f32 %v973, 0.25
    %v977 = vadd.f32 %v976, %v288
    %v978 = vsel %vm130, %v977, -inf
    %979 = vmax.xlane.f32.xlu0 %v978
    %v980 = vpop.xlane.xlu0 %979
    %v981 = vsub.f32 %v977, %v980
    %v982 = vmul.f32 %v981, 1.442695
    %v983 = vpow.pop %v982
    %v984 = vsel %vm130, %v983, 0.0
    %985 = vadd.xlane.f32.xlu0 %v984
    %v986 = vpop.xlane.xlu0 %985
    %v987 = vrcp.pop %v986
    %v988 = vmul.f32 %v983, %v987
    %v991 = vsel %vm130, %v988, 0
    %993 = vmatprep.subr.mxu0 0.0
    %994 = vmatpush1.msra.mxu0 0.0
    %995 = vmatprep.subr.mxu0 0.0
    %996 = vmatpush1.msra.mxu0 0.0
    %997 = vmatprep.subr.mxu0 0.0
    %998 = vmatpush1.msra.mxu0 0.0
    %999 = vmatprep.subr.mxu0 0.0
    %1000 = vmatpush1.msra.mxu0 0.0
    %1001 = vmatprep.subr.mxu0 0.0
    %1002 = vmatpush1.msra.mxu0 0.0
    %1003 = vmatprep.subr.mxu0 0.0
    %1004 = vmatpush1.msra.mxu0 0.0
    %1005 = vmatprep.subr.mxu0 0.0
    %1006 = vmatpush1.msra.mxu0 0.0
    %1007 = vmatprep.subr.mxu0 0.0
    %1008 = vmatpush1.msra.mxu0 0.0
    %1009 = vmatprep.subr.mxu0 0.0
    %1010 = vmatpush1.msra.mxu0 0.0
    %1011 = vmatprep.subr.mxu0 0.0
    %1012 = vmatpush1.msra.mxu0 0.0
    %1013 = vmatprep.subr.mxu0 0.0
    %1014 = vmatpush1.msra.mxu0 0.0
    %1015 = vmatprep.subr.mxu0 0.0
    %1016 = vmatpush1.msra.mxu0 0.0
    %1017 = vmatprep.subr.mxu0 0.0
    %1018 = vmatpush1.msra.mxu0 0.0
    %1019 = vmatprep.subr.mxu0 0.0
    %1020 = vmatpush1.msra.mxu0 0.0
    %1021 = vmatprep.subr.mxu0 0.0
    %1022 = vmatpush1.msra.mxu0 0.0
    %1023 = vmatprep.subr.mxu0 0.0
    %1024 = vmatpush1.msra.mxu0 %v903
    %1025 = vmatprep.subr.mxu0 0.0
    %1026 = vmatpush2.msra.mxu0 0.0
    %1027 = vmatprep.subr.mxu0 0.0
    %1028 = vmatpush2.msra.mxu0 0.0
    %1029 = vmatprep.subr.mxu0 0.0
    %1030 = vmatpush2.msra.mxu0 0.0
    %1031 = vmatprep.subr.mxu0 0.0
    %1032 = vmatpush2.msra.mxu0 0.0
    %1033 = vmatprep.subr.mxu0 0.0
    %1034 = vmatpush2.msra.mxu0 0.0
    %1035 = vmatprep.subr.mxu0 0.0
    %1036 = vmatpush2.msra.mxu0 0.0
    %1037 = vmatprep.subr.mxu0 0.0
    %1038 = vmatpush2.msra.mxu0 0.0
    %1039 = vmatprep.subr.mxu0 0.0
    %1040 = vmatpush2.msra.mxu0 0.0
    %1041 = vmatprep.subr.mxu0 0.0
    %1042 = vmatpush2.msra.mxu0 0.0
    %1043 = vmatprep.subr.mxu0 0.0
    %1044 = vmatpush2.msra.mxu0 0.0
    %1045 = vmatprep.subr.mxu0 0.0
    %1046 = vmatpush2.msra.mxu0 0.0
    %1047 = vmatprep.subr.mxu0 0.0
    %1048 = vmatpush2.msra.mxu0 0.0
    %1049 = vmatprep.subr.mxu0 0.0
    %1050 = vmatpush2.msra.mxu0 0.0
    %1051 = vmatprep.subr.mxu0 0.0
    %1052 = vmatpush2.msra.mxu0 0.0
    %1053 = vmatprep.subr.mxu0 0.0
    %1054 = vmatpush2.msra.mxu0 0.0
    %1055 = vmatprep.subr.mxu0 0.0
    %1056 = vmatpush2.msra.mxu0 0.0
    %1057 = vmatprep.mubr.f32.mxu0 0.0
    %1058 = vmatmul.mubr.f32.gmra.mxu0 %v991
    %v1059 = vpop.f32.mrf.mxu0
    %v1060 = vadd.f32 %v280, %v1059
    %v1061 = vpop.f32.mrf.mxu0
    %1062 = vdwg.mxu0
    %v1063 = vsel %vm301, %v1060, 0.0
    %1064 = vadd.xlane.f32.xlu0 %v1063
    %v1065 = vpop.xlane.xlu0 %1064
    %v1066 = vmul.f32 %v1065, %v537
    %v1067 = vsub.f32 %v1060, %v1066
    %v1068 = vmul.f32 %v1067, %v1067
    %v1069 = vsel %vm301, %v1068, 0.0
    %1070 = vadd.xlane.f32.xlu0 %v1069
    %v1071 = vpop.xlane.xlu0 %1070
    %v1072 = vmul.f32 %v1071, %v537
    %v1073 = vadd.f32 %v1072, 1e-05
    %v1074 = vrsqrt.pop %v1073
    %v1075 = vmul.f32 %v1067, %v1074
    %v1076 = vmul.f32 %v1075, %v292
    %v1077 = vadd.f32 %v1076, %v296
    %1079 = vrot.lane.b32.xlu0 %v725, 16
    %v1080 = vpop.permute.xlu0 %1079
    %1083 = vrot.lane.b32.xlu0 %v901, 32
    %v1084 = vpop.permute.xlu0 %1083
    %1087 = vrot.lane.b32.xlu0 %v1077, 48
    %v1088 = vpop.permute.xlu0 %1087
    %v1090 = vsel %vm301, %v549, %v1080
    %v1091 = vsel %vm209, %v1090, %v1084
    %vm1092 = vcmask 392192
    %v1093 = vsel %vm1092, %v1091, %v1088
    %v1094 = vlaneseq
    %v1095 = vshrl.u32 %v1094, 7
    %v1096 = vsub.s32 0, %v1095
    %v1097 = vrot.slane %v59, %v1096
    %vm1098 = vcmask 523264
    %v1100 = vsel %vm1098, %v1093, 0
    %1102 = vmatprep.subr.mxu0 0.0
    %1103 = vmatpush1.msra.mxu0 0.0
    %1104 = vmatprep.subr.mxu0 0.0
    %1105 = vmatpush1.msra.mxu0 0.0
    %1106 = vmatprep.subr.mxu0 0.0
    %1107 = vmatpush1.msra.mxu0 0.0
    %1108 = vmatprep.subr.mxu0 0.0
    %1109 = vmatpush1.msra.mxu0 0.0
    %1110 = vmatprep.subr.mxu0 0.0
    %1111 = vmatpush1.msra.mxu0 0.0
    %1112 = vmatprep.subr.mxu0 0.0
    %1113 = vmatpush1.msra.mxu0 0.0
    %1114 = vmatprep.subr.mxu0 0.0
    %1115 = vmatpush1.msra.mxu0 0.0
    %1116 = vmatprep.subr.mxu0 0.0
    %1117 = vmatpush1.msra.mxu0 0.0
    %1118 = vmatprep.subr.mxu0 0.0
    %1119 = vmatpush1.msra.mxu0 %v58
    %1120 = vmatprep.subr.mxu0 0.0
    %1121 = vmatpush1.msra.mxu0 %v57
    %1122 = vmatprep.subr.mxu0 0.0
    %1123 = vmatpush1.msra.mxu0 %v56
    %1124 = vmatprep.subr.mxu0 0.0
    %1125 = vmatpush1.msra.mxu0 %v55
    %1126 = vmatprep.subr.mxu0 0.0
    %1127 = vmatpush1.msra.mxu0 %v54
    %1128 = vmatprep.subr.mxu0 0.0
    %1129 = vmatpush1.msra.mxu0 %v53
    %1130 = vmatprep.subr.mxu0 0.0
    %1131 = vmatpush1.msra.mxu0 %v52
    %1132 = vmatprep.subr.mxu0 0.0
    %1133 = vmatpush1.msra.mxu0 %v51
    %1134 = vmatprep.subr.mxu0 0.0
    %1135 = vmatpush2.msra.mxu0 0.0
    %1136 = vmatprep.subr.mxu0 0.0
    %1137 = vmatpush2.msra.mxu0 0.0
    %1138 = vmatprep.subr.mxu0 0.0
    %1139 = vmatpush2.msra.mxu0 0.0
    %1140 = vmatprep.subr.mxu0 0.0
    %1141 = vmatpush2.msra.mxu0 0.0
    %1142 = vmatprep.subr.mxu0 0.0
    %1143 = vmatpush2.msra.mxu0 0.0
    %1144 = vmatprep.subr.mxu0 0.0
    %1145 = vmatpush2.msra.mxu0 0.0
    %1146 = vmatprep.subr.mxu0 0.0
    %1147 = vmatpush2.msra.mxu0 0.0
    %1148 = vmatprep.subr.mxu0 0.0
    %1149 = vmatpush2.msra.mxu0 0.0
    %1150 = vmatprep.subr.mxu0 0.0
    %1151 = vmatpush2.msra.mxu0 0.0
    %1152 = vmatprep.subr.mxu0 0.0
    %1153 = vmatpush2.msra.mxu0 0.0
    %1154 = vmatprep.subr.mxu0 0.0
    %1155 = vmatpush2.msra.mxu0 0.0
    %1156 = vmatprep.subr.mxu0 0.0
    %1157 = vmatpush2.msra.mxu0 0.0
    %1158 = vmatprep.subr.mxu0 0.0
    %1159 = vmatpush2.msra.mxu0 0.0
    %1160 = vmatprep.subr.mxu0 0.0
    %1161 = vmatpush2.msra.mxu0 0.0
    %1162 = vmatprep.subr.mxu0 0.0
    %1163 = vmatpush2.msra.mxu0 0.0
    %1164 = vmatprep.subr.mxu0 0.0
    %1165 = vmatpush2.msra.mxu0 0.0
    %1166 = vmatprep.mubr.f32.mxu0 0.0
    %1167 = vmatmul.mubr.f32.gmra.mxu0 %v1100
    %v1168 = vpop.f32.mrf.mxu0
    %v1169 = vadd.f32 %v1097, %v1168
    %v1170 = vpop.f32.mrf.mxu0
    %1171 = vdwg.mxu0
    %v1172 = vlaneseq
    %v1173 = vshrl.u32 %v1172, 7
    %v1174 = vsub.s32 0, %v1173
    %v1175 = vrot.slane %v62, %v1174
    %v1177 = vsel %vm301, %v1169, 0
    %1179 = vmatprep.subr.mxu0 0.0
    %1180 = vmatpush1.msra.mxu0 0.0
    %1181 = vmatprep.subr.mxu0 0.0
    %1182 = vmatpush1.msra.mxu0 0.0
    %1183 = vmatprep.subr.mxu0 0.0
    %1184 = vmatpush1.msra.mxu0 0.0
    %1185 = vmatprep.subr.mxu0 0.0
    %1186 = vmatpush1.msra.mxu0 0.0
    %1187 = vmatprep.subr.mxu0 0.0
    %1188 = vmatpush1.msra.mxu0 0.0
    %1189 = vmatprep.subr.mxu0 0.0
    %1190 = vmatpush1.msra.mxu0 0.0
    %1191 = vmatprep.subr.mxu0 0.0
    %1192 = vmatpush1.msra.mxu0 0.0
    %1193 = vmatprep.subr.mxu0 0.0
    %1194 = vmatpush1.msra.mxu0 0.0
    %1195 = vmatprep.subr.mxu0 0.0
    %1196 = vmatpush1.msra.mxu0 0.0
    %1197 = vmatprep.subr.mxu0 0.0
    %1198 = vmatpush1.msra.mxu0 0.0
    %1199 = vmatprep.subr.mxu0 0.0
    %1200 = vmatpush1.msra.mxu0 0.0
    %1201 = vmatprep.subr.mxu0 0.0
    %1202 = vmatpush1.msra.mxu0 0.0
    %1203 = vmatprep.subr.mxu0 0.0
    %1204 = vmatpush1.msra.mxu0 0.0
    %1205 = vmatprep.subr.mxu0 0.0
    %1206 = vmatpush1.msra.mxu0 0.0
    %1207 = vmatprep.subr.mxu0 0.0
    %1208 = vmatpush1.msra.mxu0 %v61
    %1209 = vmatprep.subr.mxu0 0.0
    %1210 = vmatpush1.msra.mxu0 %v60
    %1211 = vmatprep.subr.mxu0 0.0
    %1212 = vmatpush2.msra.mxu0 0.0
    %1213 = vmatprep.subr.mxu0 0.0
    %1214 = vmatpush2.msra.mxu0 0.0
    %1215 = vmatprep.subr.mxu0 0.0
    %1216 = vmatpush2.msra.mxu0 0.0
    %1217 = vmatprep.subr.mxu0 0.0
    %1218 = vmatpush2.msra.mxu0 0.0
    %1219 = vmatprep.subr.mxu0 0.0
    %1220 = vmatpush2.msra.mxu0 0.0
    %1221 = vmatprep.subr.mxu0 0.0
    %1222 = vmatpush2.msra.mxu0 0.0
    %1223 = vmatprep.subr.mxu0 0.0
    %1224 = vmatpush2.msra.mxu0 0.0
    %1225 = vmatprep.subr.mxu0 0.0
    %1226 = vmatpush2.msra.mxu0 0.0
    %1227 = vmatprep.subr.mxu0 0.0
    %1228 = vmatpush2.msra.mxu0 0.0
    %1229 = vmatprep.subr.mxu0 0.0
    %1230 = vmatpush2.msra.mxu0 0.0
    %1231 = vmatprep.subr.mxu0 0.0
    %1232 = vmatpush2.msra.mxu0 0.0
    %1233 = vmatprep.subr.mxu0 0.0
    %1234 = vmatpush2.msra.mxu0 0.0
    %1235 = vmatprep.subr.mxu0 0.0
    %1236 = vmatpush2.msra.mxu0 0.0
    %1237 = vmatprep.subr.mxu0 0.0
    %1238 = vmatpush2.msra.mxu0 0.0
    %1239 = vmatprep.subr.mxu0 0.0
    %1240 = vmatpush2.msra.mxu0 0.0
    %1241 = vmatprep.subr.mxu0 0.0
    %1242 = vmatpush2.msra.mxu0 0.0
    %1243 = vmatprep.mubr.f32.mxu0 0.0
    %1244 = vmatmul.mubr.f32.gmra.mxu0 %v1177
    %v1245 = vpop.f32.mrf.mxu0
    %v1246 = vadd.f32 %v1175, %v1245
    %v1247 = vpop.f32.mrf.mxu0
    %1248 = vdwg.mxu0
    %v1249 = vmax.f32 %v1246, 0.0
    %v1250 = vlaneseq
    %v1251 = vshrl.u32 %v1250, 7
    %v1252 = vsub.s32 0, %v1251
    %v1253 = vrot.slane %v65, %v1252
    %v1255 = vsel %vm301, %v1249, 0
    %1257 = vmatprep.subr.mxu0 0.0
    %1258 = vmatpush1.msra.mxu0 0.0
    %1259 = vmatprep.subr.mxu0 0.0
    %1260 = vmatpush1.msra.mxu0 0.0
    %1261 = vmatprep.subr.mxu0 0.0
    %1262 = vmatpush1.msra.mxu0 0.0
    %1263 = vmatprep.subr.mxu0 0.0
    %1264 = vmatpush1.msra.mxu0 0.0
    %1265 = vmatprep.subr.mxu0 0.0
    %1266 = vmatpush1.msra.mxu0 0.0
    %1267 = vmatprep.subr.mxu0 0.0
    %1268 = vmatpush1.msra.mxu0 0.0
    %1269 = vmatprep.subr.mxu0 0.0
    %1270 = vmatpush1.msra.mxu0 0.0
    %1271 = vmatprep.subr.mxu0 0.0
    %1272 = vmatpush1.msra.mxu0 0.0
    %1273 = vmatprep.subr.mxu0 0.0
    %1274 = vmatpush1.msra.mxu0 0.0
    %1275 = vmatprep.subr.mxu0 0.0
    %1276 = vmatpush1.msra.mxu0 0.0
    %1277 = vmatprep.subr.mxu0 0.0
    %1278 = vmatpush1.msra.mxu0 0.0
    %1279 = vmatprep.subr.mxu0 0.0
    %1280 = vmatpush1.msra.mxu0 0.0
    %1281 = vmatprep.subr.mxu0 0.0
    %1282 = vmatpush1.msra.mxu0 0.0
    %1283 = vmatprep.subr.mxu0 0.0
    %1284 = vmatpush1.msra.mxu0 0.0
    %1285 = vmatprep.subr.mxu0 0.0
    %1286 = vmatpush1.msra.mxu0 %v64
    %1287 = vmatprep.subr.mxu0 0.0
    %1288 = vmatpush1.msra.mxu0 %v63
    %1289 = vmatprep.subr.mxu0 0.0
    %1290 = vmatpush2.msra.mxu0 0.0
    %1291 = vmatprep.subr.mxu0 0.0
    %1292 = vmatpush2.msra.mxu0 0.0
    %1293 = vmatprep.subr.mxu0 0.0
    %1294 = vmatpush2.msra.mxu0 0.0
    %1295 = vmatprep.subr.mxu0 0.0
    %1296 = vmatpush2.msra.mxu0 0.0
    %1297 = vmatprep.subr.mxu0 0.0
    %1298 = vmatpush2.msra.mxu0 0.0
    %1299 = vmatprep.subr.mxu0 0.0
    %1300 = vmatpush2.msra.mxu0 0.0
    %1301 = vmatprep.subr.mxu0 0.0
    %1302 = vmatpush2.msra.mxu0 0.0
    %1303 = vmatprep.subr.mxu0 0.0
    %1304 = vmatpush2.msra.mxu0 0.0
    %1305 = vmatprep.subr.mxu0 0.0
    %1306 = vmatpush2.msra.mxu0 0.0
    %1307 = vmatprep.subr.mxu0 0.0
    %1308 = vmatpush2.msra.mxu0 0.0
    %1309 = vmatprep.subr.mxu0 0.0
    %1310 = vmatpush2.msra.mxu0 0.0
    %1311 = vmatprep.subr.mxu0 0.0
    %1312 = vmatpush2.msra.mxu0 0.0
    %1313 = vmatprep.subr.mxu0 0.0
    %1314 = vmatpush2.msra.mxu0 0.0
    %1315 = vmatprep.subr.mxu0 0.0
    %1316 = vmatpush2.msra.mxu0 0.0
    %1317 = vmatprep.subr.mxu0 0.0
    %1318 = vmatpush2.msra.mxu0 0.0
    %1319 = vmatprep.subr.mxu0 0.0
    %1320 = vmatpush2.msra.mxu0 0.0
    %1321 = vmatprep.mubr.f32.mxu0 0.0
    %1322 = vmatmul.mubr.f32.gmra.mxu0 %v1255
    %v1323 = vpop.f32.mrf.mxu0
    %v1324 = vadd.f32 %v1253, %v1323
    %v1325 = vpop.f32.mrf.mxu0
    %1326 = vdwg.mxu0
    %v1327 = vadd.f32 %v1324, %v1169
    %v1328 = vsel %vm301, %v1327, 0.0
    %1329 = vadd.xlane.f32.xlu0 %v1328
    %v1330 = vpop.xlane.xlu0 %1329
    %v1331 = vmul.f32 %v1330, %v537
    %v1332 = vsub.f32 %v1327, %v1331
    %v1333 = vmul.f32 %v1332, %v1332
    %v1334 = vsel %vm301, %v1333, 0.0
    %1335 = vadd.xlane.f32.xlu0 %v1334
    %v1336 = vpop.xlane.xlu0 %1335
    %v1337 = vmul.f32 %v1336, %v537
    %v1338 = vadd.f32 %v1337, 1e-05
    %v1339 = vrsqrt.pop %v1338
    %v1340 = vmul.f32 %v1332, %v1339
    %v1341 = vmul.f32 %v1340, %v292
    %v1342 = vadd.f32 %v1341, %v296
    %v1343 = vlaneseq
    %v1344 = vshrl.u32 %v1343, 7
    %v1345 = vsub.s32 0, %v1344
    %v1346 = vrot.slane %v86, %v1345
    %v1347 = vlaneseq
    %v1348 = vshrl.u32 %v1347, 7
    %v1349 = vsub.s32 0, %v1348
    %v1350 = vrot.slane %v87, %v1349
    %v1351 = vlaneseq
    %v1352 = vshrl.u32 %v1351, 7
    %v1353 = vsub.s32 0, %v1352
    %v1354 = vrot.slane %v70, %v1353
    %v1356 = vsel %vm301, %v1342, 0
    %1358 = vmatprep.subr.mxu0 0.0
    %1359 = vmatpush1.msra.mxu0 0.0
    %1360 = vmatprep.subr.mxu0 0.0
    %1361 = vmatpush1.msra.mxu0 0.0
    %1362 = vmatprep.subr.mxu0 0.0
    %1363 = vmatpush1.msra.mxu0 0.0
    %1364 = vmatprep.subr.mxu0 0.0
    %1365 = vmatpush1.msra.mxu0 0.0
    %1366 = vmatprep.subr.mxu0 0.0
    %1367 = vmatpush1.msra.mxu0 0.0
    %1368 = vmatprep.subr.mxu0 0.0
    %1369 = vmatpush1.msra.mxu0 0.0
    %1370 = vmatprep.subr.mxu0 0.0
    %1371 = vmatpush1.msra.mxu0 0.0
    %1372 = vmatprep.subr.mxu0 0.0
    %1373 = vmatpush1.msra.mxu0 0.0
    %1374 = vmatprep.subr.mxu0 0.0
    %1375 = vmatpush1.msra.mxu0 0.0
    %1376 = vmatprep.subr.mxu0 0.0
    %1377 = vmatpush1.msra.mxu0 0.0
    %1378 = vmatprep.subr.mxu0 0.0
    %1379 = vmatpush1.msra.mxu0 0.0
    %1380 = vmatprep.subr.mxu0 0.0
    %1381 = vmatpush1.msra.mxu0 0.0
    %1382 = vmatprep.subr.mxu0 0.0
    %1383 = vmatpush1.msra.mxu0 0.0
    %1384 = vmatprep.subr.mxu0 0.0
    %1385 = vmatpush1.msra.mxu0 0.0
    %1386 = vmatprep.subr.mxu0 0.0
    %1387 = vmatpush1.msra.mxu0 %v69
    %1388 = vmatprep.subr.mxu0 0.0
    %1389 = vmatpush1.msra.mxu0 %v68
    %1390 = vmatprep.subr.mxu0 0.0
    %1391 = vmatpush2.msra.mxu0 0.0
    %1392 = vmatprep.subr.mxu0 0.0
    %1393 = vmatpush2.msra.mxu0 0.0
    %1394 = vmatprep.subr.mxu0 0.0
    %1395 = vmatpush2.msra.mxu0 0.0
    %1396 = vmatprep.subr.mxu0 0.0
    %1397 = vmatpush2.msra.mxu0 0.0
    %1398 = vmatprep.subr.mxu0 0.0
    %1399 = vmatpush2.msra.mxu0 0.0
    %1400 = vmatprep.subr.mxu0 0.0
    %1401 = vmatpush2.msra.mxu0 0.0
    %1402 = vmatprep.subr.mxu0 0.0
    %1403 = vmatpush2.msra.mxu0 0.0
    %1404 = vmatprep.subr.mxu0 0.0
    %1405 = vmatpush2.msra.mxu0 0.0
    %1406 = vmatprep.subr.mxu0 0.0
    %1407 = vmatpush2.msra.mxu0 0.0
    %1408 = vmatprep.subr.mxu0 0.0
    %1409 = vmatpush2.msra.mxu0 0.0
    %1410 = vmatprep.subr.mxu0 0.0
    %1411 = vmatpush2.msra.mxu0 0.0
    %1412 = vmatprep.subr.mxu0 0.0
    %1413 = vmatpush2.msra.mxu0 0.0
    %1414 = vmatprep.subr.mxu0 0.0
    %1415 = vmatpush2.msra.mxu0 0.0
    %1416 = vmatprep.subr.mxu0 0.0
    %1417 = vmatpush2.msra.mxu0 0.0
    %1418 = vmatprep.subr.mxu0 0.0
    %1419 = vmatpush2.msra.mxu0 0.0
    %1420 = vmatprep.subr.mxu0 0.0
    %1421 = vmatpush2.msra.mxu0 0.0
    %1422 = vmatprep.mubr.f32.mxu0 0.0
    %1423 = vmatmul.mubr.f32.gmra.mxu0 %v1356
    %v1424 = vpop.f32.mrf.mxu0
    %v1425 = vadd.f32 %v1354, %v1424
    %v1426 = vpop.f32.mrf.mxu0
    %1427 = vdwg.mxu0
    %v1429 = vsel %vm301, %v1425, 0
    %1431 = vmatprep.subr.mxu0 0.0
    %1432 = vmatpush1.xpose.msra.mxu0 0.0
    %1433 = vmatprep.subr.mxu0 0.0
    %1434 = vmatpush1.xpose.msra.mxu0 0.0
    %1435 = vmatprep.subr.mxu0 0.0
    %1436 = vmatpush1.xpose.msra.mxu0 0.0
    %1437 = vmatprep.subr.mxu0 0.0
    %1438 = vmatpush1.xpose.msra.mxu0 0.0
    %1439 = vmatprep.subr.mxu0 0.0
    %1440 = vmatpush1.xpose.msra.mxu0 0.0
    %1441 = vmatprep.subr.mxu0 0.0
    %1442 = vmatpush1.xpose.msra.mxu0 0.0
    %1443 = vmatprep.subr.mxu0 0.0
    %1444 = vmatpush1.xpose.msra.mxu0 0.0
    %1445 = vmatprep.subr.mxu0 0.0
    %1446 = vmatpush1.xpose.msra.mxu0 0.0
    %1447 = vmatprep.subr.mxu0 0.0
    %1448 = vmatpush1.xpose.msra.mxu0 0.0
    %1449 = vmatprep.subr.mxu0 0.0
    %1450 = vmatpush1.xpose.msra.mxu0 0.0
    %1451 = vmatprep.subr.mxu0 0.0
    %1452 = vmatpush1.xpose.msra.mxu0 0.0
    %1453 = vmatprep.subr.mxu0 0.0
    %1454 = vmatpush1.xpose.msra.mxu0 0.0
    %1455 = vmatprep.subr.mxu0 0.0
    %1456 = vmatpush1.xpose.msra.mxu0 0.0
    %1457 = vmatprep.subr.mxu0 0.0
    %1458 = vmatpush1.xpose.msra.mxu0 0.0
    %1459 = vmatprep.subr.mxu0 0.0
    %1460 = vmatpush1.xpose.msra.mxu0 0.0
    %1461 = vmatprep.subr.mxu0 0.0
    %1462 = vmatpush1.xpose.msra.mxu0 %v1429
    %1463 = vmatprep.subr.mxu0 0.0
    %1464 = vmatpush2.xpose.msra.mxu0 0.0
    %1465 = vmatprep.subr.mxu0 0.0
    %1466 = vmatpush2.xpose.msra.mxu0 0.0
    %1467 = vmatprep.subr.mxu0 0.0
    %1468 = vmatpush2.xpose.msra.mxu0 0.0
    %1469 = vmatprep.subr.mxu0 0.0
    %1470 = vmatpush2.xpose.msra.mxu0 0.0
    %1471 = vmatprep.subr.mxu0 0.0
    %1472 = vmatpush2.xpose.msra.mxu0 0.0
    %1473 = vmatprep.subr.mxu0 0.0
    %1474 = vmatpush2.xpose.msra.mxu0 0.0
    %1475 = vmatprep.subr.mxu0 0.0
    %1476 = vmatpush2.xpose.msra.mxu0 0.0
    %1477 = vmatprep.subr.mxu0 0.0
    %1478 = vmatpush2.xpose.msra.mxu0 0.0
    %1479 = vmatprep.subr.mxu0 0.0
    %1480 = vmatpush2.xpose.msra.mxu0 0.0
    %1481 = vmatprep.subr.mxu0 0.0
    %1482 = vmatpush2.xpose.msra.mxu0 0.0
    %1483 = vmatprep.subr.mxu0 0.0
    %1484 = vmatpush2.xpose.msra.mxu0 0.0
    %1485 = vmatprep.subr.mxu0 0.0
    %1486 = vmatpush2.xpose.msra.mxu0 0.0
    %1487 = vmatprep.subr.mxu0 0.0
    %1488 = vmatpush2.xpose.msra.mxu0 0.0
    %1489 = vmatprep.subr.mxu0 0.0
    %1490 = vmatpush2.xpose.msra.mxu0 0.0
    %1491 = vmatprep.subr.mxu0 0.0
    %1492 = vmatpush2.xpose.msra.mxu0 0.0
    %1493 = vmatprep.subr.mxu0 0.0
    %1494 = vmatpush2.xpose.msra.mxu0 0.0
    %1495 = vmatprep.mubr.f32.mxu0 0.0
    %1496 = vmatmul.mubr.f32.gmra.mxu0 %v1429
    %v1497 = vpop.f32.mrf.mxu0
    %v1498 = vadd.f32 0.0, %v1497
    %v1499 = vpop.f32.mrf.mxu0
    %1500 = vdwg.mxu0
    %v1501 = vmul.f32 %v1498, 0.25
    %v1502 = vadd.f32 %v1501, %v288
    %v1503 = vsel %vm130, %v1502, -inf
    %1504 = vmax.xlane.f32.xlu0 %v1503
    %v1505 = vpop.xlane.xlu0 %1504
    %v1506 = vsub.f32 %v1502, %v1505
    %v1507 = vmul.f32 %v1506, 1.442695
    %v1508 = vpow.pop %v1507
    %v1509 = vsel %vm130, %v1508, 0.0
    %1510 = vadd.xlane.f32.xlu0 %v1509
    %v1511 = vpop.xlane.xlu0 %1510
    %v1512 = vrcp.pop %v1511
    %v1513 = vmul.f32 %v1508, %v1512
    %v1515 = vsel %vm130, %v1513, 0
    %1517 = vmatprep.subr.mxu0 0.0
    %1518 = vmatpush1.msra.mxu0 0.0
    %1519 = vmatprep.subr.mxu0 0.0
    %1520 = vmatpush1.msra.mxu0 0.0
    %1521 = vmatprep.subr.mxu0 0.0
    %1522 = vmatpush1.msra.mxu0 0.0
    %1523 = vmatprep.subr.mxu0 0.0
    %1524 = vmatpush1.msra.mxu0 0.0
    %1525 = vmatprep.subr.mxu0 0.0
    %1526 = vmatpush1.msra.mxu0 0.0
    %1527 = vmatprep.subr.mxu0 0.0
    %1528 = vmatpush1.msra.mxu0 0.0
    %1529 = vmatprep.subr.mxu0 0.0
    %1530 = vmatpush1.msra.mxu0 0.0
    %1531 = vmatprep.subr.mxu0 0.0
    %1532 = vmatpush1.msra.mxu0 0.0
    %1533 = vmatprep.subr.mxu0 0.0
    %1534 = vmatpush1.msra.mxu0 0.0
    %1535 = vmatprep.subr.mxu0 0.0
    %1536 = vmatpush1.msra.mxu0 0.0
    %1537 = vmatprep.subr.mxu0 0.0
    %1538 = vmatpush1.msra.mxu0 0.0
    %1539 = vmatprep.subr.mxu0 0.0
    %1540 = vmatpush1.msra.mxu0 0.0
    %1541 = vmatprep.subr.mxu0 0.0
    %1542 = vmatpush1.msra.mxu0 0.0
    %1543 = vmatprep.subr.mxu0 0.0
    %1544 = vmatpush1.msra.mxu0 0.0
    %1545 = vmatprep.subr.mxu0 0.0
    %1546 = vmatpush1.msra.mxu0 0.0
    %1547 = vmatprep.subr.mxu0 0.0
    %1548 = vmatpush1.msra.mxu0 %v1425
    %1549 = vmatprep.subr.mxu0 0.0
    %1550 = vmatpush2.msra.mxu0 0.0
    %1551 = vmatprep.subr.mxu0 0.0
    %1552 = vmatpush2.msra.mxu0 0.0
    %1553 = vmatprep.subr.mxu0 0.0
    %1554 = vmatpush2.msra.mxu0 0.0
    %1555 = vmatprep.subr.mxu0 0.0
    %1556 = vmatpush2.msra.mxu0 0.0
    %1557 = vmatprep.subr.mxu0 0.0
    %1558 = vmatpush2.msra.mxu0 0.0
    %1559 = vmatprep.subr.mxu0 0.0
    %1560 = vmatpush2.msra.mxu0 0.0
    %1561 = vmatprep.subr.mxu0 0.0
    %1562 = vmatpush2.msra.mxu0 0.0
    %1563 = vmatprep.subr.mxu0 0.0
    %1564 = vmatpush2.msra.mxu0 0.0
    %1565 = vmatprep.subr.mxu0 0.0
    %1566 = vmatpush2.msra.mxu0 0.0
    %1567 = vmatprep.subr.mxu0 0.0
    %1568 = vmatpush2.msra.mxu0 0.0
    %1569 = vmatprep.subr.mxu0 0.0
    %1570 = vmatpush2.msra.mxu0 0.0
    %1571 = vmatprep.subr.mxu0 0.0
    %1572 = vmatpush2.msra.mxu0 0.0
    %1573 = vmatprep.subr.mxu0 0.0
    %1574 = vmatpush2.msra.mxu0 0.0
    %1575 = vmatprep.subr.mxu0 0.0
    %1576 = vmatpush2.msra.mxu0 0.0
    %1577 = vmatprep.subr.mxu0 0.0
    %1578 = vmatpush2.msra.mxu0 0.0
    %1579 = vmatprep.subr.mxu0 0.0
    %1580 = vmatpush2.msra.mxu0 0.0
    %1581 = vmatprep.mubr.f32.mxu0 0.0
    %1582 = vmatmul.mubr.f32.gmra.mxu0 %v1515
    %v1583 = vpop.f32.mrf.mxu0
    %v1584 = vadd.f32 %v1342, %v1583
    %v1585 = vpop.f32.mrf.mxu0
    %1586 = vdwg.mxu0
    %v1587 = vsel %vm301, %v1584, 0.0
    %1588 = vadd.xlane.f32.xlu0 %v1587
    %v1589 = vpop.xlane.xlu0 %1588
    %v1590 = vmul.f32 %v1589, %v537
    %v1591 = vsub.f32 %v1584, %v1590
    %v1592 = vmul.f32 %v1591, %v1591
    %v1593 = vsel %vm301, %v1592, 0.0
    %1594 = vadd.xlane.f32.xlu0 %v1593
    %v1595 = vpop.xlane.xlu0 %1594
    %v1596 = vmul.f32 %v1595, %v537
    %v1597 = vadd.f32 %v1596, 1e-05
    %v1598 = vrsqrt.pop %v1597
    %v1599 = vmul.f32 %v1591, %v1598
    %v1600 = vmul.f32 %v1599, %v1346
    %v1601 = vadd.f32 %v1600, %v1350
    %1602 = vrot.lane.b32.xlu0 %v1425, 112
    %v1603 = vpop.permute.xlu0 %1602
    %v1604 = vsel %vm301, %v1603, 0
    %1606 = vmatprep.subr.mxu0 0.0
    %1607 = vmatpush1.xpose.msra.mxu0 0.0
    %1608 = vmatprep.subr.mxu0 0.0
    %1609 = vmatpush1.xpose.msra.mxu0 0.0
    %1610 = vmatprep.subr.mxu0 0.0
    %1611 = vmatpush1.xpose.msra.mxu0 0.0
    %1612 = vmatprep.subr.mxu0 0.0
    %1613 = vmatpush1.xpose.msra.mxu0 0.0
    %1614 = vmatprep.subr.mxu0 0.0
    %1615 = vmatpush1.xpose.msra.mxu0 0.0
    %1616 = vmatprep.subr.mxu0 0.0
    %1617 = vmatpush1.xpose.msra.mxu0 0.0
    %1618 = vmatprep.subr.mxu0 0.0
    %1619 = vmatpush1.xpose.msra.mxu0 0.0
    %1620 = vmatprep.subr.mxu0 0.0
    %1621 = vmatpush1.xpose.msra.mxu0 0.0
    %1622 = vmatprep.subr.mxu0 0.0
    %1623 = vmatpush1.xpose.msra.mxu0 0.0
    %1624 = vmatprep.subr.mxu0 0.0
    %1625 = vmatpush1.xpose.msra.mxu0 0.0
    %1626 = vmatprep.subr.mxu0 0.0
    %1627 = vmatpush1.xpose.msra.mxu0 0.0
    %1628 = vmatprep.subr.mxu0 0.0
    %1629 = vmatpush1.xpose.msra.mxu0 0.0
    %1630 = vmatprep.subr.mxu0 0.0
    %1631 = vmatpush1.xpose.msra.mxu0 0.0
    %1632 = vmatprep.subr.mxu0 0.0
    %1633 = vmatpush1.xpose.msra.mxu0 0.0
    %1634 = vmatprep.subr.mxu0 0.0
    %1635 = vmatpush1.xpose.msra.mxu0 0.0
    %1636 = vmatprep.subr.mxu0 0.0
    %1637 = vmatpush1.xpose.msra.mxu0 %v1604
    %1638 = vmatprep.subr.mxu0 0.0
    %1639 = vmatpush2.xpose.msra.mxu0 0.0
    %1640 = vmatprep.subr.mxu0 0.0
    %1641 = vmatpush2.xpose.msra.mxu0 0.0
    %1642 = vmatprep.subr.mxu0 0.0
    %1643 = vmatpush2.xpose.msra.mxu0 0.0
    %1644 = vmatprep.subr.mxu0 0.0
    %1645 = vmatpush2.xpose.msra.mxu0 0.0
    %1646 = vmatprep.subr.mxu0 0.0
    %1647 = vmatpush2.xpose.msra.mxu0 0.0
    %1648 = vmatprep.subr.mxu0 0.0
    %1649 = vmatpush2.xpose.msra.mxu0 0.0
    %1650 = vmatprep.subr.mxu0 0.0
    %1651 = vmatpush2.xpose.msra.mxu0 0.0
    %1652 = vmatprep.subr.mxu0 0.0
    %1653 = vmatpush2.xpose.msra.mxu0 0.0
    %1654 = vmatprep.subr.mxu0 0.0
    %1655 = vmatpush2.xpose.msra.mxu0 0.0
    %1656 = vmatprep.subr.mxu0 0.0
    %1657 = vmatpush2.xpose.msra.mxu0 0.0
    %1658 = vmatprep.subr.mxu0 0.0
    %1659 = vmatpush2.xpose.msra.mxu0 0.0
    %1660 = vmatprep.subr.mxu0 0.0
    %1661 = vmatpush2.xpose.msra.mxu0 0.0
    %1662 = vmatprep.subr.mxu0 0.0
    %1663 = vmatpush2.xpose.msra.mxu0 0.0
    %1664 = vmatprep.subr.mxu0 0.0
    %1665 = vmatpush2.xpose.msra.mxu0 0.0
    %1666 = vmatprep.subr.mxu0 0.0
    %1667 = vmatpush2.xpose.msra.mxu0 0.0
    %1668 = vmatprep.subr.mxu0 0.0
    %1669 = vmatpush2.xpose.msra.mxu0 0.0
    %1670 = vmatprep.mubr.f32.mxu0 0.0
    %1671 = vmatmul.mubr.f32.gmra.mxu0 %v1604
    %v1672 = vpop.f32.mrf.mxu0
    %v1673 = vadd.f32 0.0, %v1672
    %v1674 = vpop.f32.mrf.mxu0
    %1675 = vdwg.mxu0
    %v1676 = vmul.f32 %v1673, 0.25
    %v1677 = vadd.f32 %v1676, %v288
    %v1678 = vsel %vm130, %v1677, -inf
    %1679 = vmax.xlane.f32.xlu0 %v1678
    %v1680 = vpop.xlane.xlu0 %1679
    %v1681 = vsub.f32 %v1677, %v1680
    %v1682 = vmul.f32 %v1681, 1.442695
    %v1683 = vpow.pop %v1682
    %v1684 = vsel %vm130, %v1683, 0.0
    %1685 = vadd.xlane.f32.xlu0 %v1684
    %v1686 = vpop.xlane.xlu0 %1685
    %v1687 = vrcp.pop %v1686
    %v1688 = vmul.f32 %v1683, %v1687
    %v1691 = vsel %vm130, %v1688, 0
    %1693 = vmatprep.subr.mxu0 0.0
    %1694 = vmatpush1.msra.mxu0 0.0
    %1695 = vmatprep.subr.mxu0 0.0
    %1696 = vmatpush1.msra.mxu0 0.0
    %1697 = vmatprep.subr.mxu0 0.0
    %1698 = vmatpush1.msra.mxu0 0.0
    %1699 = vmatprep.subr.mxu0 0.0
    %1700 = vmatpush1.msra.mxu0 0.0
    %1701 = vmatprep.subr.mxu0 0.0
    %1702 = vmatpush1.msra.mxu0 0.0
    %1703 = vmatprep.subr.mxu0 0.0
    %1704 = vmatpush1.msra.mxu0 0.0
    %1705 = vmatprep.subr.mxu0 0.0
    %1706 = vmatpush1.msra.mxu0 0.0
    %1707 = vmatprep.subr.mxu0 0.0
    %1708 = vmatpush1.msra.mxu0 0.0
    %1709 = vmatprep.subr.mxu0 0.0
    %1710 = vmatpush1.msra.mxu0 0.0
    %1711 = vmatprep.subr.mxu0 0.0
    %1712 = vmatpush1.msra.mxu0 0.0
    %1713 = vmatprep.subr.mxu0 0.0
    %1714 = vmatpush1.msra.mxu0 0.0
    %1715 = vmatprep.subr.mxu0 0.0
    %1716 = vmatpush1.msra.mxu0 0.0
    %1717 = vmatprep.subr.mxu0 0.0
    %1718 = vmatpush1.msra.mxu0 0.0
    %1719 = vmatprep.subr.mxu0 0.0
    %1720 = vmatpush1.msra.mxu0 0.0
    %1721 = vmatprep.subr.mxu0 0.0
    %1722 = vmatpush1.msra.mxu0 0.0
    %1723 = vmatprep.subr.mxu0 0.0
    %1724 = vmatpush1.msra.mxu0 %v1603
    %1725 = vmatprep.subr.mxu0 0.0
    %1726 = vmatpush2.msra.mxu0 0.0
    %1727 = vmatprep.subr.mxu0 0.0
    %1728 = vmatpush2.msra.mxu0 0.0
    %1729 = vmatprep.subr.mxu0 0.0
    %1730 = vmatpush2.msra.mxu0 0.0
    %1731 = vmatprep.subr.mxu0 0.0
    %1732 = vmatpush2.msra.mxu0 0.0
    %1733 = vmatprep.subr.mxu0 0.0
    %1734 = vmatpush2.msra.mxu0 0.0
    %1735 = vmatprep.subr.mxu0 0.0
    %1736 = vmatpush2.msra.mxu0 0.0
    %1737 = vmatprep.subr.mxu0 0.0
    %1738 = vmatpush2.msra.mxu0 0.0
    %1739 = vmatprep.subr.mxu0 0.0
    %1740 = vmatpush2.msra.mxu0 0.0
    %1741 = vmatprep.subr.mxu0 0.0
    %1742 = vmatpush2.msra.mxu0 0.0
    %1743 = vmatprep.subr.mxu0 0.0
    %1744 = vmatpush2.msra.mxu0 0.0
    %1745 = vmatprep.subr.mxu0 0.0
    %1746 = vmatpush2.msra.mxu0 0.0
    %1747 = vmatprep.subr.mxu0 0.0
    %1748 = vmatpush2.msra.mxu0 0.0
    %1749 = vmatprep.subr.mxu0 0.0
    %1750 = vmatpush2.msra.mxu0 0.0
    %1751 = vmatprep.subr.mxu0 0.0
    %1752 = vmatpush2.msra.mxu0 0.0
    %1753 = vmatprep.subr.mxu0 0.0
    %1754 = vmatpush2.msra.mxu0 0.0
    %1755 = vmatprep.subr.mxu0 0.0
    %1756 = vmatpush2.msra.mxu0 0.0
    %1757 = vmatprep.mubr.f32.mxu0 0.0
    %1758 = vmatmul.mubr.f32.gmra.mxu0 %v1691
    %v1759 = vpop.f32.mrf.mxu0
    %v1760 = vadd.f32 %v1342, %v1759
    %v1761 = vpop.f32.mrf.mxu0
    %1762 = vdwg.mxu0
    %v1763 = vsel %vm301, %v1760, 0.0
    %1764 = vadd.xlane.f32.xlu0 %v1763
    %v1765 = vpop.xlane.xlu0 %1764
    %v1766 = vmul.f32 %v1765, %v537
    %v1767 = vsub.f32 %v1760, %v1766
    %v1768 = vmul.f32 %v1767, %v1767
    %v1769 = vsel %vm301, %v1768, 0.0
    %1770 = vadd.xlane.f32.xlu0 %v1769
    %v1771 = vpop.xlane.xlu0 %1770
    %v1772 = vmul.f32 %v1771, %v537
    %v1773 = vadd.f32 %v1772, 1e-05
    %v1774 = vrsqrt.pop %v1773
    %v1775 = vmul.f32 %v1767, %v1774
    %v1776 = vmul.f32 %v1775, %v1346
    %v1777 = vadd.f32 %v1776, %v1350
    %1778 = vrot.lane.b32.xlu0 %v1425, 96
    %v1779 = vpop.permute.xlu0 %1778
    %v1780 = vsel %vm301, %v1779, 0
    %1782 = vmatprep.subr.mxu0 0.0
    %1783 = vmatpush1.xpose.msra.mxu0 0.0
    %1784 = vmatprep.subr.mxu0 0.0
    %1785 = vmatpush1.xpose.msra.mxu0 0.0
    %1786 = vmatprep.subr.mxu0 0.0
    %1787 = vmatpush1.xpose.msra.mxu0 0.0
    %1788 = vmatprep.subr.mxu0 0.0
    %1789 = vmatpush1.xpose.msra.mxu0 0.0
    %1790 = vmatprep.subr.mxu0 0.0
    %1791 = vmatpush1.xpose.msra.mxu0 0.0
    %1792 = vmatprep.subr.mxu0 0.0
    %1793 = vmatpush1.xpose.msra.mxu0 0.0
    %1794 = vmatprep.subr.mxu0 0.0
    %1795 = vmatpush1.xpose.msra.mxu0 0.0
    %1796 = vmatprep.subr.mxu0 0.0
    %1797 = vmatpush1.xpose.msra.mxu0 0.0
    %1798 = vmatprep.subr.mxu0 0.0
    %1799 = vmatpush1.xpose.msra.mxu0 0.0
    %1800 = vmatprep.subr.mxu0 0.0
    %1801 = vmatpush1.xpose.msra.mxu0 0.0
    %1802 = vmatprep.subr.mxu0 0.0
    %1803 = vmatpush1.xpose.msra.mxu0 0.0
    %1804 = vmatprep.subr.mxu0 0.0
    %1805 = vmatpush1.xpose.msra.mxu0 0.0
    %1806 = vmatprep.subr.mxu0 0.0
    %1807 = vmatpush1.xpose.msra.mxu0 0.0
    %1808 = vmatprep.subr.mxu0 0.0
    %1809 = vmatpush1.xpose.msra.mxu0 0.0
    %1810 = vmatprep.subr.mxu0 0.0
    %1811 = vmatpush1.xpose.msra.mxu0 0.0
    %1812 = vmatprep.subr.mxu0 0.0
    %1813 = vmatpush1.xpose.msra.mxu0 %v1780
    %1814 = vmatprep.subr.mxu0 0.0
    %1815 = vmatpush2.xpose.msra.mxu0 0.0
    %1816 = vmatprep.subr.mxu0 0.0
    %1817 = vmatpush2.xpose.msra.mxu0 0.0
    %1818 = vmatprep.subr.mxu0 0.0
    %1819 = vmatpush2.xpose.msra.mxu0 0.0
    %1820 = vmatprep.subr.mxu0 0.0
    %1821 = vmatpush2.xpose.msra.mxu0 0.0
    %1822 = vmatprep.subr.mxu0 0.0
    %1823 = vmatpush2.xpose.msra.mxu0 0.0
    %1824 = vmatprep.subr.mxu0 0.0
    %1825 = vmatpush2.xpose.msra.mxu0 0.0
    %1826 = vmatprep.subr.mxu0 0.0
    %1827 = vmatpush2.xpose.msra.mxu0 0.0
    %1828 = vmatprep.subr.mxu0 0.0
    %1829 = vmatpush2.xpose.msra.mxu0 0.0
    %1830 = vmatprep.subr.mxu0 0.0
    %1831 = vmatpush2.xpose.msra.mxu0 0.0
    %1832 = vmatprep.subr.mxu0 0.0
    %1833 = vmatpush2.xpose.msra.mxu0 0.0
    %1834 = vmatprep.subr.mxu0 0.0
    %1835 = vmatpush2.xpose.msra.mxu0 0.0
    %1836 = vmatprep.subr.mxu0 0.0
    %1837 = vmatpush2.xpose.msra.mxu0 0.0
    %1838 = vmatprep.subr.mxu0 0.0
    %1839 = vmatpush2.xpose.msra.mxu0 0.0
    %1840 = vmatprep.subr.mxu0 0.0
    %1841 = vmatpush2.xpose.msra.mxu0 0.0
    %1842 = vmatprep.subr.mxu0 0.0
    %1843 = vmatpush2.xpose.msra.mxu0 0.0
    %1844 = vmatprep.subr.mxu0 0.0
    %1845 = vmatpush2.xpose.msra.mxu0 0.0
    %1846 = vmatprep.mubr.f32.mxu0 0.0
    %1847 = vmatmul.mubr.f32.gmra.mxu0 %v1780
    %v1848 = vpop.f32.mrf.mxu0
    %v1849 = vadd.f32 0.0, %v1848
    %v1850 = vpop.f32.mrf.mxu0
    %1851 = vdwg.mxu0
    %v1852 = vmul.f32 %v1849, 0.25
    %v1853 = vadd.f32 %v1852, %v288
    %v1854 = vsel %vm130, %v1853, -inf
    %1855 = vmax.xlane.f32.xlu0 %v1854
    %v1856 = vpop.xlane.xlu0 %1855
    %v1857 = vsub.f32 %v1853, %v1856
    %v1858 = vmul.f32 %v1857, 1.442695
    %v1859 = vpow.pop %v1858
    %v1860 = vsel %vm130, %v1859, 0.0
    %1861 = vadd.xlane.f32.xlu0 %v1860
    %v1862 = vpop.xlane.xlu0 %1861
    %v1863 = vrcp.pop %v1862
    %v1864 = vmul.f32 %v1859, %v1863
    %v1867 = vsel %vm130, %v1864, 0
    %1869 = vmatprep.subr.mxu0 0.0
    %1870 = vmatpush1.msra.mxu0 0.0
    %1871 = vmatprep.subr.mxu0 0.0
    %1872 = vmatpush1.msra.mxu0 0.0
    %1873 = vmatprep.subr.mxu0 0.0
    %1874 = vmatpush1.msra.mxu0 0.0
    %1875 = vmatprep.subr.mxu0 0.0
    %1876 = vmatpush1.msra.mxu0 0.0
    %1877 = vmatprep.subr.mxu0 0.0
    %1878 = vmatpush1.msra.mxu0 0.0
    %1879 = vmatprep.subr.mxu0 0.0
    %1880 = vmatpush1.msra.mxu0 0.0
    %1881 = vmatprep.subr.mxu0 0.0
    %1882 = vmatpush1.msra.mxu0 0.0
    %1883 = vmatprep.subr.mxu0 0.0
    %1884 = vmatpush1.msra.mxu0 0.0
    %1885 = vmatprep.subr.mxu0 0.0
    %1886 = vmatpush1.msra.mxu0 0.0
    %1887 = vmatprep.subr.mxu0 0.0
    %1888 = vmatpush1.msra.mxu0 0.0
    %1889 = vmatprep.subr.mxu0 0.0
    %1890 = vmatpush1.msra.mxu0 0.0
    %1891 = vmatprep.subr.mxu0 0.0
    %1892 = vmatpush1.msra.mxu0 0.0
    %1893 = vmatprep.subr.mxu0 0.0
    %1894 = vmatpush1.msra.mxu0 0.0
    %1895 = vmatprep.subr.mxu0 0.0
    %1896 = vmatpush1.msra.mxu0 0.0
    %1897 = vmatprep.subr.mxu0 0.0
    %1898 = vmatpush1.msra.mxu0 0.0
    %1899 = vmatprep.subr.mxu0 0.0
    %1900 = vmatpush1.msra.mxu0 %v1779
    %1901 = vmatprep.subr.mxu0 0.0
    %1902 = vmatpush2.msra.mxu0 0.0
    %1903 = vmatprep.subr.mxu0 0.0
    %1904 = vmatpush2.msra.mxu0 0.0
    %1905 = vmatprep.subr.mxu0 0.0
    %1906 = vmatpush2.msra.mxu0 0.0
    %1907 = vmatprep.subr.mxu0 0.0
    %1908 = vmatpush2.msra.mxu0 0.0
    %1909 = vmatprep.subr.mxu0 0.0
    %1910 = vmatpush2.msra.mxu0 0.0
    %1911 = vmatprep.subr.mxu0 0.0
    %1912 = vmatpush2.msra.mxu0 0.0
    %1913 = vmatprep.subr.mxu0 0.0
    %1914 = vmatpush2.msra.mxu0 0.0
    %1915 = vmatprep.subr.mxu0 0.0
    %1916 = vmatpush2.msra.mxu0 0.0
    %1917 = vmatprep.subr.mxu0 0.0
    %1918 = vmatpush2.msra.mxu0 0.0
    %1919 = vmatprep.subr.mxu0 0.0
    %1920 = vmatpush2.msra.mxu0 0.0
    %1921 = vmatprep.subr.mxu0 0.0
    %1922 = vmatpush2.msra.mxu0 0.0
    %1923 = vmatprep.subr.mxu0 0.0
    %1924 = vmatpush2.msra.mxu0 0.0
    %1925 = vmatprep.subr.mxu0 0.0
    %1926 = vmatpush2.msra.mxu0 0.0
    %1927 = vmatprep.subr.mxu0 0.0
    %1928 = vmatpush2.msra.mxu0 0.0
    %1929 = vmatprep.subr.mxu0 0.0
    %1930 = vmatpush2.msra.mxu0 0.0
    %1931 = vmatprep.subr.mxu0 0.0
    %1932 = vmatpush2.msra.mxu0 0.0
    %1933 = vmatprep.mubr.f32.mxu0 0.0
    %1934 = vmatmul.mubr.f32.gmra.mxu0 %v1867
    %v1935 = vpop.f32.mrf.mxu0
    %v1936 = vadd.f32 %v1342, %v1935
    %v1937 = vpop.f32.mrf.mxu0
    %1938 = vdwg.mxu0
    %v1939 = vsel %vm301, %v1936, 0.0
    %1940 = vadd.xlane.f32.xlu0 %v1939
    %v1941 = vpop.xlane.xlu0 %1940
    %v1942 = vmul.f32 %v1941, %v537
    %v1943 = vsub.f32 %v1936, %v1942
    %v1944 = vmul.f32 %v1943, %v1943
    %v1945 = vsel %vm301, %v1944, 0.0
    %1946 = vadd.xlane.f32.xlu0 %v1945
    %v1947 = vpop.xlane.xlu0 %1946
    %v1948 = vmul.f32 %v1947, %v537
    %v1949 = vadd.f32 %v1948, 1e-05
    %v1950 = vrsqrt.pop %v1949
    %v1951 = vmul.f32 %v1943, %v1950
    %v1952 = vmul.f32 %v1951, %v1346
    %v1953 = vadd.f32 %v1952, %v1350
    %1954 = vrot.lane.b32.xlu0 %v1425, 80
    %v1955 = vpop.permute.xlu0 %1954
    %v1956 = vsel %vm301, %v1955, 0
    %1958 = vmatprep.subr.mxu0 0.0
    %1959 = vmatpush1.xpose.msra.mxu0 0.0
    %1960 = vmatprep.subr.mxu0 0.0
    %1961 = vmatpush1.xpose.msra.mxu0 0.0
    %1962 = vmatprep.subr.mxu0 0.0
    %1963 = vmatpush1.xpose.msra.mxu0 0.0
    %1964 = vmatprep.subr.mxu0 0.0
    %1965 = vmatpush1.xpose.msra.mxu0 0.0
    %1966 = vmatprep.subr.mxu0 0.0
    %1967 = vmatpush1.xpose.msra.mxu0 0.0
    %1968 = vmatprep.subr.mxu0 0.0
    %1969 = vmatpush1.xpose.msra.mxu0 0.0
    %1970 = vmatprep.subr.mxu0 0.0
    %1971 = vmatpush1.xpose.msra.mxu0 0.0
    %1972 = vmatprep.subr.mxu0 0.0
    %1973 = vmatpush1.xpose.msra.mxu0 0.0
    %1974 = vmatprep.subr.mxu0 0.0
    %1975 = vmatpush1.xpose.msra.mxu0 0.0
    %1976 = vmatprep.subr.mxu0 0.0
    %1977 = vmatpush1.xpose.msra.mxu0 0.0
    %1978 = vmatprep.subr.mxu0 0.0
    %1979 = vmatpush1.xpose.msra.mxu0 0.0
    %1980 = vmatprep.subr.mxu0 0.0
    %1981 = vmatpush1.xpose.msra.mxu0 0.0
    %1982 = vmatprep.subr.mxu0 0.0
    %1983 = vmatpush1.xpose.msra.mxu0 0.0
    %1984 = vmatprep.subr.mxu0 0.0
    %1985 = vmatpush1.xpose.msra.mxu0 0.0
    %1986 = vmatprep.subr.mxu0 0.0
    %1987 = vmatpush1.xpose.msra.mxu0 0.0
    %1988 = vmatprep.subr.mxu0 0.0
    %1989 = vmatpush1.xpose.msra.mxu0 %v1956
    %1990 = vmatprep.subr.mxu0 0.0
    %1991 = vmatpush2.xpose.msra.mxu0 0.0
    %1992 = vmatprep.subr.mxu0 0.0
    %1993 = vmatpush2.xpose.msra.mxu0 0.0
    %1994 = vmatprep.subr.mxu0 0.0
    %1995 = vmatpush2.xpose.msra.mxu0 0.0
    %1996 = vmatprep.subr.mxu0 0.0
    %1997 = vmatpush2.xpose.msra.mxu0 0.0
    %1998 = vmatprep.subr.mxu0 0.0
    %1999 = vmatpush2.xpose.msra.mxu0 0.0
    %2000 = vmatprep.subr.mxu0 0.0
    %2001 = vmatpush2.xpose.msra.mxu0 0.0
    %2002 = vmatprep.subr.mxu0 0.0
    %2003 = vmatpush2.xpose.msra.mxu0 0.0
    %2004 = vmatprep.subr.mxu0 0.0
    %2005 = vmatpush2.xpose.msra.mxu0 0.0
    %2006 = vmatprep.subr.mxu0 0.0
    %2007 = vmatpush2.xpose.msra.mxu0 0.0
    %2008 = vmatprep.subr.mxu0 0.0
    %2009 = vmatpush2.xpose.msra.mxu0 0.0
    %2010 = vmatprep.subr.mxu0 0.0
    %2011 = vmatpush2.xpose.msra.mxu0 0.0
    %2012 = vmatprep.subr.mxu0 0.0
    %2013 = vmatpush2.xpose.msra.mxu0 0.0
    %2014 = vmatprep.subr.mxu0 0.0
    %2015 = vmatpush2.xpose.msra.mxu0 0.0
    %2016 = vmatprep.subr.mxu0 0.0
    %2017 = vmatpush2.xpose.msra.mxu0 0.0
    %2018 = vmatprep.subr.mxu0 0.0
    %2019 = vmatpush2.xpose.msra.mxu0 0.0
    %2020 = vmatprep.subr.mxu0 0.0
    %2021 = vmatpush2.xpose.msra.mxu0 0.0
    %2022 = vmatprep.mubr.f32.mxu0 0.0
    %2023 = vmatmul.mubr.f32.gmra.mxu0 %v1956
    %v2024 = vpop.f32.mrf.mxu0
    %v2025 = vadd.f32 0.0, %v2024
    %v2026 = vpop.f32.mrf.mxu0
    %2027 = vdwg.mxu0
    %v2028 = vmul.f32 %v2025, 0.25
    %v2029 = vadd.f32 %v2028, %v288
    %v2030 = vsel %vm130, %v2029, -inf
    %2031 = vmax.xlane.f32.xlu0 %v2030
    %v2032 = vpop.xlane.xlu0 %2031
    %v2033 = vsub.f32 %v2029, %v2032
    %v2034 = vmul.f32 %v2033, 1.442695
    %v2035 = vpow.pop %v2034
    %v2036 = vsel %vm130, %v2035, 0.0
    %2037 = vadd.xlane.f32.xlu0 %v2036
    %v2038 = vpop.xlane.xlu0 %2037
    %v2039 = vrcp.pop %v2038
    %v2040 = vmul.f32 %v2035, %v2039
    %v2043 = vsel %vm130, %v2040, 0
    %2045 = vmatprep.subr.mxu0 0.0
    %2046 = vmatpush1.msra.mxu0 0.0
    %2047 = vmatprep.subr.mxu0 0.0
    %2048 = vmatpush1.msra.mxu0 0.0
    %2049 = vmatprep.subr.mxu0 0.0
    %2050 = vmatpush1.msra.mxu0 0.0
    %2051 = vmatprep.subr.mxu0 0.0
    %2052 = vmatpush1.msra.mxu0 0.0
    %2053 = vmatprep.subr.mxu0 0.0
    %2054 = vmatpush1.msra.mxu0 0.0
    %2055 = vmatprep.subr.mxu0 0.0
    %2056 = vmatpush1.msra.mxu0 0.0
    %2057 = vmatprep.subr.mxu0 0.0
    %2058 = vmatpush1.msra.mxu0 0.0
    %2059 = vmatprep.subr.mxu0 0.0
    %2060 = vmatpush1.msra.mxu0 0.0
    %2061 = vmatprep.subr.mxu0 0.0
    %2062 = vmatpush1.msra.mxu0 0.0
    %2063 = vmatprep.subr.mxu0 0.0
    %2064 = vmatpush1.msra.mxu0 0.0
    %2065 = vmatprep.subr.mxu0 0.0
    %2066 = vmatpush1.msra.mxu0 0.0
    %2067 = vmatprep.subr.mxu0 0.0
    %2068 = vmatpush1.msra.mxu0 0.0
    %2069 = vmatprep.subr.mxu0 0.0
    %2070 = vmatpush1.msra.mxu0 0.0
    %2071 = vmatprep.subr.mxu0 0.0
    %2072 = vmatpush1.msra.mxu0 0.0
    %2073 = vmatprep.subr.mxu0 0.0
    %2074 = vmatpush1.msra.mxu0 0.0
    %2075 = vmatprep.subr.mxu0 0.0
    %2076 = vmatpush1.msra.mxu0 %v1955
    %2077 = vmatprep.subr.mxu0 0.0
    %2078 = vmatpush2.msra.mxu0 0.0
    %2079 = vmatprep.subr.mxu0 0.0
    %2080 = vmatpush2.msra.mxu0 0.0
    %2081 = vmatprep.subr.mxu0 0.0
    %2082 = vmatpush2.msra.mxu0 0.0
    %2083 = vmatprep.subr.mxu0 0.0
    %2084 = vmatpush2.msra.mxu0 0.0
    %2085 = vmatprep.subr.mxu0 0.0
    %2086 = vmatpush2.msra.mxu0 0.0
    %2087 = vmatprep.subr.mxu0 0.0
    %2088 = vmatpush2.msra.mxu0 0.0
    %2089 = vmatprep.subr.mxu0 0.0
    %2090 = vmatpush2.msra.mxu0 0.0
    %2091 = vmatprep.subr.mxu0 0.0
    %2092 = vmatpush2.msra.mxu0 0.0
    %2093 = vmatprep.subr.mxu0 0.0
    %2094 = vmatpush2.msra.mxu0 0.0
    %2095 = vmatprep.subr.mxu0 0.0
    %2096 = vmatpush2.msra.mxu0 0.0
    %2097 = vmatprep.subr.mxu0 0.0
    %2098 = vmatpush2.msra.mxu0 0.0
    %2099 = vmatprep.subr.mxu0 0.0
    %2100 = vmatpush2.msra.mxu0 0.0
    %2101 = vmatprep.subr.mxu0 0.0
    %2102 = vmatpush2.msra.mxu0 0.0
    %2103 = vmatprep.subr.mxu0 0.0
    %2104 = vmatpush2.msra.mxu0 0.0
    %2105 = vmatprep.subr.mxu0 0.0
    %2106 = vmatpush2.msra.mxu0 0.0
    %2107 = vmatprep.subr.mxu0 0.0
    %2108 = vmatpush2.msra.mxu0 0.0
    %2109 = vmatprep.mubr.f32.mxu0 0.0
    %2110 = vmatmul.mubr.f32.gmra.mxu0 %v2043
    %v2111 = vpop.f32.mrf.mxu0
    %v2112 = vadd.f32 %v1342, %v2111
    %v2113 = vpop.f32.mrf.mxu0
    %2114 = vdwg.mxu0
    %v2115 = vsel %vm301, %v2112, 0.0
    %2116 = vadd.xlane.f32.xlu0 %v2115
    %v2117 = vpop.xlane.xlu0 %2116
    %v2118 = vmul.f32 %v2117, %v537
    %v2119 = vsub.f32 %v2112, %v2118
    %v2120 = vmul.f32 %v2119, %v2119
    %v2121 = vsel %vm301, %v2120, 0.0
    %2122 = vadd.xlane.f32.xlu0 %v2121
    %v2123 = vpop.xlane.xlu0 %2122
    %v2124 = vmul.f32 %v2123, %v537
    %v2125 = vadd.f32 %v2124, 1e-05
    %v2126 = vrsqrt.pop %v2125
    %v2127 = vmul.f32 %v2119, %v2126
    %v2128 = vmul.f32 %v2127, %v1346
    %v2129 = vadd.f32 %v2128, %v1350
    %2131 = vrot.lane.b32.xlu0 %v1777, 16
    %v2132 = vpop.permute.xlu0 %2131
    %2135 = vrot.lane.b32.xlu0 %v1953, 32
    %v2136 = vpop.permute.xlu0 %2135
    %2139 = vrot.lane.b32.xlu0 %v2129, 48
    %v2140 = vpop.permute.xlu0 %2139
    %v2142 = vsel %vm301, %v1601, %v2132
    %v2143 = vsel %vm209, %v2142, %v2136
    %v2144 = vsel %vm1092, %v2143, %v2140
    %v2145 = vlaneseq
    %v2146 = vshrl.u32 %v2145, 7
    %v2147 = vsub.s32 0, %v2146
    %v2148 = vrot.slane %v79, %v2147
    %v2150 = vsel %vm1098, %v2144, 0
    %2152 = vmatprep.subr.mxu0 0.0
    %2153 = vmatpush1.msra.mxu0 0.0
    %2154 = vmatprep.subr.mxu0 0.0
    %2155 = vmatpush1.msra.mxu0 0.0
    %2156 = vmatprep.subr.mxu0 0.0
    %2157 = vmatpush1.msra.mxu0 0.0
    %2158 = vmatprep.subr.mxu0 0.0
    %2159 = vmatpush1.msra.mxu0 0.0
    %2160 = vmatprep.subr.mxu0 0.0
    %2161 = vmatpush1.msra.mxu0 0.0
    %2162 = vmatprep.subr.mxu0 0.0
    %2163 = vmatpush1.msra.mxu0 0.0
    %2164 = vmatprep.subr.mxu0 0.0
    %2165 = vmatpush1.msra.mxu0 0.0
    %2166 = vmatprep.subr.mxu0 0.0
    %2167 = vmatpush1.msra.mxu0 0.0
    %2168 = vmatprep.subr.mxu0 0.0
    %2169 = vmatpush1.msra.mxu0 %v78
    %2170 = vmatprep.subr.mxu0 0.0
    %2171 = vmatpush1.msra.mxu0 %v77
    %2172 = vmatprep.subr.mxu0 0.0
    %2173 = vmatpush1.msra.mxu0 %v76
    %2174 = vmatprep.subr.mxu0 0.0
    %2175 = vmatpush1.msra.mxu0 %v75
    %2176 = vmatprep.subr.mxu0 0.0
    %2177 = vmatpush1.msra.mxu0 %v74
    %2178 = vmatprep.subr.mxu0 0.0
    %2179 = vmatpush1.msra.mxu0 %v73
    %2180 = vmatprep.subr.mxu0 0.0
    %2181 = vmatpush1.msra.mxu0 %v72
    %2182 = vmatprep.subr.mxu0 0.0
    %2183 = vmatpush1.msra.mxu0 %v71
    %2184 = vmatprep.subr.mxu0 0.0
    %2185 = vmatpush2.msra.mxu0 0.0
    %2186 = vmatprep.subr.mxu0 0.0
    %2187 = vmatpush2.msra.mxu0 0.0
    %2188 = vmatprep.subr.mxu0 0.0
    %2189 = vmatpush2.msra.mxu0 0.0
    %2190 = vmatprep.subr.mxu0 0.0
    %2191 = vmatpush2.msra.mxu0 0.0
    %2192 = vmatprep.subr.mxu0 0.0
    %2193 = vmatpush2.msra.mxu0 0.0
    %2194 = vmatprep.subr.mxu0 0.0
    %2195 = vmatpush2.msra.mxu0 0.0
    %2196 = vmatprep.subr.mxu0 0.0
    %2197 = vmatpush2.msra.mxu0 0.0
    %2198 = vmatprep.subr.mxu0 0.0
    %2199 = vmatpush2.msra.mxu0 0.0
    %2200 = vmatprep.subr.mxu0 0.0
    %2201 = vmatpush2.msra.mxu0 0.0
    %2202 = vmatprep.subr.mxu0 0.0
    %2203 = vmatpush2.msra.mxu0 0.0
    %2204 = vmatprep.subr.mxu0 0.0
    %2205 = vmatpush2.msra.mxu0 0.0
    %2206 = vmatprep.subr.mxu0 0.0
    %2207 = vmatpush2.msra.mxu0 0.0
    %2208 = vmatprep.subr.mxu0 0.0
    %2209 = vmatpush2.msra.mxu0 0.0
    %2210 = vmatprep.subr.mxu0 0.0
    %2211 = vmatpush2.msra.mxu0 0.0
    %2212 = vmatprep.subr.mxu0 0.0
    %2213 = vmatpush2.msra.mxu0 0.0
    %2214 = vmatprep.subr.mxu0 0.0
    %2215 = vmatpush2.msra.mxu0 0.0
    %2216 = vmatprep.mubr.f32.mxu0 0.0
    %2217 = vmatmul.mubr.f32.gmra.mxu0 %v2150
    %v2218 = vpop.f32.mrf.mxu0
    %v2219 = vadd.f32 %v2148, %v2218
    %v2220 = vpop.f32.mrf.mxu0
    %2221 = vdwg.mxu0
    %v2222 = vlaneseq
    %v2223 = vshrl.u32 %v2222, 7
    %v2224 = vsub.s32 0, %v2223
    %v2225 = vrot.slane %v82, %v2224
    %v2227 = vsel %vm301, %v2219, 0
    %2229 = vmatprep.subr.mxu0 0.0
    %2230 = vmatpush1.msra.mxu0 0.0
    %2231 = vmatprep.subr.mxu0 0.0
    %2232 = vmatpush1.msra.mxu0 0.0
    %2233 = vmatprep.subr.mxu0 0.0
    %2234 = vmatpush1.msra.mxu0 0.0
    %2235 = vmatprep.subr.mxu0 0.0
    %2236 = vmatpush1.msra.mxu0 0.0
    %2237 = vmatprep.subr.mxu0 0.0
    %2238 = vmatpush1.msra.mxu0 0.0
    %2239 = vmatprep.subr.mxu0 0.0
    %2240 = vmatpush1.msra.mxu0 0.0
    %2241 = vmatprep.subr.mxu0 0.0
    %2242 = vmatpush1.msra.mxu0 0.0
    %2243 = vmatprep.subr.mxu0 0.0
    %2244 = vmatpush1.msra.mxu0 0.0
    %2245 = vmatprep.subr.mxu0 0.0
    %2246 = vmatpush1.msra.mxu0 0.0
    %2247 = vmatprep.subr.mxu0 0.0
    %2248 = vmatpush1.msra.mxu0 0.0
    %2249 = vmatprep.subr.mxu0 0.0
    %2250 = vmatpush1.msra.mxu0 0.0
    %2251 = vmatprep.subr.mxu0 0.0
    %2252 = vmatpush1.msra.mxu0 0.0
    %2253 = vmatprep.subr.mxu0 0.0
    %2254 = vmatpush1.msra.mxu0 0.0
    %2255 = vmatprep.subr.mxu0 0.0
    %2256 = vmatpush1.msra.mxu0 0.0
    %2257 = vmatprep.subr.mxu0 0.0
    %2258 = vmatpush1.msra.mxu0 %v81
    %2259 = vmatprep.subr.mxu0 0.0
    %2260 = vmatpush1.msra.mxu0 %v80
    %2261 = vmatprep.subr.mxu0 0.0
    %2262 = vmatpush2.msra.mxu0 0.0
    %2263 = vmatprep.subr.mxu0 0.0
    %2264 = vmatpush2.msra.mxu0 0.0
    %2265 = vmatprep.subr.mxu0 0.0
    %2266 = vmatpush2.msra.mxu0 0.0
    %2267 = vmatprep.subr.mxu0 0.0
    %2268 = vmatpush2.msra.mxu0 0.0
    %2269 = vmatprep.subr.mxu0 0.0
    %2270 = vmatpush2.msra.mxu0 0.0
    %2271 = vmatprep.subr.mxu0 0.0
    %2272 = vmatpush2.msra.mxu0 0.0
    %2273 = vmatprep.subr.mxu0 0.0
    %2274 = vmatpush2.msra.mxu0 0.0
    %2275 = vmatprep.subr.mxu0 0.0
    %2276 = vmatpush2.msra.mxu0 0.0
    %2277 = vmatprep.subr.mxu0 0.0
    %2278 = vmatpush2.msra.mxu0 0.0
    %2279 = vmatprep.subr.mxu0 0.0
    %2280 = vmatpush2.msra.mxu0 0.0
    %2281 = vmatprep.subr.mxu0 0.0
    %2282 = vmatpush2.msra.mxu0 0.0
    %2283 = vmatprep.subr.mxu0 0.0
    %2284 = vmatpush2.msra.mxu0 0.0
    %2285 = vmatprep.subr.mxu0 0.0
    %2286 = vmatpush2.msra.mxu0 0.0
    %2287 = vmatprep.subr.mxu0 0.0
    %2288 = vmatpush2.msra.mxu0 0.0
    %2289 = vmatprep.subr.mxu0 0.0
    %2290 = vmatpush2.msra.mxu0 0.0
    %2291 = vmatprep.subr.mxu0 0.0
    %2292 = vmatpush2.msra.mxu0 0.0
    %2293 = vmatprep.mubr.f32.mxu0 0.0
    %2294 = vmatmul.mubr.f32.gmra.mxu0 %v2227
    %v2295 = vpop.f32.mrf.mxu0
    %v2296 = vadd.f32 %v2225, %v2295
    %v2297 = vpop.f32.mrf.mxu0
    %2298 = vdwg.mxu0
    %v2299 = vmax.f32 %v2296, 0.0
    %v2300 = vlaneseq
    %v2301 = vshrl.u32 %v2300, 7
    %v2302 = vsub.s32 0, %v2301
    %v2303 = vrot.slane %v85, %v2302
    %v2305 = vsel %vm301, %v2299, 0
    %2307 = vmatprep.subr.mxu0 0.0
    %2308 = vmatpush1.msra.mxu0 0.0
    %2309 = vmatprep.subr.mxu0 0.0
    %2310 = vmatpush1.msra.mxu0 0.0
    %2311 = vmatprep.subr.mxu0 0.0
    %2312 = vmatpush1.msra.mxu0 0.0
    %2313 = vmatprep.subr.mxu0 0.0
    %2314 = vmatpush1.msra.mxu0 0.0
    %2315 = vmatprep.subr.mxu0 0.0
    %2316 = vmatpush1.msra.mxu0 0.0
    %2317 = vmatprep.subr.mxu0 0.0
    %2318 = vmatpush1.msra.mxu0 0.0
    %2319 = vmatprep.subr.mxu0 0.0
    %2320 = vmatpush1.msra.mxu0 0.0
    %2321 = vmatprep.subr.mxu0 0.0
    %2322 = vmatpush1.msra.mxu0 0.0
    %2323 = vmatprep.subr.mxu0 0.0
    %2324 = vmatpush1.msra.mxu0 0.0
    %2325 = vmatprep.subr.mxu0 0.0
    %2326 = vmatpush1.msra.mxu0 0.0
    %2327 = vmatprep.subr.mxu0 0.0
    %2328 = vmatpush1.msra.mxu0 0.0
    %2329 = vmatprep.subr.mxu0 0.0
    %2330 = vmatpush1.msra.mxu0 0.0
    %2331 = vmatprep.subr.mxu0 0.0
    %2332 = vmatpush1.msra.mxu0 0.0
    %2333 = vmatprep.subr.mxu0 0.0
    %2334 = vmatpush1.msra.mxu0 0.0
    %2335 = vmatprep.subr.mxu0 0.0
    %2336 = vmatpush1.msra.mxu0 %v84
    %2337 = vmatprep.subr.mxu0 0.0
    %2338 = vmatpush1.msra.mxu0 %v83
    %2339 = vmatprep.subr.mxu0 0.0
    %2340 = vmatpush2.msra.mxu0 0.0
    %2341 = vmatprep.subr.mxu0 0.0
    %2342 = vmatpush2.msra.mxu0 0.0
    %2343 = vmatprep.subr.mxu0 0.0
    %2344 = vmatpush2.msra.mxu0 0.0
    %2345 = vmatprep.subr.mxu0 0.0
    %2346 = vmatpush2.msra.mxu0 0.0
    %2347 = vmatprep.subr.mxu0 0.0
    %2348 = vmatpush2.msra.mxu0 0.0
    %2349 = vmatprep.subr.mxu0 0.0
    %2350 = vmatpush2.msra.mxu0 0.0
    %2351 = vmatprep.subr.mxu0 0.0
    %2352 = vmatpush2.msra.mxu0 0.0
    %2353 = vmatprep.subr.mxu0 0.0
    %2354 = vmatpush2.msra.mxu0 0.0
    %2355 = vmatprep.subr.mxu0 0.0
    %2356 = vmatpush2.msra.mxu0 0.0
    %2357 = vmatprep.subr.mxu0 0.0
    %2358 = vmatpush2.msra.mxu0 0.0
    %2359 = vmatprep.subr.mxu0 0.0
    %2360 = vmatpush2.msra.mxu0 0.0
    %2361 = vmatprep.subr.mxu0 0.0
    %2362 = vmatpush2.msra.mxu0 0.0
    %2363 = vmatprep.subr.mxu0 0.0
    %2364 = vmatpush2.msra.mxu0 0.0
    %2365 = vmatprep.subr.mxu0 0.0
    %2366 = vmatpush2.msra.mxu0 0.0
    %2367 = vmatprep.subr.mxu0 0.0
    %2368 = vmatpush2.msra.mxu0 0.0
    %2369 = vmatprep.subr.mxu0 0.0
    %2370 = vmatpush2.msra.mxu0 0.0
    %2371 = vmatprep.mubr.f32.mxu0 0.0
    %2372 = vmatmul.mubr.f32.gmra.mxu0 %v2305
    %v2373 = vpop.f32.mrf.mxu0
    %v2374 = vadd.f32 %v2303, %v2373
    %v2375 = vpop.f32.mrf.mxu0
    %2376 = vdwg.mxu0
    %v2377 = vadd.f32 %v2374, %v2219
    %v2378 = vsel %vm301, %v2377, 0.0
    %2379 = vadd.xlane.f32.xlu0 %v2378
    %v2380 = vpop.xlane.xlu0 %2379
    %v2381 = vmul.f32 %v2380, %v537
    %v2382 = vsub.f32 %v2377, %v2381
    %v2383 = vmul.f32 %v2382, %v2382
    %v2384 = vsel %vm301, %v2383, 0.0
    %2385 = vadd.xlane.f32.xlu0 %v2384
    %v2386 = vpop.xlane.xlu0 %2385
    %v2387 = vmul.f32 %v2386, %v537
    %v2388 = vadd.f32 %v2387, 1e-05
    %v2389 = vrsqrt.pop %v2388
    %v2390 = vmul.f32 %v2382, %v2389
    %v2391 = vmul.f32 %v2390, %v1346
    %v2392 = vadd.f32 %v2391, %v1350
    %v2393 = vlaneseq
    %v2394 = vshrl.u32 %v2393, 7
    %v2395 = vsub.s32 0, %v2394
    %v2396 = vrot.slane %v106, %v2395
    %v2397 = vlaneseq
    %v2398 = vshrl.u32 %v2397, 7
    %v2399 = vsub.s32 0, %v2398
    %v2400 = vrot.slane %v107, %v2399
    %v2401 = vlaneseq
    %v2402 = vshrl.u32 %v2401, 7
    %v2403 = vsub.s32 0, %v2402
    %v2404 = vrot.slane %v90, %v2403
    %v2406 = vsel %vm301, %v2392, 0
    %2408 = vmatprep.subr.mxu0 0.0
    %2409 = vmatpush1.msra.mxu0 0.0
    %2410 = vmatprep.subr.mxu0 0.0
    %2411 = vmatpush1.msra.mxu0 0.0
    %2412 = vmatprep.subr.mxu0 0.0
    %2413 = vmatpush1.msra.mxu0 0.0
    %2414 = vmatprep.subr.mxu0 0.0
    %2415 = vmatpush1.msra.mxu0 0.0
    %2416 = vmatprep.subr.mxu0 0.0
    %2417 = vmatpush1.msra.mxu0 0.0
    %2418 = vmatprep.subr.mxu0 0.0
    %2419 = vmatpush1.msra.mxu0 0.0
    %2420 = vmatprep.subr.mxu0 0.0
    %2421 = vmatpush1.msra.mxu0 0.0
    %2422 = vmatprep.subr.mxu0 0.0
    %2423 = vmatpush1.msra.mxu0 0.0
    %2424 = vmatprep.subr.mxu0 0.0
    %2425 = vmatpush1.msra.mxu0 0.0
    %2426 = vmatprep.subr.mxu0 0.0
    %2427 = vmatpush1.msra.mxu0 0.0
    %2428 = vmatprep.subr.mxu0 0.0
    %2429 = vmatpush1.msra.mxu0 0.0
    %2430 = vmatprep.subr.mxu0 0.0
    %2431 = vmatpush1.msra.mxu0 0.0
    %2432 = vmatprep.subr.mxu0 0.0
    %2433 = vmatpush1.msra.mxu0 0.0
    %2434 = vmatprep.subr.mxu0 0.0
    %2435 = vmatpush1.msra.mxu0 0.0
    %2436 = vmatprep.subr.mxu0 0.0
    %2437 = vmatpush1.msra.mxu0 %v89
    %2438 = vmatprep.subr.mxu0 0.0
    %2439 = vmatpush1.msra.mxu0 %v88
    %2440 = vmatprep.subr.mxu0 0.0
    %2441 = vmatpush2.msra.mxu0 0.0
    %2442 = vmatprep.subr.mxu0 0.0
    %2443 = vmatpush2.msra.mxu0 0.0
    %2444 = vmatprep.subr.mxu0 0.0
    %2445 = vmatpush2.msra.mxu0 0.0
    %2446 = vmatprep.subr.mxu0 0.0
    %2447 = vmatpush2.msra.mxu0 0.0
    %2448 = vmatprep.subr.mxu0 0.0
    %2449 = vmatpush2.msra.mxu0 0.0
    %2450 = vmatprep.subr.mxu0 0.0
    %2451 = vmatpush2.msra.mxu0 0.0
    %2452 = vmatprep.subr.mxu0 0.0
    %2453 = vmatpush2.msra.mxu0 0.0
    %2454 = vmatprep.subr.mxu0 0.0
    %2455 = vmatpush2.msra.mxu0 0.0
    %2456 = vmatprep.subr.mxu0 0.0
    %2457 = vmatpush2.msra.mxu0 0.0
    %2458 = vmatprep.subr.mxu0 0.0
    %2459 = vmatpush2.msra.mxu0 0.0
    %2460 = vmatprep.subr.mxu0 0.0
    %2461 = vmatpush2.msra.mxu0 0.0
    %2462 = vmatprep.subr.mxu0 0.0
    %2463 = vmatpush2.msra.mxu0 0.0
    %2464 = vmatprep.subr.mxu0 0.0
    %2465 = vmatpush2.msra.mxu0 0.0
    %2466 = vmatprep.subr.mxu0 0.0
    %2467 = vmatpush2.msra.mxu0 0.0
    %2468 = vmatprep.subr.mxu0 0.0
    %2469 = vmatpush2.msra.mxu0 0.0
    %2470 = vmatprep.subr.mxu0 0.0
    %2471 = vmatpush2.msra.mxu0 0.0
    %2472 = vmatprep.mubr.f32.mxu0 0.0
    %2473 = vmatmul.mubr.f32.gmra.mxu0 %v2406
    %v2474 = vpop.f32.mrf.mxu0
    %v2475 = vadd.f32 %v2404, %v2474
    %v2476 = vpop.f32.mrf.mxu0
    %2477 = vdwg.mxu0
    %v2479 = vsel %vm301, %v2475, 0
    %2481 = vmatprep.subr.mxu0 0.0
    %2482 = vmatpush1.xpose.msra.mxu0 0.0
    %2483 = vmatprep.subr.mxu0 0.0
    %2484 = vmatpush1.xpose.msra.mxu0 0.0
    %2485 = vmatprep.subr.mxu0 0.0
    %2486 = vmatpush1.xpose.msra.mxu0 0.0
    %2487 = vmatprep.subr.mxu0 0.0
    %2488 = vmatpush1.xpose.msra.mxu0 0.0
    %2489 = vmatprep.subr.mxu0 0.0
    %2490 = vmatpush1.xpose.msra.mxu0 0.0
    %2491 = vmatprep.subr.mxu0 0.0
    %2492 = vmatpush1.xpose.msra.mxu0 0.0
    %2493 = vmatprep.subr.mxu0 0.0
    %2494 = vmatpush1.xpose.msra.mxu0 0.0
    %2495 = vmatprep.subr.mxu0 0.0
    %2496 = vmatpush1.xpose.msra.mxu0 0.0
    %2497 = vmatprep.subr.mxu0 0.0
    %2498 = vmatpush1.xpose.msra.mxu0 0.0
    %2499 = vmatprep.subr.mxu0 0.0
    %2500 = vmatpush1.xpose.msra.mxu0 0.0
    %2501 = vmatprep.subr.mxu0 0.0
    %2502 = vmatpush1.xpose.msra.mxu0 0.0
    %2503 = vmatprep.subr.mxu0 0.0
    %2504 = vmatpush1.xpose.msra.mxu0 0.0
    %2505 = vmatprep.subr.mxu0 0.0
    %2506 = vmatpush1.xpose.msra.mxu0 0.0
    %2507 = vmatprep.subr.mxu0 0.0
    %2508 = vmatpush1.xpose.msra.mxu0 0.0
    %2509 = vmatprep.subr.mxu0 0.0
    %2510 = vmatpush1.xpose.msra.mxu0 0.0
    %2511 = vmatprep.subr.mxu0 0.0
    %2512 = vmatpush1.xpose.msra.mxu0 %v2479
    %2513 = vmatprep.subr.mxu0 0.0
    %2514 = vmatpush2.xpose.msra.mxu0 0.0
    %2515 = vmatprep.subr.mxu0 0.0
    %2516 = vmatpush2.xpose.msra.mxu0 0.0
    %2517 = vmatprep.subr.mxu0 0.0
    %2518 = vmatpush2.xpose.msra.mxu0 0.0
    %2519 = vmatprep.subr.mxu0 0.0
    %2520 = vmatpush2.xpose.msra.mxu0 0.0
    %2521 = vmatprep.subr.mxu0 0.0
    %2522 = vmatpush2.xpose.msra.mxu0 0.0
    %2523 = vmatprep.subr.mxu0 0.0
    %2524 = vmatpush2.xpose.msra.mxu0 0.0
    %2525 = vmatprep.subr.mxu0 0.0
    %2526 = vmatpush2.xpose.msra.mxu0 0.0
    %2527 = vmatprep.subr.mxu0 0.0
    %2528 = vmatpush2.xpose.msra.mxu0 0.0
    %2529 = vmatprep.subr.mxu0 0.0
    %2530 = vmatpush2.xpose.msra.mxu0 0.0
    %2531 = vmatprep.subr.mxu0 0.0
    %2532 = vmatpush2.xpose.msra.mxu0 0.0
    %2533 = vmatprep.subr.mxu0 0.0
    %2534 = vmatpush2.xpose.msra.mxu0 0.0
    %2535 = vmatprep.subr.mxu0 0.0
    %2536 = vmatpush2.xpose.msra.mxu0 0.0
    %2537 = vmatprep.subr.mxu0 0.0
    %2538 = vmatpush2.xpose.msra.mxu0 0.0
    %2539 = vmatprep.subr.mxu0 0.0
    %2540 = vmatpush2.xpose.msra.mxu0 0.0
    %2541 = vmatprep.subr.mxu0 0.0
    %2542 = vmatpush2.xpose.msra.mxu0 0.0
    %2543 = vmatprep.subr.mxu0 0.0
    %2544 = vmatpush2.xpose.msra.mxu0 0.0
    %2545 = vmatprep.mubr.f32.mxu0 0.0
    %2546 = vmatmul.mubr.f32.gmra.mxu0 %v2479
    %v2547 = vpop.f32.mrf.mxu0
    %v2548 = vadd.f32 0.0, %v2547
    %v2549 = vpop.f32.mrf.mxu0
    %2550 = vdwg.mxu0
    %v2551 = vmul.f32 %v2548, 0.25
    %v2552 = vadd.f32 %v2551, %v288
    %v2553 = vsel %vm130, %v2552, -inf
    %2554 = vmax.xlane.f32.xlu0 %v2553
    %v2555 = vpop.xlane.xlu0 %2554
    %v2556 = vsub.f32 %v2552, %v2555
    %v2557 = vmul.f32 %v2556, 1.442695
    %v2558 = vpow.pop %v2557
    %v2559 = vsel %vm130, %v2558, 0.0
    %2560 = vadd.xlane.f32.xlu0 %v2559
    %v2561 = vpop.xlane.xlu0 %2560
    %v2562 = vrcp.pop %v2561
    %v2563 = vmul.f32 %v2558, %v2562
    %v2565 = vsel %vm130, %v2563, 0
    %2567 = vmatprep.subr.mxu0 0.0
    %2568 = vmatpush1.msra.mxu0 0.0
    %2569 = vmatprep.subr.mxu0 0.0
    %2570 = vmatpush1.msra.mxu0 0.0
    %2571 = vmatprep.subr.mxu0 0.0
    %2572 = vmatpush1.msra.mxu0 0.0
    %2573 = vmatprep.subr.mxu0 0.0
    %2574 = vmatpush1.msra.mxu0 0.0
    %2575 = vmatprep.subr.mxu0 0.0
    %2576 = vmatpush1.msra.mxu0 0.0
    %2577 = vmatprep.subr.mxu0 0.0
    %2578 = vmatpush1.msra.mxu0 0.0
    %2579 = vmatprep.subr.mxu0 0.0
    %2580 = vmatpush1.msra.mxu0 0.0
    %2581 = vmatprep.subr.mxu0 0.0
    %2582 = vmatpush1.msra.mxu0 0.0
    %2583 = vmatprep.subr.mxu0 0.0
    %2584 = vmatpush1.msra.mxu0 0.0
    %2585 = vmatprep.subr.mxu0 0.0
    %2586 = vmatpush1.msra.mxu0 0.0
    %2587 = vmatprep.subr.mxu0 0.0
    %2588 = vmatpush1.msra.mxu0 0.0
    %2589 = vmatprep.subr.mxu0 0.0
    %2590 = vmatpush1.msra.mxu0 0.0
    %2591 = vmatprep.subr.mxu0 0.0
    %2592 = vmatpush1.msra.mxu0 0.0
    %2593 = vmatprep.subr.mxu0 0.0
    %2594 = vmatpush1.msra.mxu0 0.0
    %2595 = vmatprep.subr.mxu0 0.0
    %2596 = vmatpush1.msra.mxu0 0.0
    %2597 = vmatprep.subr.mxu0 0.0
    %2598 = vmatpush1.msra.mxu0 %v2475
    %2599 = vmatprep.subr.mxu0 0.0
    %2600 = vmatpush2.msra.mxu0 0.0
    %2601 = vmatprep.subr.mxu0 0.0
    %2602 = vmatpush2.msra.mxu0 0.0
    %2603 = vmatprep.subr.mxu0 0.0
    %2604 = vmatpush2.msra.mxu0 0.0
    %2605 = vmatprep.subr.mxu0 0.0
    %2606 = vmatpush2.msra.mxu0 0.0
    %2607 = vmatprep.subr.mxu0 0.0
    %2608 = vmatpush2.msra.mxu0 0.0
    %2609 = vmatprep.subr.mxu0 0.0
    %2610 = vmatpush2.msra.mxu0 0.0
    %2611 = vmatprep.subr.mxu0 0.0
    %2612 = vmatpush2.msra.mxu0 0.0
    %2613 = vmatprep.subr.mxu0 0.0
    %2614 = vmatpush2.msra.mxu0 0.0
    %2615 = vmatprep.subr.mxu0 0.0
    %2616 = vmatpush2.msra.mxu0 0.0
    %2617 = vmatprep.subr.mxu0 0.0
    %2618 = vmatpush2.msra.mxu0 0.0
    %2619 = vmatprep.subr.mxu0 0.0
    %2620 = vmatpush2.msra.mxu0 0.0
    %2621 = vmatprep.subr.mxu0 0.0
    %2622 = vmatpush2.msra.mxu0 0.0
    %2623 = vmatprep.subr.mxu0 0.0
    %2624 = vmatpush2.msra.mxu0 0.0
    %2625 = vmatprep.subr.mxu0 0.0
    %2626 = vmatpush2.msra.mxu0 0.0
    %2627 = vmatprep.subr.mxu0 0.0
    %2628 = vmatpush2.msra.mxu0 0.0
    %2629 = vmatprep.subr.mxu0 0.0
    %2630 = vmatpush2.msra.mxu0 0.0
    %2631 = vmatprep.mubr.f32.mxu0 0.0
    %2632 = vmatmul.mubr.f32.gmra.mxu0 %v2565
    %v2633 = vpop.f32.mrf.mxu0
    %v2634 = vadd.f32 %v2392, %v2633
    %v2635 = vpop.f32.mrf.mxu0
    %2636 = vdwg.mxu0
    %v2637 = vsel %vm301, %v2634, 0.0
    %2638 = vadd.xlane.f32.xlu0 %v2637
    %v2639 = vpop.xlane.xlu0 %2638
    %v2640 = vmul.f32 %v2639, %v537
    %v2641 = vsub.f32 %v2634, %v2640
    %v2642 = vmul.f32 %v2641, %v2641
    %v2643 = vsel %vm301, %v2642, 0.0
    %2644 = vadd.xlane.f32.xlu0 %v2643
    %v2645 = vpop.xlane.xlu0 %2644
    %v2646 = vmul.f32 %v2645, %v537
    %v2647 = vadd.f32 %v2646, 1e-05
    %v2648 = vrsqrt.pop %v2647
    %v2649 = vmul.f32 %v2641, %v2648
    %v2650 = vmul.f32 %v2649, %v2396
    %v2651 = vadd.f32 %v2650, %v2400
    %2652 = vrot.lane.b32.xlu0 %v2475, 112
    %v2653 = vpop.permute.xlu0 %2652
    %v2654 = vsel %vm301, %v2653, 0
    %2656 = vmatprep.subr.mxu0 0.0
    %2657 = vmatpush1.xpose.msra.mxu0 0.0
    %2658 = vmatprep.subr.mxu0 0.0
    %2659 = vmatpush1.xpose.msra.mxu0 0.0
    %2660 = vmatprep.subr.mxu0 0.0
    %2661 = vmatpush1.xpose.msra.mxu0 0.0
    %2662 = vmatprep.subr.mxu0 0.0
    %2663 = vmatpush1.xpose.msra.mxu0 0.0
    %2664 = vmatprep.subr.mxu0 0.0
    %2665 = vmatpush1.xpose.msra.mxu0 0.0
    %2666 = vmatprep.subr.mxu0 0.0
    %2667 = vmatpush1.xpose.msra.mxu0 0.0
    %2668 = vmatprep.subr.mxu0 0.0
    %2669 = vmatpush1.xpose.msra.mxu0 0.0
    %2670 = vmatprep.subr.mxu0 0.0
    %2671 = vmatpush1.xpose.msra.mxu0 0.0
    %2672 = vmatprep.subr.mxu0 0.0
    %2673 = vmatpush1.xpose.msra.mxu0 0.0
    %2674 = vmatprep.subr.mxu0 0.0
    %2675 = vmatpush1.xpose.msra.mxu0 0.0
    %2676 = vmatprep.subr.mxu0 0.0
    %2677 = vmatpush1.xpose.msra.mxu0 0.0
    %2678 = vmatprep.subr.mxu0 0.0
    %2679 = vmatpush1.xpose.msra.mxu0 0.0
    %2680 = vmatprep.subr.mxu0 0.0
    %2681 = vmatpush1.xpose.msra.mxu0 0.0
    %2682 = vmatprep.subr.mxu0 0.0
    %2683 = vmatpush1.xpose.msra.mxu0 0.0
    %2684 = vmatprep.subr.mxu0 0.0
    %2685 = vmatpush1.xpose.msra.mxu0 0.0
    %2686 = vmatprep.subr.mxu0 0.0
    %2687 = vmatpush1.xpose.msra.mxu0 %v2654
    %2688 = vmatprep.subr.mxu0 0.0
    %2689 = vmatpush2.xpose.msra.mxu0 0.0
    %2690 = vmatprep.subr.mxu0 0.0
    %2691 = vmatpush2.xpose.msra.mxu0 0.0
    %2692 = vmatprep.subr.mxu0 0.0
    %2693 = vmatpush2.xpose.msra.mxu0 0.0
    %2694 = vmatprep.subr.mxu0 0.0
    %2695 = vmatpush2.xpose.msra.mxu0 0.0
    %2696 = vmatprep.subr.mxu0 0.0
    %2697 = vmatpush2.xpose.msra.mxu0 0.0
    %2698 = vmatprep.subr.mxu0 0.0
    %2699 = vmatpush2.xpose.msra.mxu0 0.0
    %2700 = vmatprep.subr.mxu0 0.0
    %2701 = vmatpush2.xpose.msra.mxu0 0.0
    %2702 = vmatprep.subr.mxu0 0.0
    %2703 = vmatpush2.xpose.msra.mxu0 0.0
    %2704 = vmatprep.subr.mxu0 0.0
    %2705 = vmatpush2.xpose.msra.mxu0 0.0
    %2706 = vmatprep.subr.mxu0 0.0
    %2707 = vmatpush2.xpose.msra.mxu0 0.0
    %2708 = vmatprep.subr.mxu0 0.0
    %2709 = vmatpush2.xpose.msra.mxu0 0.0
    %2710 = vmatprep.subr.mxu0 0.0
    %2711 = vmatpush2.xpose.msra.mxu0 0.0
    %2712 = vmatprep.subr.mxu0 0.0
    %2713 = vmatpush2.xpose.msra.mxu0 0.0
    %2714 = vmatprep.subr.mxu0 0.0
    %2715 = vmatpush2.xpose.msra.mxu0 0.0
    %2716 = vmatprep.subr.mxu0 0.0
    %2717 = vmatpush2.xpose.msra.mxu0 0.0
    %2718 = vmatprep.subr.mxu0 0.0
    %2719 = vmatpush2.xpose.msra.mxu0 0.0
    %2720 = vmatprep.mubr.f32.mxu0 0.0
    %2721 = vmatmul.mubr.f32.gmra.mxu0 %v2654
    %v2722 = vpop.f32.mrf.mxu0
    %v2723 = vadd.f32 0.0, %v2722
    %v2724 = vpop.f32.mrf.mxu0
    %2725 = vdwg.mxu0
    %v2726 = vmul.f32 %v2723, 0.25
    %v2727 = vadd.f32 %v2726, %v288
    %v2728 = vsel %vm130, %v2727, -inf
    %2729 = vmax.xlane.f32.xlu0 %v2728
    %v2730 = vpop.xlane.xlu0 %2729
    %v2731 = vsub.f32 %v2727, %v2730
    %v2732 = vmul.f32 %v2731, 1.442695
    %v2733 = vpow.pop %v2732
    %v2734 = vsel %vm130, %v2733, 0.0
    %2735 = vadd.xlane.f32.xlu0 %v2734
    %v2736 = vpop.xlane.xlu0 %2735
    %v2737 = vrcp.pop %v2736
    %v2738 = vmul.f32 %v2733, %v2737
    %v2741 = vsel %vm130, %v2738, 0
    %2743 = vmatprep.subr.mxu0 0.0
    %2744 = vmatpush1.msra.mxu0 0.0
    %2745 = vmatprep.subr.mxu0 0.0
    %2746 = vmatpush1.msra.mxu0 0.0
    %2747 = vmatprep.subr.mxu0 0.0
    %2748 = vmatpush1.msra.mxu0 0.0
    %2749 = vmatprep.subr.mxu0 0.0
    %2750 = vmatpush1.msra.mxu0 0.0
    %2751 = vmatprep.subr.mxu0 0.0
    %2752 = vmatpush1.msra.mxu0 0.0
    %2753 = vmatprep.subr.mxu0 0.0
    %2754 = vmatpush1.msra.mxu0 0.0
    %2755 = vmatprep.subr.mxu0 0.0
    %2756 = vmatpush1.msra.mxu0 0.0
    %2757 = vmatprep.subr.mxu0 0.0
    %2758 = vmatpush1.msra.mxu0 0.0
    %2759 = vmatprep.subr.mxu0 0.0
    %2760 = vmatpush1.msra.mxu0 0.0
    %2761 = vmatprep.subr.mxu0 0.0
    %2762 = vmatpush1.msra.mxu0 0.0
    %2763 = vmatprep.subr.mxu0 0.0
    %2764 = vmatpush1.msra.mxu0 0.0
    %2765 = vmatprep.subr.mxu0 0.0
    %2766 = vmatpush1.msra.mxu0 0.0
    %2767 = vmatprep.subr.mxu0 0.0
    %2768 = vmatpush1.msra.mxu0 0.0
    %2769 = vmatprep.subr.mxu0 0.0
    %2770 = vmatpush1.msra.mxu0 0.0
    %2771 = vmatprep.subr.mxu0 0.0
    %2772 = vmatpush1.msra.mxu0 0.0
    %2773 = vmatprep.subr.mxu0 0.0
    %2774 = vmatpush1.msra.mxu0 %v2653
    %2775 = vmatprep.subr.mxu0 0.0
    %2776 = vmatpush2.msra.mxu0 0.0
    %2777 = vmatprep.subr.mxu0 0.0
    %2778 = vmatpush2.msra.mxu0 0.0
    %2779 = vmatprep.subr.mxu0 0.0
    %2780 = vmatpush2.msra.mxu0 0.0
    %2781 = vmatprep.subr.mxu0 0.0
    %2782 = vmatpush2.msra.mxu0 0.0
    %2783 = vmatprep.subr.mxu0 0.0
    %2784 = vmatpush2.msra.mxu0 0.0
    %2785 = vmatprep.subr.mxu0 0.0
    %2786 = vmatpush2.msra.mxu0 0.0
    %2787 = vmatprep.subr.mxu0 0.0
    %2788 = vmatpush2.msra.mxu0 0.0
    %2789 = vmatprep.subr.mxu0 0.0
    %2790 = vmatpush2.msra.mxu0 0.0
    %2791 = vmatprep.subr.mxu0 0.0
    %2792 = vmatpush2.msra.mxu0 0.0
    %2793 = vmatprep.subr.mxu0 0.0
    %2794 = vmatpush2.msra.mxu0 0.0
    %2795 = vmatprep.subr.mxu0 0.0
    %2796 = vmatpush2.msra.mxu0 0.0
    %2797 = vmatprep.subr.mxu0 0.0
    %2798 = vmatpush2.msra.mxu0 0.0
    %2799 = vmatprep.subr.mxu0 0.0
    %2800 = vmatpush2.msra.mxu0 0.0
    %2801 = vmatprep.subr.mxu0 0.0
    %2802 = vmatpush2.msra.mxu0 0.0
    %2803 = vmatprep.subr.mxu0 0.0
    %2804 = vmatpush2.msra.mxu0 0.0
    %2805 = vmatprep.subr.mxu0 0.0
    %2806 = vmatpush2.msra.mxu0 0.0
    %2807 = vmatprep.mubr.f32.mxu0 0.0
    %2808 = vmatmul.mubr.f32.gmra.mxu0 %v2741
    %v2809 = vpop.f32.mrf.mxu0
    %v2810 = vadd.f32 %v2392, %v2809
    %v2811 = vpop.f32.mrf.mxu0
    %2812 = vdwg.mxu0
    %v2813 = vsel %vm301, %v2810, 0.0
    %2814 = vadd.xlane.f32.xlu0 %v2813
    %v2815 = vpop.xlane.xlu0 %2814
    %v2816 = vmul.f32 %v2815, %v537
    %v2817 = vsub.f32 %v2810, %v2816
    %v2818 = vmul.f32 %v2817, %v2817
    %v2819 = vsel %vm301, %v2818, 0.0
    %2820 = vadd.xlane.f32.xlu0 %v2819
    %v2821 = vpop.xlane.xlu0 %2820
    %v2822 = vmul.f32 %v2821, %v537
    %v2823 = vadd.f32 %v2822, 1e-05
    %v2824 = vrsqrt.pop %v2823
    %v2825 = vmul.f32 %v2817, %v2824
    %v2826 = vmul.f32 %v2825, %v2396
    %v2827 = vadd.f32 %v2826, %v2400
    %2828 = vrot.lane.b32.xlu0 %v2475, 96
    %v2829 = vpop.permute.xlu0 %2828
    %v2830 = vsel %vm301, %v2829, 0
    %2832 = vmatprep.subr.mxu0 0.0
    %2833 = vmatpush1.xpose.msra.mxu0 0.0
    %2834 = vmatprep.subr.mxu0 0.0
    %2835 = vmatpush1.xpose.msra.mxu0 0.0
    %2836 = vmatprep.subr.mxu0 0.0
    %2837 = vmatpush1.xpose.msra.mxu0 0.0
    %2838 = vmatprep.subr.mxu0 0.0
    %2839 = vmatpush1.xpose.msra.mxu0 0.0
    %2840 = vmatprep.subr.mxu0 0.0
    %2841 = vmatpush1.xpose.msra.mxu0 0.0
    %2842 = vmatprep.subr.mxu0 0.0
    %2843 = vmatpush1.xpose.msra.mxu0 0.0
    %2844 = vmatprep.subr.mxu0 0.0
    %2845 = vmatpush1.xpose.msra.mxu0 0.0
    %2846 = vmatprep.subr.mxu0 0.0
    %2847 = vmatpush1.xpose.msra.mxu0 0.0
    %2848 = vmatprep.subr.mxu0 0.0
    %2849 = vmatpush1.xpose.msra.mxu0 0.0
    %2850 = vmatprep.subr.mxu0 0.0
    %2851 = vmatpush1.xpose.msra.mxu0 0.0
    %2852 = vmatprep.subr.mxu0 0.0
    %2853 = vmatpush1.xpose.msra.mxu0 0.0
    %2854 = vmatprep.subr.mxu0 0.0
    %2855 = vmatpush1.xpose.msra.mxu0 0.0
    %2856 = vmatprep.subr.mxu0 0.0
    %2857 = vmatpush1.xpose.msra.mxu0 0.0
    %2858 = vmatprep.subr.mxu0 0.0
    %2859 = vmatpush1.xpose.msra.mxu0 0.0
    %2860 = vmatprep.subr.mxu0 0.0
    %2861 = vmatpush1.xpose.msra.mxu0 0.0
    %2862 = vmatprep.subr.mxu0 0.0
    %2863 = vmatpush1.xpose.msra.mxu0 %v2830
    %2864 = vmatprep.subr.mxu0 0.0
    %2865 = vmatpush2.xpose.msra.mxu0 0.0
    %2866 = vmatprep.subr.mxu0 0.0
    %2867 = vmatpush2.xpose.msra.mxu0 0.0
    %2868 = vmatprep.subr.mxu0 0.0
    %2869 = vmatpush2.xpose.msra.mxu0 0.0
    %2870 = vmatprep.subr.mxu0 0.0
    %2871 = vmatpush2.xpose.msra.mxu0 0.0
    %2872 = vmatprep.subr.mxu0 0.0
    %2873 = vmatpush2.xpose.msra.mxu0 0.0
    %2874 = vmatprep.subr.mxu0 0.0
    %2875 = vmatpush2.xpose.msra.mxu0 0.0
    %2876 = vmatprep.subr.mxu0 0.0
    %2877 = vmatpush2.xpose.msra.mxu0 0.0
    %2878 = vmatprep.subr.mxu0 0.0
    %2879 = vmatpush2.xpose.msra.mxu0 0.0
    %2880 = vmatprep.subr.mxu0 0.0
    %2881 = vmatpush2.xpose.msra.mxu0 0.0
    %2882 = vmatprep.subr.mxu0 0.0
    %2883 = vmatpush2.xpose.msra.mxu0 0.0
    %2884 = vmatprep.subr.mxu0 0.0
    %2885 = vmatpush2.xpose.msra.mxu0 0.0
    %2886 = vmatprep.subr.mxu0 0.0
    %2887 = vmatpush2.xpose.msra.mxu0 0.0
    %2888 = vmatprep.subr.mxu0 0.0
    %2889 = vmatpush2.xpose.msra.mxu0 0.0
    %2890 = vmatprep.subr.mxu0 0.0
    %2891 = vmatpush2.xpose.msra.mxu0 0.0
    %2892 = vmatprep.subr.mxu0 0.0
    %2893 = vmatpush2.xpose.msra.mxu0 0.0
    %2894 = vmatprep.subr.mxu0 0.0
    %2895 = vmatpush2.xpose.msra.mxu0 0.0
    %2896 = vmatprep.mubr.f32.mxu0 0.0
    %2897 = vmatmul.mubr.f32.gmra.mxu0 %v2830
    %v2898 = vpop.f32.mrf.mxu0
    %v2899 = vadd.f32 0.0, %v2898
    %v2900 = vpop.f32.mrf.mxu0
    %2901 = vdwg.mxu0
    %v2902 = vmul.f32 %v2899, 0.25
    %v2903 = vadd.f32 %v2902, %v288
    %v2904 = vsel %vm130, %v2903, -inf
    %2905 = vmax.xlane.f32.xlu0 %v2904
    %v2906 = vpop.xlane.xlu0 %2905
    %v2907 = vsub.f32 %v2903, %v2906
    %v2908 = vmul.f32 %v2907, 1.442695
    %v2909 = vpow.pop %v2908
    %v2910 = vsel %vm130, %v2909, 0.0
    %2911 = vadd.xlane.f32.xlu0 %v2910
    %v2912 = vpop.xlane.xlu0 %2911
    %v2913 = vrcp.pop %v2912
    %v2914 = vmul.f32 %v2909, %v2913
    %v2917 = vsel %vm130, %v2914, 0
    %2919 = vmatprep.subr.mxu0 0.0
    %2920 = vmatpush1.msra.mxu0 0.0
    %2921 = vmatprep.subr.mxu0 0.0
    %2922 = vmatpush1.msra.mxu0 0.0
    %2923 = vmatprep.subr.mxu0 0.0
    %2924 = vmatpush1.msra.mxu0 0.0
    %2925 = vmatprep.subr.mxu0 0.0
    %2926 = vmatpush1.msra.mxu0 0.0
    %2927 = vmatprep.subr.mxu0 0.0
    %2928 = vmatpush1.msra.mxu0 0.0
    %2929 = vmatprep.subr.mxu0 0.0
    %2930 = vmatpush1.msra.mxu0 0.0
    %2931 = vmatprep.subr.mxu0 0.0
    %2932 = vmatpush1.msra.mxu0 0.0
    %2933 = vmatprep.subr.mxu0 0.0
    %2934 = vmatpush1.msra.mxu0 0.0
    %2935 = vmatprep.subr.mxu0 0.0
    %2936 = vmatpush1.msra.mxu0 0.0
    %2937 = vmatprep.subr.mxu0 0.0
    %2938 = vmatpush1.msra.mxu0 0.0
    %2939 = vmatprep.subr.mxu0 0.0
    %2940 = vmatpush1.msra.mxu0 0.0
    %2941 = vmatprep.subr.mxu0 0.0
    %2942 = vmatpush1.msra.mxu0 0.0
    %2943 = vmatprep.subr.mxu0 0.0
    %2944 = vmatpush1.msra.mxu0 0.0
    %2945 = vmatprep.subr.mxu0 0.0
    %2946 = vmatpush1.msra.mxu0 0.0
    %2947 = vmatprep.subr.mxu0 0.0
    %2948 = vmatpush1.msra.mxu0 0.0
    %2949 = vmatprep.subr.mxu0 0.0
    %2950 = vmatpush1.msra.mxu0 %v2829
    %2951 = vmatprep.subr.mxu0 0.0
    %2952 = vmatpush2.msra.mxu0 0.0
    %2953 = vmatprep.subr.mxu0 0.0
    %2954 = vmatpush2.msra.mxu0 0.0
    %2955 = vmatprep.subr.mxu0 0.0
    %2956 = vmatpush2.msra.mxu0 0.0
    %2957 = vmatprep.subr.mxu0 0.0
    %2958 = vmatpush2.msra.mxu0 0.0
    %2959 = vmatprep.subr.mxu0 0.0
    %2960 = vmatpush2.msra.mxu0 0.0
    %2961 = vmatprep.subr.mxu0 0.0
    %2962 = vmatpush2.msra.mxu0 0.0
    %2963 = vmatprep.subr.mxu0 0.0
    %2964 = vmatpush2.msra.mxu0 0.0
    %2965 = vmatprep.subr.mxu0 0.0
    %2966 = vmatpush2.msra.mxu0 0.0
    %2967 = vmatprep.subr.mxu0 0.0
    %2968 = vmatpush2.msra.mxu0 0.0
    %2969 = vmatprep.subr.mxu0 0.0
    %2970 = vmatpush2.msra.mxu0 0.0
    %2971 = vmatprep.subr.mxu0 0.0
    %2972 = vmatpush2.msra.mxu0 0.0
    %2973 = vmatprep.subr.mxu0 0.0
    %2974 = vmatpush2.msra.mxu0 0.0
    %2975 = vmatprep.subr.mxu0 0.0
    %2976 = vmatpush2.msra.mxu0 0.0
    %2977 = vmatprep.subr.mxu0 0.0
    %2978 = vmatpush2.msra.mxu0 0.0
    %2979 = vmatprep.subr.mxu0 0.0
    %2980 = vmatpush2.msra.mxu0 0.0
    %2981 = vmatprep.subr.mxu0 0.0
    %2982 = vmatpush2.msra.mxu0 0.0
    %2983 = vmatprep.mubr.f32.mxu0 0.0
    %2984 = vmatmul.mubr.f32.gmra.mxu0 %v2917
    %v2985 = vpop.f32.mrf.mxu0
    %v2986 = vadd.f32 %v2392, %v2985
    %v2987 = vpop.f32.mrf.mxu0
    %2988 = vdwg.mxu0
    %v2989 = vsel %vm301, %v2986, 0.0
    %2990 = vadd.xlane.f32.xlu0 %v2989
    %v2991 = vpop.xlane.xlu0 %2990
    %v2992 = vmul.f32 %v2991, %v537
    %v2993 = vsub.f32 %v2986, %v2992
    %v2994 = vmul.f32 %v2993, %v2993
    %v2995 = vsel %vm301, %v2994, 0.0
    %2996 = vadd.xlane.f32.xlu0 %v2995
    %v2997 = vpop.xlane.xlu0 %2996
    %v2998 = vmul.f32 %v2997, %v537
    %v2999 = vadd.f32 %v2998, 1e-05
    %v3000 = vrsqrt.pop %v2999
    %v3001 = vmul.f32 %v2993, %v3000
    %v3002 = vmul.f32 %v3001, %v2396
    %v3003 = vadd.f32 %v3002, %v2400
    %3004 = vrot.lane.b32.xlu0 %v2475, 80
    %v3005 = vpop.permute.xlu0 %3004
    %v3006 = vsel %vm301, %v3005, 0
    %3008 = vmatprep.subr.mxu0 0.0
    %3009 = vmatpush1.xpose.msra.mxu0 0.0
    %3010 = vmatprep.subr.mxu0 0.0
    %3011 = vmatpush1.xpose.msra.mxu0 0.0
    %3012 = vmatprep.subr.mxu0 0.0
    %3013 = vmatpush1.xpose.msra.mxu0 0.0
    %3014 = vmatprep.subr.mxu0 0.0
    %3015 = vmatpush1.xpose.msra.mxu0 0.0
    %3016 = vmatprep.subr.mxu0 0.0
    %3017 = vmatpush1.xpose.msra.mxu0 0.0
    %3018 = vmatprep.subr.mxu0 0.0
    %3019 = vmatpush1.xpose.msra.mxu0 0.0
    %3020 = vmatprep.subr.mxu0 0.0
    %3021 = vmatpush1.xpose.msra.mxu0 0.0
    %3022 = vmatprep.subr.mxu0 0.0
    %3023 = vmatpush1.xpose.msra.mxu0 0.0
    %3024 = vmatprep.subr.mxu0 0.0
    %3025 = vmatpush1.xpose.msra.mxu0 0.0
    %3026 = vmatprep.subr.mxu0 0.0
    %3027 = vmatpush1.xpose.msra.mxu0 0.0
    %3028 = vmatprep.subr.mxu0 0.0
    %3029 = vmatpush1.xpose.msra.mxu0 0.0
    %3030 = vmatprep.subr.mxu0 0.0
    %3031 = vmatpush1.xpose.msra.mxu0 0.0
    %3032 = vmatprep.subr.mxu0 0.0
    %3033 = vmatpush1.xpose.msra.mxu0 0.0
    %3034 = vmatprep.subr.mxu0 0.0
    %3035 = vmatpush1.xpose.msra.mxu0 0.0
    %3036 = vmatprep.subr.mxu0 0.0
    %3037 = vmatpush1.xpose.msra.mxu0 0.0
    %3038 = vmatprep.subr.mxu0 0.0
    %3039 = vmatpush1.xpose.msra.mxu0 %v3006
    %3040 = vmatprep.subr.mxu0 0.0
    %3041 = vmatpush2.xpose.msra.mxu0 0.0
    %3042 = vmatprep.subr.mxu0 0.0
    %3043 = vmatpush2.xpose.msra.mxu0 0.0
    %3044 = vmatprep.subr.mxu0 0.0
    %3045 = vmatpush2.xpose.msra.mxu0 0.0
    %3046 = vmatprep.subr.mxu0 0.0
    %3047 = vmatpush2.xpose.msra.mxu0 0.0
    %3048 = vmatprep.subr.mxu0 0.0
    %3049 = vmatpush2.xpose.msra.mxu0 0.0
    %3050 = vmatprep.subr.mxu0 0.0
    %3051 = vmatpush2.xpose.msra.mxu0 0.0
    %3052 = vmatprep.subr.mxu0 0.0
    %3053 = vmatpush2.xpose.msra.mxu0 0.0
    %3054 = vmatprep.subr.mxu0 0.0
    %3055 = vmatpush2.xpose.msra.mxu0 0.0
    %3056 = vmatprep.subr.mxu0 0.0
    %3057 = vmatpush2.xpose.msra.mxu0 0.0
    %3058 = vmatprep.subr.mxu0 0.0
    %3059 = vmatpush2.xpose.msra.mxu0 0.0
    %3060 = vmatprep.subr.mxu0 0.0
    %3061 = vmatpush2.xpose.msra.mxu0 0.0
    %3062 = vmatprep.subr.mxu0 0.0
    %3063 = vmatpush2.xpose.msra.mxu0 0.0
    %3064 = vmatprep.subr.mxu0 0.0
    %3065 = vmatpush2.xpose.msra.mxu0 0.0
    %3066 = vmatprep.subr.mxu0 0.0
    %3067 = vmatpush2.xpose.msra.mxu0 0.0
    %3068 = vmatprep.subr.mxu0 0.0
    %3069 = vmatpush2.xpose.msra.mxu0 0.0
    %3070 = vmatprep.subr.mxu0 0.0
    %3071 = vmatpush2.xpose.msra.mxu0 0.0
    %3072 = vmatprep.mubr.f32.mxu0 0.0
    %3073 = vmatmul.mubr.f32.gmra.mxu0 %v3006
    %v3074 = vpop.f32.mrf.mxu0
    %v3075 = vadd.f32 0.0, %v3074
    %v3076 = vpop.f32.mrf.mxu0
    %3077 = vdwg.mxu0
    %v3078 = vmul.f32 %v3075, 0.25
    %v3079 = vadd.f32 %v3078, %v288
    %v3080 = vsel %vm130, %v3079, -inf
    %3081 = vmax.xlane.f32.xlu0 %v3080
    %v3082 = vpop.xlane.xlu0 %3081
    %v3083 = vsub.f32 %v3079, %v3082
    %v3084 = vmul.f32 %v3083, 1.442695
    %v3085 = vpow.pop %v3084
    %v3086 = vsel %vm130, %v3085, 0.0
    %3087 = vadd.xlane.f32.xlu0 %v3086
    %v3088 = vpop.xlane.xlu0 %3087
    %v3089 = vrcp.pop %v3088
    %v3090 = vmul.f32 %v3085, %v3089
    %v3093 = vsel %vm130, %v3090, 0
    %3095 = vmatprep.subr.mxu0 0.0
    %3096 = vmatpush1.msra.mxu0 0.0
    %3097 = vmatprep.subr.mxu0 0.0
    %3098 = vmatpush1.msra.mxu0 0.0
    %3099 = vmatprep.subr.mxu0 0.0
    %3100 = vmatpush1.msra.mxu0 0.0
    %3101 = vmatprep.subr.mxu0 0.0
    %3102 = vmatpush1.msra.mxu0 0.0
    %3103 = vmatprep.subr.mxu0 0.0
    %3104 = vmatpush1.msra.mxu0 0.0
    %3105 = vmatprep.subr.mxu0 0.0
    %3106 = vmatpush1.msra.mxu0 0.0
    %3107 = vmatprep.subr.mxu0 0.0
    %3108 = vmatpush1.msra.mxu0 0.0
    %3109 = vmatprep.subr.mxu0 0.0
    %3110 = vmatpush1.msra.mxu0 0.0
    %3111 = vmatprep.subr.mxu0 0.0
    %3112 = vmatpush1.msra.mxu0 0.0
    %3113 = vmatprep.subr.mxu0 0.0
    %3114 = vmatpush1.msra.mxu0 0.0
    %3115 = vmatprep.subr.mxu0 0.0
    %3116 = vmatpush1.msra.mxu0 0.0
    %3117 = vmatprep.subr.mxu0 0.0
    %3118 = vmatpush1.msra.mxu0 0.0
    %3119 = vmatprep.subr.mxu0 0.0
    %3120 = vmatpush1.msra.mxu0 0.0
    %3121 = vmatprep.subr.mxu0 0.0
    %3122 = vmatpush1.msra.mxu0 0.0
    %3123 = vmatprep.subr.mxu0 0.0
    %3124 = vmatpush1.msra.mxu0 0.0
    %3125 = vmatprep.subr.mxu0 0.0
    %3126 = vmatpush1.msra.mxu0 %v3005
    %3127 = vmatprep.subr.mxu0 0.0
    %3128 = vmatpush2.msra.mxu0 0.0
    %3129 = vmatprep.subr.mxu0 0.0
    %3130 = vmatpush2.msra.mxu0 0.0
    %3131 = vmatprep.subr.mxu0 0.0
    %3132 = vmatpush2.msra.mxu0 0.0
    %3133 = vmatprep.subr.mxu0 0.0
    %3134 = vmatpush2.msra.mxu0 0.0
    %3135 = vmatprep.subr.mxu0 0.0
    %3136 = vmatpush2.msra.mxu0 0.0
    %3137 = vmatprep.subr.mxu0 0.0
    %3138 = vmatpush2.msra.mxu0 0.0
    %3139 = vmatprep.subr.mxu0 0.0
    %3140 = vmatpush2.msra.mxu0 0.0
    %3141 = vmatprep.subr.mxu0 0.0
    %3142 = vmatpush2.msra.mxu0 0.0
    %3143 = vmatprep.subr.mxu0 0.0
    %3144 = vmatpush2.msra.mxu0 0.0
    %3145 = vmatprep.subr.mxu0 0.0
    %3146 = vmatpush2.msra.mxu0 0.0
    %3147 = vmatprep.subr.mxu0 0.0
    %3148 = vmatpush2.msra.mxu0 0.0
    %3149 = vmatprep.subr.mxu0 0.0
    %3150 = vmatpush2.msra.mxu0 0.0
    %3151 = vmatprep.subr.mxu0 0.0
    %3152 = vmatpush2.msra.mxu0 0.0
    %3153 = vmatprep.subr.mxu0 0.0
    %3154 = vmatpush2.msra.mxu0 0.0
    %3155 = vmatprep.subr.mxu0 0.0
    %3156 = vmatpush2.msra.mxu0 0.0
    %3157 = vmatprep.subr.mxu0 0.0
    %3158 = vmatpush2.msra.mxu0 0.0
    %3159 = vmatprep.mubr.f32.mxu0 0.0
    %3160 = vmatmul.mubr.f32.gmra.mxu0 %v3093
    %v3161 = vpop.f32.mrf.mxu0
    %v3162 = vadd.f32 %v2392, %v3161
    %v3163 = vpop.f32.mrf.mxu0
    %3164 = vdwg.mxu0
    %v3165 = vsel %vm301, %v3162, 0.0
    %3166 = vadd.xlane.f32.xlu0 %v3165
    %v3167 = vpop.xlane.xlu0 %3166
    %v3168 = vmul.f32 %v3167, %v537
    %v3169 = vsub.f32 %v3162, %v3168
    %v3170 = vmul.f32 %v3169, %v3169
    %v3171 = vsel %vm301, %v3170, 0.0
    %3172 = vadd.xlane.f32.xlu0 %v3171
    %v3173 = vpop.xlane.xlu0 %3172
    %v3174 = vmul.f32 %v3173, %v537
    %v3175 = vadd.f32 %v3174, 1e-05
    %v3176 = vrsqrt.pop %v3175
    %v3177 = vmul.f32 %v3169, %v3176
    %v3178 = vmul.f32 %v3177, %v2396
    %v3179 = vadd.f32 %v3178, %v2400
    %3181 = vrot.lane.b32.xlu0 %v2827, 16
    %v3182 = vpop.permute.xlu0 %3181
    %3185 = vrot.lane.b32.xlu0 %v3003, 32
    %v3186 = vpop.permute.xlu0 %3185
    %3189 = vrot.lane.b32.xlu0 %v3179, 48
    %v3190 = vpop.permute.xlu0 %3189
    %v3192 = vsel %vm301, %v2651, %v3182
    %v3193 = vsel %vm209, %v3192, %v3186
    %v3194 = vsel %vm1092, %v3193, %v3190
    %v3195 = vlaneseq
    %v3196 = vshrl.u32 %v3195, 7
    %v3197 = vsub.s32 0, %v3196
    %v3198 = vrot.slane %v99, %v3197
    %v3200 = vsel %vm1098, %v3194, 0
    %3202 = vmatprep.subr.mxu0 0.0
    %3203 = vmatpush1.msra.mxu0 0.0
    %3204 = vmatprep.subr.mxu0 0.0
    %3205 = vmatpush1.msra.mxu0 0.0
    %3206 = vmatprep.subr.mxu0 0.0
    %3207 = vmatpush1.msra.mxu0 0.0
    %3208 = vmatprep.subr.mxu0 0.0
    %3209 = vmatpush1.msra.mxu0 0.0
    %3210 = vmatprep.subr.mxu0 0.0
    %3211 = vmatpush1.msra.mxu0 0.0
    %3212 = vmatprep.subr.mxu0 0.0
    %3213 = vmatpush1.msra.mxu0 0.0
    %3214 = vmatprep.subr.mxu0 0.0
    %3215 = vmatpush1.msra.mxu0 0.0
    %3216 = vmatprep.subr.mxu0 0.0
    %3217 = vmatpush1.msra.mxu0 0.0
    %3218 = vmatprep.subr.mxu0 0.0
    %3219 = vmatpush1.msra.mxu0 %v98
    %3220 = vmatprep.subr.mxu0 0.0
    %3221 = vmatpush1.msra.mxu0 %v97
    %3222 = vmatprep.subr.mxu0 0.0
    %3223 = vmatpush1.msra.mxu0 %v96
    %3224 = vmatprep.subr.mxu0 0.0
    %3225 = vmatpush1.msra.mxu0 %v95
    %3226 = vmatprep.subr.mxu0 0.0
    %3227 = vmatpush1.msra.mxu0 %v94
    %3228 = vmatprep.subr.mxu0 0.0
    %3229 = vmatpush1.msra.mxu0 %v93
    %3230 = vmatprep.subr.mxu0 0.0
    %3231 = vmatpush1.msra.mxu0 %v92
    %3232 = vmatprep.subr.mxu0 0.0
    %3233 = vmatpush1.msra.mxu0 %v91
    %3234 = vmatprep.subr.mxu0 0.0
    %3235 = vmatpush2.msra.mxu0 0.0
    %3236 = vmatprep.subr.mxu0 0.0
    %3237 = vmatpush2.msra.mxu0 0.0
    %3238 = vmatprep.subr.mxu0 0.0
    %3239 = vmatpush2.msra.mxu0 0.0
    %3240 = vmatprep.subr.mxu0 0.0
    %3241 = vmatpush2.msra.mxu0 0.0
    %3242 = vmatprep.subr.mxu0 0.0
    %3243 = vmatpush2.msra.mxu0 0.0
    %3244 = vmatprep.subr.mxu0 0.0
    %3245 = vmatpush2.msra.mxu0 0.0
    %3246 = vmatprep.subr.mxu0 0.0
    %3247 = vmatpush2.msra.mxu0 0.0
    %3248 = vmatprep.subr.mxu0 0.0
    %3249 = vmatpush2.msra.mxu0 0.0
    %3250 = vmatprep.subr.mxu0 0.0
    %3251 = vmatpush2.msra.mxu0 0.0
    %3252 = vmatprep.subr.mxu0 0.0
    %3253 = vmatpush2.msra.mxu0 0.0
    %3254 = vmatprep.subr.mxu0 0.0
    %3255 = vmatpush2.msra.mxu0 0.0
    %3256 = vmatprep.subr.mxu0 0.0
    %3257 = vmatpush2.msra.mxu0 0.0
    %3258 = vmatprep.subr.mxu0 0.0
    %3259 = vmatpush2.msra.mxu0 0.0
    %3260 = vmatprep.subr.mxu0 0.0
    %3261 = vmatpush2.msra.mxu0 0.0
    %3262 = vmatprep.subr.mxu0 0.0
    %3263 = vmatpush2.msra.mxu0 0.0
    %3264 = vmatprep.subr.mxu0 0.0
    %3265 = vmatpush2.msra.mxu0 0.0
    %3266 = vmatprep.mubr.f32.mxu0 0.0
    %3267 = vmatmul.mubr.f32.gmra.mxu0 %v3200
    %v3268 = vpop.f32.mrf.mxu0
    %v3269 = vadd.f32 %v3198, %v3268
    %v3270 = vpop.f32.mrf.mxu0
    %3271 = vdwg.mxu0
    %v3272 = vlaneseq
    %v3273 = vshrl.u32 %v3272, 7
    %v3274 = vsub.s32 0, %v3273
    %v3275 = vrot.slane %v102, %v3274
    %v3277 = vsel %vm301, %v3269, 0
    %3279 = vmatprep.subr.mxu0 0.0
    %3280 = vmatpush1.msra.mxu0 0.0
    %3281 = vmatprep.subr.mxu0 0.0
    %3282 = vmatpush1.msra.mxu0 0.0
    %3283 = vmatprep.subr.mxu0 0.0
    %3284 = vmatpush1.msra.mxu0 0.0
    %3285 = vmatprep.subr.mxu0 0.0
    %3286 = vmatpush1.msra.mxu0 0.0
    %3287 = vmatprep.subr.mxu0 0.0
    %3288 = vmatpush1.msra.mxu0 0.0
    %3289 = vmatprep.subr.mxu0 0.0
    %3290 = vmatpush1.msra.mxu0 0.0
    %3291 = vmatprep.subr.mxu0 0.0
    %3292 = vmatpush1.msra.mxu0 0.0
    %3293 = vmatprep.subr.mxu0 0.0
    %3294 = vmatpush1.msra.mxu0 0.0
    %3295 = vmatprep.subr.mxu0 0.0
    %3296 = vmatpush1.msra.mxu0 0.0
    %3297 = vmatprep.subr.mxu0 0.0
    %3298 = vmatpush1.msra.mxu0 0.0
    %3299 = vmatprep.subr.mxu0 0.0
    %3300 = vmatpush1.msra.mxu0 0.0
    %3301 = vmatprep.subr.mxu0 0.0
    %3302 = vmatpush1.msra.mxu0 0.0
    %3303 = vmatprep.subr.mxu0 0.0
    %3304 = vmatpush1.msra.mxu0 0.0
    %3305 = vmatprep.subr.mxu0 0.0
    %3306 = vmatpush1.msra.mxu0 0.0
    %3307 = vmatprep.subr.mxu0 0.0
    %3308 = vmatpush1.msra.mxu0 %v101
    %3309 = vmatprep.subr.mxu0 0.0
    %3310 = vmatpush1.msra.mxu0 %v100
    %3311 = vmatprep.subr.mxu0 0.0
    %3312 = vmatpush2.msra.mxu0 0.0
    %3313 = vmatprep.subr.mxu0 0.0
    %3314 = vmatpush2.msra.mxu0 0.0
    %3315 = vmatprep.subr.mxu0 0.0
    %3316 = vmatpush2.msra.mxu0 0.0
    %3317 = vmatprep.subr.mxu0 0.0
    %3318 = vmatpush2.msra.mxu0 0.0
    %3319 = vmatprep.subr.mxu0 0.0
    %3320 = vmatpush2.msra.mxu0 0.0
    %3321 = vmatprep.subr.mxu0 0.0
    %3322 = vmatpush2.msra.mxu0 0.0
    %3323 = vmatprep.subr.mxu0 0.0
    %3324 = vmatpush2.msra.mxu0 0.0
    %3325 = vmatprep.subr.mxu0 0.0
    %3326 = vmatpush2.msra.mxu0 0.0
    %3327 = vmatprep.subr.mxu0 0.0
    %3328 = vmatpush2.msra.mxu0 0.0
    %3329 = vmatprep.subr.mxu0 0.0
    %3330 = vmatpush2.msra.mxu0 0.0
    %3331 = vmatprep.subr.mxu0 0.0
    %3332 = vmatpush2.msra.mxu0 0.0
    %3333 = vmatprep.subr.mxu0 0.0
    %3334 = vmatpush2.msra.mxu0 0.0
    %3335 = vmatprep.subr.mxu0 0.0
    %3336 = vmatpush2.msra.mxu0 0.0
    %3337 = vmatprep.subr.mxu0 0.0
    %3338 = vmatpush2.msra.mxu0 0.0
    %3339 = vmatprep.subr.mxu0 0.0
    %3340 = vmatpush2.msra.mxu0 0.0
    %3341 = vmatprep.subr.mxu0 0.0
    %3342 = vmatpush2.msra.mxu0 0.0
    %3343 = vmatprep.mubr.f32.mxu0 0.0
    %3344 = vmatmul.mubr.f32.gmra.mxu0 %v3277
    %v3345 = vpop.f32.mrf.mxu0
    %v3346 = vadd.f32 %v3275, %v3345
    %v3347 = vpop.f32.mrf.mxu0
    %3348 = vdwg.mxu0
    %v3349 = vmax.f32 %v3346, 0.0
    %v3350 = vlaneseq
    %v3351 = vshrl.u32 %v3350, 7
    %v3352 = vsub.s32 0, %v3351
    %v3353 = vrot.slane %v105, %v3352
    %v3355 = vsel %vm301, %v3349, 0
    %3357 = vmatprep.subr.mxu0 0.0
    %3358 = vmatpush1.msra.mxu0 0.0
    %3359 = vmatprep.subr.mxu0 0.0
    %3360 = vmatpush1.msra.mxu0 0.0
    %3361 = vmatprep.subr.mxu0 0.0
    %3362 = vmatpush1.msra.mxu0 0.0
    %3363 = vmatprep.subr.mxu0 0.0
    %3364 = vmatpush1.msra.mxu0 0.0
    %3365 = vmatprep.subr.mxu0 0.0
    %3366 = vmatpush1.msra.mxu0 0.0
    %3367 = vmatprep.subr.mxu0 0.0
    %3368 = vmatpush1.msra.mxu0 0.0
    %3369 = vmatprep.subr.mxu0 0.0
    %3370 = vmatpush1.msra.mxu0 0.0
    %3371 = vmatprep.subr.mxu0 0.0
    %3372 = vmatpush1.msra.mxu0 0.0
    %3373 = vmatprep.subr.mxu0 0.0
    %3374 = vmatpush1.msra.mxu0 0.0
    %3375 = vmatprep.subr.mxu0 0.0
    %3376 = vmatpush1.msra.mxu0 0.0
    %3377 = vmatprep.subr.mxu0 0.0
    %3378 = vmatpush1.msra.mxu0 0.0
    %3379 = vmatprep.subr.mxu0 0.0
    %3380 = vmatpush1.msra.mxu0 0.0
    %3381 = vmatprep.subr.mxu0 0.0
    %3382 = vmatpush1.msra.mxu0 0.0
    %3383 = vmatprep.subr.mxu0 0.0
    %3384 = vmatpush1.msra.mxu0 0.0
    %3385 = vmatprep.subr.mxu0 0.0
    %3386 = vmatpush1.msra.mxu0 %v104
    %3387 = vmatprep.subr.mxu0 0.0
    %3388 = vmatpush1.msra.mxu0 %v103
    %3389 = vmatprep.subr.mxu0 0.0
    %3390 = vmatpush2.msra.mxu0 0.0
    %3391 = vmatprep.subr.mxu0 0.0
    %3392 = vmatpush2.msra.mxu0 0.0
    %3393 = vmatprep.subr.mxu0 0.0
    %3394 = vmatpush2.msra.mxu0 0.0
    %3395 = vmatprep.subr.mxu0 0.0
    %3396 = vmatpush2.msra.mxu0 0.0
    %3397 = vmatprep.subr.mxu0 0.0
    %3398 = vmatpush2.msra.mxu0 0.0
    %3399 = vmatprep.subr.mxu0 0.0
    %3400 = vmatpush2.msra.mxu0 0.0
    %3401 = vmatprep.subr.mxu0 0.0
    %3402 = vmatpush2.msra.mxu0 0.0
    %3403 = vmatprep.subr.mxu0 0.0
    %3404 = vmatpush2.msra.mxu0 0.0
    %3405 = vmatprep.subr.mxu0 0.0
    %3406 = vmatpush2.msra.mxu0 0.0
    %3407 = vmatprep.subr.mxu0 0.0
    %3408 = vmatpush2.msra.mxu0 0.0
    %3409 = vmatprep.subr.mxu0 0.0
    %3410 = vmatpush2.msra.mxu0 0.0
    %3411 = vmatprep.subr.mxu0 0.0
    %3412 = vmatpush2.msra.mxu0 0.0
    %3413 = vmatprep.subr.mxu0 0.0
    %3414 = vmatpush2.msra.mxu0 0.0
    %3415 = vmatprep.subr.mxu0 0.0
    %3416 = vmatpush2.msra.mxu0 0.0
    %3417 = vmatprep.subr.mxu0 0.0
    %3418 = vmatpush2.msra.mxu0 0.0
    %3419 = vmatprep.subr.mxu0 0.0
    %3420 = vmatpush2.msra.mxu0 0.0
    %3421 = vmatprep.mubr.f32.mxu0 0.0
    %3422 = vmatmul.mubr.f32.gmra.mxu0 %v3355
    %v3423 = vpop.f32.mrf.mxu0
    %v3424 = vadd.f32 %v3353, %v3423
    %v3425 = vpop.f32.mrf.mxu0
    %3426 = vdwg.mxu0
    %v3427 = vadd.f32 %v3424, %v3269
    %v3428 = vsel %vm301, %v3427, 0.0
    %3429 = vadd.xlane.f32.xlu0 %v3428
    %v3430 = vpop.xlane.xlu0 %3429
    %v3431 = vmul.f32 %v3430, %v537
    %v3432 = vsub.f32 %v3427, %v3431
    %v3433 = vmul.f32 %v3432, %v3432
    %v3434 = vsel %vm301, %v3433, 0.0
    %3435 = vadd.xlane.f32.xlu0 %v3434
    %v3436 = vpop.xlane.xlu0 %3435
    %v3437 = vmul.f32 %v3436, %v537
    %v3438 = vadd.f32 %v3437, 1e-05
    %v3439 = vrsqrt.pop %v3438
    %v3440 = vmul.f32 %v3432, %v3439
    %v3441 = vmul.f32 %v3440, %v2396
    %v3442 = vadd.f32 %v3441, %v2400
    %vm3443 = vcmask 97280
    %v3445 = vsel %vm3443, %v125, 0
    %vm3447 = vcmask 1043456
    %v3449 = vsel %vm3447, %v109, 0
    %3451 = vmatprep.subr.mxu0 0.0
    %3452 = vmatpush1.msra.mxu0 0.0
    %3453 = vmatprep.subr.mxu0 0.0
    %3454 = vmatpush1.msra.mxu0 0.0
    %3455 = vmatprep.subr.mxu0 0.0
    %3456 = vmatpush1.msra.mxu0 0.0
    %3457 = vmatprep.subr.mxu0 0.0
    %3458 = vmatpush1.msra.mxu0 0.0
    %3459 = vmatprep.subr.mxu0 0.0
    %3460 = vmatpush1.msra.mxu0 0.0
    %3461 = vmatprep.subr.mxu0 0.0
    %3462 = vmatpush1.msra.mxu0 0.0
    %3463 = vmatprep.subr.mxu0 0.0
    %3464 = vmatpush1.msra.mxu0 0.0
    %3465 = vmatprep.subr.mxu0 0.0
    %3466 = vmatpush1.msra.mxu0 0.0
    %3467 = vmatprep.subr.mxu0 0.0
    %3468 = vmatpush1.msra.mxu0 0.0
    %3469 = vmatprep.subr.mxu0 0.0
    %3470 = vmatpush1.msra.mxu0 0.0
    %3471 = vmatprep.subr.mxu0 0.0
    %3472 = vmatpush1.msra.mxu0 0.0
    %3473 = vmatprep.subr.mxu0 0.0
    %3474 = vmatpush1.msra.mxu0 0.0
    %3475 = vmatprep.subr.mxu0 0.0
    %3476 = vmatpush1.msra.mxu0 0.0
    %3477 = vmatprep.subr.mxu0 0.0
    %3478 = vmatpush1.msra.mxu0 0.0
    %3479 = vmatprep.subr.mxu0 0.0
    %3480 = vmatpush1.msra.mxu0 %v3449
    %3481 = vmatprep.subr.mxu0 0.0
    %3482 = vmatpush1.msra.mxu0 %v108
    %3483 = vmatprep.subr.mxu0 0.0
    %3484 = vmatpush2.msra.mxu0 0.0
    %3485 = vmatprep.subr.mxu0 0.0
    %3486 = vmatpush2.msra.mxu0 0.0
    %3487 = vmatprep.subr.mxu0 0.0
    %3488 = vmatpush2.msra.mxu0 0.0
    %3489 = vmatprep.subr.mxu0 0.0
    %3490 = vmatpush2.msra.mxu0 0.0
    %3491 = vmatprep.subr.mxu0 0.0
    %3492 = vmatpush2.msra.mxu0 0.0
    %3493 = vmatprep.subr.mxu0 0.0
    %3494 = vmatpush2.msra.mxu0 0.0
    %3495 = vmatprep.subr.mxu0 0.0
    %3496 = vmatpush2.msra.mxu0 0.0
    %3497 = vmatprep.subr.mxu0 0.0
    %3498 = vmatpush2.msra.mxu0 0.0
    %3499 = vmatprep.subr.mxu0 0.0
    %3500 = vmatpush2.msra.mxu0 0.0
    %3501 = vmatprep.subr.mxu0 0.0
    %3502 = vmatpush2.msra.mxu0 0.0
    %3503 = vmatprep.subr.mxu0 0.0
    %3504 = vmatpush2.msra.mxu0 0.0
    %3505 = vmatprep.subr.mxu0 0.0
    %3506 = vmatpush2.msra.mxu0 0.0
    %3507 = vmatprep.subr.mxu0 0.0
    %3508 = vmatpush2.msra.mxu0 0.0
    %3509 = vmatprep.subr.mxu0 0.0
    %3510 = vmatpush2.msra.mxu0 0.0
    %3511 = vmatprep.subr.mxu0 0.0
    %3512 = vmatpush2.msra.mxu0 0.0
    %3513 = vmatprep.subr.mxu0 0.0
    %3514 = vmatpush2.msra.mxu0 0.0
    %3515 = vmatprep.mubr.f32.mxu0 0.0
    %3516 = vmatmul.mubr.f32.gmra.mxu0 %v3445
    %v3517 = vpop.f32.mrf.mxu0
    %v3518 = vadd.f32 %v110, %v3517
    %v3519 = vpop.f32.mrf.mxu0
    %3520 = vdwg.mxu0
    %v3521 = vmax.f32 %v3518, 0.0
    %v3523 = vsel %vm209, %v3521, 0
    %3525 = vmatprep.subr.mxu0 0.0
    %3526 = vmatpush1.msra.mxu0 0.0
    %3527 = vmatprep.subr.mxu0 0.0
    %3528 = vmatpush1.msra.mxu0 0.0
    %3529 = vmatprep.subr.mxu0 0.0
    %3530 = vmatpush1.msra.mxu0 0.0
    %3531 = vmatprep.subr.mxu0 0.0
    %3532 = vmatpush1.msra.mxu0 0.0
    %3533 = vmatprep.subr.mxu0 0.0
    %3534 = vmatpush1.msra.mxu0 0.0
    %3535 = vmatprep.subr.mxu0 0.0
    %3536 = vmatpush1.msra.mxu0 0.0
    %3537 = vmatprep.subr.mxu0 0.0
    %3538 = vmatpush1.msra.mxu0 0.0
    %3539 = vmatprep.subr.mxu0 0.0
    %3540 = vmatpush1.msra.mxu0 0.0
    %3541 = vmatprep.subr.mxu0 0.0
    %3542 = vmatpush1.msra.mxu0 0.0
    %3543 = vmatprep.subr.mxu0 0.0
    %3544 = vmatpush1.msra.mxu0 0.0
    %3545 = vmatprep.subr.mxu0 0.0
    %3546 = vmatpush1.msra.mxu0 0.0
    %3547 = vmatprep.subr.mxu0 0.0
    %3548 = vmatpush1.msra.mxu0 0.0
    %3549 = vmatprep.subr.mxu0 0.0
    %3550 = vmatpush1.msra.mxu0 %v114
    %3551 = vmatprep.subr.mxu0 0.0
    %3552 = vmatpush1.msra.mxu0 %v113
    %3553 = vmatprep.subr.mxu0 0.0
    %3554 = vmatpush1.msra.mxu0 %v112
    %3555 = vmatprep.subr.mxu0 0.0
    %3556 = vmatpush1.msra.mxu0 %v111
    %3557 = vmatprep.subr.mxu0 0.0
    %3558 = vmatpush2.msra.mxu0 0.0
    %3559 = vmatprep.subr.mxu0 0.0
    %3560 = vmatpush2.msra.mxu0 0.0
    %3561 = vmatprep.subr.mxu0 0.0
    %3562 = vmatpush2.msra.mxu0 0.0
    %3563 = vmatprep.subr.mxu0 0.0
    %3564 = vmatpush2.msra.mxu0 0.0
    %3565 = vmatprep.subr.mxu0 0.0
    %3566 = vmatpush2.msra.mxu0 0.0
    %3567 = vmatprep.subr.mxu0 0.0
    %3568 = vmatpush2.msra.mxu0 0.0
    %3569 = vmatprep.subr.mxu0 0.0
    %3570 = vmatpush2.msra.mxu0 0.0
    %3571 = vmatprep.subr.mxu0 0.0
    %3572 = vmatpush2.msra.mxu0 0.0
    %3573 = vmatprep.subr.mxu0 0.0
    %3574 = vmatpush2.msra.mxu0 0.0
    %3575 = vmatprep.subr.mxu0 0.0
    %3576 = vmatpush2.msra.mxu0 0.0
    %3577 = vmatprep.subr.mxu0 0.0
    %3578 = vmatpush2.msra.mxu0 0.0
    %3579 = vmatprep.subr.mxu0 0.0
    %3580 = vmatpush2.msra.mxu0 0.0
    %3581 = vmatprep.subr.mxu0 0.0
    %3582 = vmatpush2.msra.mxu0 0.0
    %3583 = vmatprep.subr.mxu0 0.0
    %3584 = vmatpush2.msra.mxu0 0.0
    %3585 = vmatprep.subr.mxu0 0.0
    %3586 = vmatpush2.msra.mxu0 0.0
    %3587 = vmatprep.subr.mxu0 0.0
    %3588 = vmatpush2.msra.mxu0 0.0
    %3589 = vmatprep.mubr.f32.mxu0 0.0
    %3590 = vmatmul.mubr.f32.gmra.mxu0 %v3523
    %v3591 = vpop.f32.mrf.mxu0
    %v3592 = vadd.f32 %v115, %v3591
    %v3593 = vpop.f32.mrf.mxu0
    %3594 = vdwg.mxu0
    %v3595 = vlaneseq
    %v3596 = vshrl.u32 %v3595, 7
    %v3597 = vsub.s32 0, %v3596
    %v3598 = vrot.slane %v3592, %v3597
    %v3599 = vmul.f32 %v3442, %v3598
    %v3600 = vsel %vm301, %v3599, 0.0
    %3601 = vadd.xlane.f32.xlu0 %v3600
    %v3602 = vpop.xlane.xlu0 %3601
    %v3603 = vmul.f32 %v3602, 0.25
    %v3604 = vrot.slane %v3603, 4
    %v3605 = vmax.f32 %v3603, %v3604
    %v3606 = vrot.slane %v3605, 2
    %v3607 = vmax.f32 %v3605, %v3606
    %v3608 = vrot.slane %v3607, 1
    %v3609 = vmax.f32 %v3607, %v3608
    %v3610 = vsub.f32 %v3603, %v3609
    %v3611 = vmul.f32 %v3610, 1.442695
    %v3612 = vpow.pop %v3611
    %v3613 = vrot.slane %v3612, 4
    %v3614 = vadd.f32 %v3612, %v3613
    %v3615 = vrot.slane %v3614, 2
    %v3616 = vadd.f32 %v3614, %v3615
    %v3617 = vrot.slane %v3616, 1
    %v3618 = vadd.f32 %v3616, %v3617
    %v3619 = vrcp.pop %v3618
    %v3620 = vmul.f32 %v3612, %v3619
    %3621 = vxpose.xlu0.b32.start [1/16] %v3620, 128
    %3622 = vxpose.xlu0.b32.cont [2/16] 0.0, 128
    %3623 = vxpose.xlu0.b32.cont [3/16] 0.0, 128
    %3624 = vxpose.xlu0.b32.cont [4/16] 0.0, 128
    %3625 = vxpose.xlu0.b32.cont [5/16] 0.0, 128
    %3626 = vxpose.xlu0.b32.cont [6/16] 0.0, 128
    %3627 = vxpose.xlu0.b32.cont [7/16] 0.0, 128
    %3628 = vxpose.xlu0.b32.cont [8/16] 0.0, 128
    %3629 = vxpose.xlu0.b32.cont [9/16] 0.0, 128
    %3630 = vxpose.xlu0.b32.cont [10/16] 0.0, 128
    %3631 = vxpose.xlu0.b32.cont [11/16] 0.0, 128
    %3632 = vxpose.xlu0.b32.cont [12/16] 0.0, 128
    %3633 = vxpose.xlu0.b32.cont [13/16] 0.0, 128
    %3634 = vxpose.xlu0.b32.cont [14/16] 0.0, 128
    %3635 = vxpose.xlu0.b32.cont [15/16] 0.0, 128
    %3636 = vxpose.xlu0.b32.end [16/16] 0.0, 128
    %v3637 = vpop.trf.xlu0
    %v3638 = vpop.trf.xlu0
    %v3639 = vpop.trf.xlu0
    %v3640 = vpop.trf.xlu0
    %v3641 = vpop.trf.xlu0
    %v3642 = vpop.trf.xlu0
    %v3643 = vpop.trf.xlu0
    %v3644 = vpop.trf.xlu0
    %v3645 = vpop.trf.xlu0
    %v3646 = vpop.trf.xlu0
    %v3647 = vpop.trf.xlu0
    %v3648 = vpop.trf.xlu0
    %v3649 = vpop.trf.xlu0
    %v3650 = vpop.trf.xlu0
    %v3651 = vpop.trf.xlu0
    %v3652 = vpop.trf.xlu0
    %v3654 = vsel %vm130, %v3637, 0
    %3656 = vmatprep.subr.mxu0 0.0
    %3657 = vmatpush1.msra.mxu0 0.0
    %3658 = vmatprep.subr.mxu0 0.0
    %3659 = vmatpush1.msra.mxu0 0.0
    %3660 = vmatprep.subr.mxu0 0.0
    %3661 = vmatpush1.msra.mxu0 0.0
    %3662 = vmatprep.subr.mxu0 0.0
    %3663 = vmatpush1.msra.mxu0 0.0
    %3664 = vmatprep.subr.mxu0 0.0
    %3665 = vmatpush1.msra.mxu0 0.0
    %3666 = vmatprep.subr.mxu0 0.0
    %3667 = vmatpush1.msra.mxu0 0.0
    %3668 = vmatprep.subr.mxu0 0.0
    %3669 = vmatpush1.msra.mxu0 0.0
    %3670 = vmatprep.subr.mxu0 0.0
    %3671 = vmatpush1.msra.mxu0 0.0
    %3672 = vmatprep.subr.mxu0 0.0
    %3673 = vmatpush1.msra.mxu0 0.0
    %3674 = vmatprep.subr.mxu0 0.0
    %3675 = vmatpush1.msra.mxu0 0.0
    %3676 = vmatprep.subr.mxu0 0.0
    %3677 = vmatpush1.msra.mxu0 0.0
    %3678 = vmatprep.subr.mxu0 0.0
    %3679 = vmatpush1.msra.mxu0 0.0
    %3680 = vmatprep.subr.mxu0 0.0
    %3681 = vmatpush1.msra.mxu0 0.0
    %3682 = vmatprep.subr.mxu0 0.0
    %3683 = vmatpush1.msra.mxu0 0.0
    %3684 = vmatprep.subr.mxu0 0.0
    %3685 = vmatpush1.msra.mxu0 0.0
    %3686 = vmatprep.subr.mxu0 0.0
    %3687 = vmatpush1.msra.mxu0 %v3442
    %3688 = vmatprep.subr.mxu0 0.0
    %3689 = vmatpush2.msra.mxu0 0.0
    %3690 = vmatprep.subr.mxu0 0.0
    %3691 = vmatpush2.msra.mxu0 0.0
    %3692 = vmatprep.subr.mxu0 0.0
    %3693 = vmatpush2.msra.mxu0 0.0
    %3694 = vmatprep.subr.mxu0 0.0
    %3695 = vmatpush2.msra.mxu0 0.0
    %3696 = vmatprep.subr.mxu0 0.0
    %3697 = vmatpush2.msra.mxu0 0.0
    %3698 = vmatprep.subr.mxu0 0.0
    %3699 = vmatpush2.msra.mxu0 0.0
    %3700 = vmatprep.subr.mxu0 0.0
    %3701 = vmatpush2.msra.mxu0 0.0
    %3702 = vmatprep.subr.mxu0 0.0
    %3703 = vmatpush2.msra.mxu0 0.0
    %3704 = vmatprep.subr.mxu0 0.0
    %3705 = vmatpush2.msra.mxu0 0.0
    %3706 = vmatprep.subr.mxu0 0.0
    %3707 = vmatpush2.msra.mxu0 0.0
    %3708 = vmatprep.subr.mxu0 0.0
    %3709 = vmatpush2.msra.mxu0 0.0
    %3710 = vmatprep.subr.mxu0 0.0
    %3711 = vmatpush2.msra.mxu0 0.0
    %3712 = vmatprep.subr.mxu0 0.0
    %3713 = vmatpush2.msra.mxu0 0.0
    %3714 = vmatprep.subr.mxu0 0.0
    %3715 = vmatpush2.msra.mxu0 0.0
    %3716 = vmatprep.subr.mxu0 0.0
    %3717 = vmatpush2.msra.mxu0 0.0
    %3718 = vmatprep.subr.mxu0 0.0
    %3719 = vmatpush2.msra.mxu0 0.0
    %3720 = vmatprep.mubr.f32.mxu0 0.0
    %3721 = vmatmul.mubr.f32.gmra.mxu0 %v3654
    %v3722 = vpop.f32.mrf.mxu0
    %v3723 = vadd.f32 0.0, %v3722
    %v3724 = vpop.f32.mrf.mxu0
    %3725 = vdwg.mxu0
    %v3727 = vsel %vm301, %v3592, 0
    %3729 = vmatprep.subr.mxu0 0.0
    %3730 = vmatpush1.msra.mxu0 0.0
    %3731 = vmatprep.subr.mxu0 0.0
    %3732 = vmatpush1.msra.mxu0 0.0
    %3733 = vmatprep.subr.mxu0 0.0
    %3734 = vmatpush1.msra.mxu0 0.0
    %3735 = vmatprep.subr.mxu0 0.0
    %3736 = vmatpush1.msra.mxu0 0.0
    %3737 = vmatprep.subr.mxu0 0.0
    %3738 = vmatpush1.msra.mxu0 0.0
    %3739 = vmatprep.subr.mxu0 0.0
    %3740 = vmatpush1.msra.mxu0 0.0
    %3741 = vmatprep.subr.mxu0 0.0
    %3742 = vmatpush1.msra.mxu0 0.0
    %3743 = vmatprep.subr.mxu0 0.0
    %3744 = vmatpush1.msra.mxu0 0.0
    %3745 = vmatprep.subr.mxu0 0.0
    %3746 = vmatpush1.msra.mxu0 0.0
    %3747 = vmatprep.subr.mxu0 0.0
    %3748 = vmatpush1.msra.mxu0 0.0
    %3749 = vmatprep.subr.mxu0 0.0
    %3750 = vmatpush1.msra.mxu0 0.0
    %3751 = vmatprep.subr.mxu0 0.0
    %3752 = vmatpush1.msra.mxu0 0.0
    %3753 = vmatprep.subr.mxu0 0.0
    %3754 = vmatpush1.msra.mxu0 0.0
    %3755 = vmatprep.subr.mxu0 0.0
    %3756 = vmatpush1.msra.mxu0 0.0
    %3757 = vmatprep.subr.mxu0 0.0
    %3758 = vmatpush1.msra.mxu0 %v119
    %3759 = vmatprep.subr.mxu0 0.0
    %3760 = vmatpush1.msra.mxu0 %v118
    %3761 = vmatprep.subr.mxu0 0.0
    %3762 = vmatpush2.msra.mxu0 0.0
    %3763 = vmatprep.subr.mxu0 0.0
    %3764 = vmatpush2.msra.mxu0 0.0
    %3765 = vmatprep.subr.mxu0 0.0
    %3766 = vmatpush2.msra.mxu0 0.0
    %3767 = vmatprep.subr.mxu0 0.0
    %3768 = vmatpush2.msra.mxu0 0.0
    %3769 = vmatprep.subr.mxu0 0.0
    %3770 = vmatpush2.msra.mxu0 0.0
    %3771 = vmatprep.subr.mxu0 0.0
    %3772 = vmatpush2.msra.mxu0 0.0
    %3773 = vmatprep.subr.mxu0 0.0
    %3774 = vmatpush2.msra.mxu0 0.0
    %3775 = vmatprep.subr.mxu0 0.0
    %3776 = vmatpush2.msra.mxu0 0.0
    %3777 = vmatprep.subr.mxu0 0.0
    %3778 = vmatpush2.msra.mxu0 0.0
    %3779 = vmatprep.subr.mxu0 0.0
    %3780 = vmatpush2.msra.mxu0 0.0
    %3781 = vmatprep.subr.mxu0 0.0
    %3782 = vmatpush2.msra.mxu0 0.0
    %3783 = vmatprep.subr.mxu0 0.0
    %3784 = vmatpush2.msra.mxu0 0.0
    %3785 = vmatprep.subr.mxu0 0.0
    %3786 = vmatpush2.msra.mxu0 0.0
    %3787 = vmatprep.subr.mxu0 0.0
    %3788 = vmatpush2.msra.mxu0 0.0
    %3789 = vmatprep.subr.mxu0 0.0
    %3790 = vmatpush2.msra.mxu0 0.0
    %3791 = vmatprep.subr.mxu0 0.0
    %3792 = vmatpush2.msra.mxu0 0.0
    %3793 = vmatprep.mubr.f32.mxu0 0.0
    %3794 = vmatmul.mubr.f32.gmra.mxu0 %v3727
    %v3795 = vpop.f32.mrf.mxu0
    %v3796 = vadd.f32 0.0, %v3795
    %v3797 = vpop.f32.mrf.mxu0
    %3798 = vdwg.mxu0
    %v3800 = vsel %vm301, %v3723, 0
    %3802 = vmatprep.subr.mxu0 0.0
    %3803 = vmatpush1.msra.mxu0 0.0
    %3804 = vmatprep.subr.mxu0 0.0
    %3805 = vmatpush1.msra.mxu0 0.0
    %3806 = vmatprep.subr.mxu0 0.0
    %3807 = vmatpush1.msra.mxu0 0.0
    %3808 = vmatprep.subr.mxu0 0.0
    %3809 = vmatpush1.msra.mxu0 0.0
    %3810 = vmatprep.subr.mxu0 0.0
    %3811 = vmatpush1.msra.mxu0 0.0
    %3812 = vmatprep.subr.mxu0 0.0
    %3813 = vmatpush1.msra.mxu0 0.0
    %3814 = vmatprep.subr.mxu0 0.0
    %3815 = vmatpush1.msra.mxu0 0.0
    %3816 = vmatprep.subr.mxu0 0.0
    %3817 = vmatpush1.msra.mxu0 0.0
    %3818 = vmatprep.subr.mxu0 0.0
    %3819 = vmatpush1.msra.mxu0 0.0
    %3820 = vmatprep.subr.mxu0 0.0
    %3821 = vmatpush1.msra.mxu0 0.0
    %3822 = vmatprep.subr.mxu0 0.0
    %3823 = vmatpush1.msra.mxu0 0.0
    %3824 = vmatprep.subr.mxu0 0.0
    %3825 = vmatpush1.msra.mxu0 0.0
    %3826 = vmatprep.subr.mxu0 0.0
    %3827 = vmatpush1.msra.mxu0 0.0
    %3828 = vmatprep.subr.mxu0 0.0
    %3829 = vmatpush1.msra.mxu0 0.0
    %3830 = vmatprep.subr.mxu0 0.0
    %3831 = vmatpush1.msra.mxu0 %v117
    %3832 = vmatprep.subr.mxu0 0.0
    %3833 = vmatpush1.msra.mxu0 %v116
    %3834 = vmatprep.subr.mxu0 0.0
    %3835 = vmatpush2.msra.mxu0 0.0
    %3836 = vmatprep.subr.mxu0 0.0
    %3837 = vmatpush2.msra.mxu0 0.0
    %3838 = vmatprep.subr.mxu0 0.0
    %3839 = vmatpush2.msra.mxu0 0.0
    %3840 = vmatprep.subr.mxu0 0.0
    %3841 = vmatpush2.msra.mxu0 0.0
    %3842 = vmatprep.subr.mxu0 0.0
    %3843 = vmatpush2.msra.mxu0 0.0
    %3844 = vmatprep.subr.mxu0 0.0
    %3845 = vmatpush2.msra.mxu0 0.0
    %3846 = vmatprep.subr.mxu0 0.0
    %3847 = vmatpush2.msra.mxu0 0.0
    %3848 = vmatprep.subr.mxu0 0.0
    %3849 = vmatpush2.msra.mxu0 0.0
    %3850 = vmatprep.subr.mxu0 0.0
    %3851 = vmatpush2.msra.mxu0 0.0
    %3852 = vmatprep.subr.mxu0 0.0
    %3853 = vmatpush2.msra.mxu0 0.0
    %3854 = vmatprep.subr.mxu0 0.0
    %3855 = vmatpush2.msra.mxu0 0.0
    %3856 = vmatprep.subr.mxu0 0.0
    %3857 = vmatpush2.msra.mxu0 0.0
    %3858 = vmatprep.subr.mxu0 0.0
    %3859 = vmatpush2.msra.mxu0 0.0
    %3860 = vmatprep.subr.mxu0 0.0
    %3861 = vmatpush2.msra.mxu0 0.0
    %3862 = vmatprep.subr.mxu0 0.0
    %3863 = vmatpush2.msra.mxu0 0.0
    %3864 = vmatprep.subr.mxu0 0.0
    %3865 = vmatpush2.msra.mxu0 0.0
    %3866 = vmatprep.mubr.f32.mxu0 0.0
    %3867 = vmatmul.mubr.f32.gmra.mxu0 %v3800
    %v3868 = vpop.f32.mrf.mxu0
    %v3869 = vadd.f32 %v3796, %v3868
    %v3870 = vpop.f32.mrf.mxu0
    %3871 = vdwg.mxu0
    %v3872 = vadd.f32 %v3869, %v120
    %v3873 = vmax.f32 %v3872, 0.0
    %v3875 = vsel %vm301, %v3873, 0
    %3877 = vmatprep.subr.mxu0 0.0
    %3878 = vmatpush1.msra.mxu0 0.0
    %3879 = vmatprep.subr.mxu0 0.0
    %3880 = vmatpush1.msra.mxu0 0.0
    %3881 = vmatprep.subr.mxu0 0.0
    %3882 = vmatpush1.msra.mxu0 0.0
    %3883 = vmatprep.subr.mxu0 0.0
    %3884 = vmatpush1.msra.mxu0 0.0
    %3885 = vmatprep.subr.mxu0 0.0
    %3886 = vmatpush1.msra.mxu0 0.0
    %3887 = vmatprep.subr.mxu0 0.0
    %3888 = vmatpush1.msra.mxu0 0.0
    %3889 = vmatprep.subr.mxu0 0.0
    %3890 = vmatpush1.msra.mxu0 0.0
    %3891 = vmatprep.subr.mxu0 0.0
    %3892 = vmatpush1.msra.mxu0 0.0
    %3893 = vmatprep.subr.mxu0 0.0
    %3894 = vmatpush1.msra.mxu0 0.0
    %3895 = vmatprep.subr.mxu0 0.0
    %3896 = vmatpush1.msra.mxu0 0.0
    %3897 = vmatprep.subr.mxu0 0.0
    %3898 = vmatpush1.msra.mxu0 0.0
    %3899 = vmatprep.subr.mxu0 0.0
    %3900 = vmatpush1.msra.mxu0 0.0
    %3901 = vmatprep.subr.mxu0 0.0
    %3902 = vmatpush1.msra.mxu0 0.0
    %3903 = vmatprep.subr.mxu0 0.0
    %3904 = vmatpush1.msra.mxu0 0.0
    %3905 = vmatprep.subr.mxu0 0.0
    %3906 = vmatpush1.msra.mxu0 %v122
    %3907 = vmatprep.subr.mxu0 0.0
    %3908 = vmatpush1.msra.mxu0 %v121
    %3909 = vmatprep.subr.mxu0 0.0
    %3910 = vmatpush2.msra.mxu0 0.0
    %3911 = vmatprep.subr.mxu0 0.0
    %3912 = vmatpush2.msra.mxu0 0.0
    %3913 = vmatprep.subr.mxu0 0.0
    %3914 = vmatpush2.msra.mxu0 0.0
    %3915 = vmatprep.subr.mxu0 0.0
    %3916 = vmatpush2.msra.mxu0 0.0
    %3917 = vmatprep.subr.mxu0 0.0
    %3918 = vmatpush2.msra.mxu0 0.0
    %3919 = vmatprep.subr.mxu0 0.0
    %3920 = vmatpush2.msra.mxu0 0.0
    %3921 = vmatprep.subr.mxu0 0.0
    %3922 = vmatpush2.msra.mxu0 0.0
    %3923 = vmatprep.subr.mxu0 0.0
    %3924 = vmatpush2.msra.mxu0 0.0
    %3925 = vmatprep.subr.mxu0 0.0
    %3926 = vmatpush2.msra.mxu0 0.0
    %3927 = vmatprep.subr.mxu0 0.0
    %3928 = vmatpush2.msra.mxu0 0.0
    %3929 = vmatprep.subr.mxu0 0.0
    %3930 = vmatpush2.msra.mxu0 0.0
    %3931 = vmatprep.subr.mxu0 0.0
    %3932 = vmatpush2.msra.mxu0 0.0
    %3933 = vmatprep.subr.mxu0 0.0
    %3934 = vmatpush2.msra.mxu0 0.0
    %3935 = vmatprep.subr.mxu0 0.0
    %3936 = vmatpush2.msra.mxu0 0.0
    %3937 = vmatprep.subr.mxu0 0.0
    %3938 = vmatpush2.msra.mxu0 0.0
    %3939 = vmatprep.subr.mxu0 0.0
    %3940 = vmatpush2.msra.mxu0 0.0
    %3941 = vmatprep.mubr.f32.mxu0 0.0
    %3942 = vmatmul.mubr.f32.gmra.mxu0 %v3875
    %v3943 = vpop.f32.mrf.mxu0
    %v3944 = vadd.f32 %v123, %v3943
    %v3945 = vpop.f32.mrf.mxu0
    %3946 = vdwg.mxu0
    %vm3947 = vcmask 122880
    %3948 = vst.msk [vmem:[#allocation7] sm:$0x1] %vm3947, %v3944
    // Predicated region
    $region22: #{forward.1} parent=1 // pred_check
      _
    $region23: #{forward.1} parent=1 // pred_check_branch
      %3950 = sbr.rel (0) target = $region25
    $region24: #{forward.1} parent=1 // pred_region
      %s3952 = ssub.s32 16, 16
      %3953 = vsyncadd [#allocation4], %s3952
      %s3955 = sshll.u32 [#allocation7], 4
      %s3956 = int_to_ptr.vmem [resolvable:$true] %s3955
      %3958 = dma.vmem_to_hbm [thread:$0]  %s3956, 16, %s3, [#allocation4]
    $region25: #{forward.1} parent=1 // pred_fallthru
      _
    // Predicated region
    $region26: #{forward.1} parent=1 // pred_check
      _
    $region27: #{forward.1} parent=1 // pred_check_branch
      %3960 = sbr.rel (0) target = $region29
    $region28: #{forward.1} parent=1 // pred_region
      %3961 = dma.done [#allocation4], 16
    $region29: #{forward.1} parent=1 // pred_fallthru
      _
    %3962 = vsyncpa [#allocation3], 1
    %3963 = vsyncpa [#allocation6], 1
    %3964 = vsyncpa [#allocation4], 1

</llo_original>
